<compile_context>
chip_gen: v6e
topology: v6e:2x2x1
jax: 0.10.0
libtpu: 0.0.40
codegen_flags: <defaults>
</compile_context>

<pallas_src>
import functools

import jax
import jax.numpy as jnp
import numpy as np
from jax.experimental import pallas as pl
from jax.experimental.pallas import tpu as pltpu


# ----------------------------------------------------------------------------
# Pallas kernel: one fused multi-head GAT layer over a dense int8 adjacency.
# ----------------------------------------------------------------------------
def _gat_layer_kernel(hd_ref, hs_ref, w_ref, asrc_ref, adst_ref, adj_ref,
                      out_ref, edst_sc, m_sc, l_sc, acc_sc,
                      *, num_heads, d_out, apply_elu, neg_slope=0.01):
    # hd_ref  : (TM, D_in)        dst-node features (rows i*TM ..)
    # hs_ref  : (TS, D_in)        src-node features (rows j*TS ..)
    # w_ref   : (D_in, H*D_out)   all-head fc weights (pre-transposed), bf16
    # asrc_ref: (H, D_out)        attn weight half acting on z_src (f32)
    # adst_ref: (H, D_out)        attn weight half acting on z_dst (f32)
    # adj_ref : (TM, TS) int8     adj[dst, src] != 0  <=>  edge src->dst
    # out_ref : (TM, H*D_out)     concatenated head outputs
    j = pl.program_id(1)
    last_j = pl.num_programs(1) - 1

    def _elu(x):
        x = x.astype(jnp.float32)
        return jnp.where(x > 0, x, jnp.exp(x) - 1.0)

    w = w_ref[...]  # bf16

    @pl.when(j == 0)
    def _init():
        # dst-side attention logits (constant across src tiles) + accumulators
        h_dst = hd_ref[...]
        if apply_elu:
            h_dst = _elu(h_dst)
        z_dst = jnp.dot(h_dst.astype(jnp.bfloat16), w,
                        preferred_element_type=jnp.float32)        # (TM, H*Do)
        for hd in range(num_heads):
            z_h = z_dst[:, hd * d_out:(hd + 1) * d_out]
            edst_sc[:, hd:hd + 1] = jax.lax.dot_general(
                z_h, adst_ref[hd:hd + 1, :],
                (((1,), (1,)), ((), ())),
                preferred_element_type=jnp.float32)                # (TM, 1)
        m_sc[...] = jnp.full_like(m_sc, -jnp.inf)
        l_sc[...] = jnp.zeros_like(l_sc)
        acc_sc[...] = jnp.zeros_like(acc_sc)

    # z = fc(h) for this src tile, batched across all heads (one MXU matmul).
    h_src = hs_ref[...]
    if apply_elu:
        h_src = _elu(h_src)
    z_src = jnp.dot(h_src.astype(jnp.bfloat16), w,
                    preferred_element_type=jnp.float32)            # (TS, H*Do)

    mask = adj_ref[...].astype(jnp.float32) > 0.0                  # (TM, TS)

    for hd in range(num_heads):
        sl = slice(hd * d_out, (hd + 1) * d_out)
        z_h = z_src[:, sl]                                         # (TS, Do)
        # edge_attention: attn_fc([z_src ; z_dst]) = z_src.a_src + z_dst.a_dst
        e_src = jax.lax.dot_general(
            asrc_ref[hd:hd + 1, :], z_h,
            (((1,), (1,)), ((), ())),
            preferred_element_type=jnp.float32)                    # (1, TS)
        scores = edst_sc[:, hd:hd + 1] + e_src                     # (TM, TS)
        scores = jnp.where(scores > 0, scores, neg_slope * scores)  # leaky_relu
        # keep softmax path in f32 (the -1e30 sentinel is not bf16-safe)
        scores = jnp.where(mask, scores, jnp.float32(-1e30))

        # online masked softmax across src tiles
        m_prev = m_sc[:, hd:hd + 1]
        m_new = jnp.maximum(m_prev, jnp.max(scores, axis=1, keepdims=True))
        corr = jnp.exp(m_prev - m_new)
        p = jnp.exp(scores - m_new)
        p = jnp.where(mask, p, 0.0)
        l_sc[:, hd:hd + 1] = (corr * l_sc[:, hd:hd + 1]
                              + jnp.sum(p, axis=1, keepdims=True))
        acc_sc[:, sl] = corr * acc_sc[:, sl] + jnp.dot(
            p.astype(jnp.bfloat16), z_h.astype(jnp.bfloat16),
            preferred_element_type=jnp.float32)
        m_sc[:, hd:hd + 1] = m_new

    @pl.when(j == last_j)
    def _finalize():
        # Guard zero-in-degree rows: denom 0 -> output 0 instead of NaN.
        inv_l = pl.reciprocal(jnp.maximum(l_sc[...], jnp.float32(1e-30)),
                              approx=True)                         # (TM, H)
        for hd in range(num_heads):
            sl = slice(hd * d_out, (hd + 1) * d_out)
            out_ref[:, sl] = (acc_sc[:, sl]
                              * inv_l[:, hd:hd + 1]).astype(out_ref.dtype)


def gat_layer(h, w_all, a_src, a_dst, adj_i8, *, num_heads, d_out,
              apply_elu, out_dtype=jnp.float32, tm=128, ts=512):
    """One fused MultiHeadGATLayer (heads concatenated on dim=1)."""
    n_dst, n_src = adj_i8.shape
    d_in = h.shape[1]
    assert h.shape[0] == n_src
    assert w_all.shape == (d_in, num_heads * d_out)

    # Tile sizing note: adj tiles are int8 so (tm, ts) = (128, 512) is tiny;
    # for very large N on v7x (64 MiB VMEM) halve `ts`, on v5e keep tm<=128.
    tm = min(tm, n_dst)
    ts = min(ts, n_src)
    assert n_dst % tm == 0 and n_src % ts == 0, "N must divide the tile sizes"

    kernel = functools.partial(_gat_layer_kernel, num_heads=num_heads,
                               d_out=d_out, apply_elu=apply_elu)
    grid_spec = pltpu.PrefetchScalarGridSpec(
        num_scalar_prefetch=0,
        grid=(n_dst // tm, n_src // ts),          # src (reduction) axis last
        in_specs=[
            pl.BlockSpec((tm, d_in), lambda i, j: (i, 0)),              # h dst
            pl.BlockSpec((ts, d_in), lambda i, j: (j, 0)),              # h src
            pl.BlockSpec((d_in, num_heads * d_out), lambda i, j: (0, 0)),  # W
            pl.BlockSpec((num_heads, d_out), lambda i, j: (0, 0)),      # a_src
            pl.BlockSpec((num_heads, d_out), lambda i, j: (0, 0)),      # a_dst
            pl.BlockSpec((tm, ts), lambda i, j: (i, j)),                # adj i8
        ],
        out_specs=pl.BlockSpec((tm, num_heads * d_out), lambda i, j: (i, 0)),
        scratch_shapes=[
            pltpu.VMEM((tm, num_heads), jnp.float32),            # e_dst
            pltpu.VMEM((tm, num_heads), jnp.float32),            # running max
            pltpu.VMEM((tm, num_heads), jnp.float32),            # running denom
            pltpu.VMEM((tm, num_heads * d_out), jnp.float32),    # running acc
        ],
    )
    return pl.pallas_call(
        kernel,
        out_shape=jax.ShapeDtypeStruct((n_dst, num_heads * d_out), out_dtype),
        grid_spec=grid_spec,
        compiler_params=pltpu.CompilerParams(
            dimension_semantics=("parallel", "arbitrary"),
            vmem_limit_bytes=32 * 1024 * 1024),
    )(h, h, w_all.astype(jnp.bfloat16), a_src, a_dst, adj_i8)


# ----------------------------------------------------------------------------
# GAT module glue: layer1 (multi-head, concat) -> ELU -> layer2 (single head)
# ----------------------------------------------------------------------------
def gat_forward(h, params, adj_i8, *, tm=128, ts=512):
    heads = params["num_heads"]
    hid = params["hidden_dim"]
    out_dim = params["out_dim"]
    w1, as1, ad1 = params["layer1"]
    # all layer-1 heads fused into one kernel; output stored as bf16 to halve
    # the inter-layer HBM traffic.
    h1 = gat_layer(h, w1, as1, ad1, adj_i8, num_heads=heads, d_out=hid,
                   apply_elu=False, out_dtype=jnp.bfloat16, tm=tm, ts=ts)
    # F.elu(h) between layers is fused into the layer-2 kernel.
    w2, as2, ad2 = params["layer2"]
    # TODO(synk): layer-2 output is only out_dim=8 lanes wide (masked stores);
    #             pad/fuse downstream if N grows large.
    return gat_layer(h1, w2, as2, ad2, adj_i8, num_heads=1, d_out=out_dim,
                     apply_elu=True, out_dtype=jnp.float32, tm=tm, ts=ts)


# ----------------------------------------------------------------------------
# Deterministic parameter init (xavier_normal_, gain = calculate_gain('relu'))
# ----------------------------------------------------------------------------
def _xavier_normal(key, out_dim, in_dim, gain):
    std = gain * np.sqrt(2.0 / (in_dim + out_dim))
    return std * jax.random.normal(key, (out_dim, in_dim), jnp.float32)


def init_gat_params(key, in_dim, hidden_dim, out_dim, num_heads):
    gain = float(np.sqrt(2.0))  # nn.init.calculate_gain('relu')
    w1, as1, ad1 = [], [], []
    for _ in range(num_heads):
        key, k1, k2 = jax.random.split(key, 3)
        w = _xavier_normal(k1, hidden_dim, in_dim, gain)        # (out, in)
        a = _xavier_normal(k2, 1, 2 * hidden_dim, gain)         # (1, 2*out)
        w1.append(w.T)                                          # (in, out)
        as1.append(a[:, :hidden_dim])
        ad1.append(a[:, hidden_dim:])
    key, k1, k2 = jax.random.split(key, 3)
    w2 = _xavier_normal(k1, out_dim, hidden_dim * num_heads, gain)
    a2 = _xavier_normal(k2, 1, 2 * out_dim, gain)
    return {
        "num_heads": num_heads, "hidden_dim": hidden_dim, "out_dim": out_dim,
        # layer 1 fused across heads: W (D_in, H*hid), attn halves (H, hid)
        "layer1": (jnp.concatenate(w1, axis=1),
                   jnp.concatenate(as1, axis=0),
                   jnp.concatenate(ad1, axis=0)),
        "layer2": (w2.T, a2[:, :out_dim], a2[:, out_dim:]),
    }


# ----------------------------------------------------------------------------
# Pure-JAX reference (same math, mirrors the kernel's bf16 matmul casts).
# ----------------------------------------------------------------------------
def _ref_head(h, w_t, a_src, a_dst, adj, apply_elu):
    if apply_elu:
        h = jnp.where(h > 0, h, jnp.exp(h) - 1.0)
    z = jnp.dot(h.astype(jnp.bfloat16), w_t.astype(jnp.bfloat16),
                preferred_element_type=jnp.float32)
    n_dst = adj.shape[0]
    scores = (z[:n_dst] @ a_dst.T) + (a_src @ z.T)          # (Nd, Ns)
    scores = jnp.where(scores > 0, scores, 0.01 * scores)
    mask = adj > 0
    scores = jnp.where(mask, scores, -1e30)
    p = jnp.exp(scores - jnp.max(scores, axis=1, keepdims=True))
    p = jnp.where(mask, p, 0.0)
    num = jnp.dot(p.astype(jnp.bfloat16), z.astype(jnp.bfloat16),
                  preferred_element_type=jnp.float32)
    denom = jnp.maximum(jnp.sum(p, axis=1, keepdims=True), 1e-30)
    return num / denom


def _ref_gat(h, params, adj):
    heads, hid = params["num_heads"], params["hidden_dim"]
    w1, as1, ad1 = params["layer1"]
    outs = [_ref_head(h, w1[:, k * hid:(k + 1) * hid], as1[k:k + 1],
                      ad1[k:k + 1], adj, False) for k in range(heads)]
    h1 = jnp.concatenate(outs, axis=1)
    h1 = h1.astype(jnp.bfloat16).astype(jnp.float32)  # mirror bf16 storage
    w2, as2, ad2 = params["layer2"]
    return _ref_head(h1, w2, as2, ad2, adj, True)


if __name__ == "__main__":
    N = 256           # nodes (src == dst for both blocks, simplified)
    IN_DIM = 32
    HIDDEN_DIM = 16
    OUT_DIM = 8
    NUM_HEADS = 2

    root = jax.random.PRNGKey(0)
    k_feat, k_adj, k_par = jax.random.split(root, 3)

    # node features (blocks[0].srcdata['h'])
    h = jax.random.normal(k_feat, (N, IN_DIM), jnp.float32)

    # dense int8 adjacency mask adj[dst, src]; self-loops keep mailboxes
    # non-empty (zero in-degree rows are additionally guarded in-kernel).
    rand_edges = jax.random.bernoulli(k_adj, 0.05, (N, N)).astype(jnp.int8)
    adj = jnp.maximum(rand_edges, jnp.eye(N, dtype=jnp.int8))

    params = init_gat_params(k_par, IN_DIM, HIDDEN_DIM, OUT_DIM, NUM_HEADS)

    # ts=128 so both grid axes (dst parallel, src arbitrary) are exercised.
    out = gat_forward(h, params, adj, tm=128, ts=128)
    out = jax.block_until_ready(out)

    ref = _ref_gat(h, params, adj)
    assert out.shape == (N, OUT_DIM)
    out_np, ref_np = np.asarray(out), np.asarray(ref)
    # bf16 matmuls + EUP approx reciprocal => looser elementwise tolerance,
    # plus a tight mean-abs-error check to catch structural errors.
    np.testing.assert_allclose(out_np, ref_np, rtol=5e-2, atol=5e-2)
    assert float(np.mean(np.abs(out_np - ref_np))) < 1e-2

    print("KERNEL_OK")
</pallas_src>

<mosaic_0001>
module attributes {stable_mosaic.version = 11 : i64} {
  func.func @_gat_layer_kernel(%arg0: i32, %arg1: i32, %arg2: memref<128x32xf32, #tpu.memory_space<vmem>>, %arg3: memref<128x32xf32, #tpu.memory_space<vmem>>, %arg4: memref<32x32xbf16, #tpu.memory_space<vmem>>, %arg5: memref<2x16xf32, #tpu.memory_space<vmem>>, %arg6: memref<2x16xf32, #tpu.memory_space<vmem>>, %arg7: memref<128x128xi8, #tpu.memory_space<vmem>>, %arg8: memref<128x32xbf16, #tpu.memory_space<vmem>>, %arg9: memref<128x2xf32, #tpu.memory_space<vmem>>, %arg10: memref<128x2xf32, #tpu.memory_space<vmem>>, %arg11: memref<128x2xf32, #tpu.memory_space<vmem>>, %arg12: memref<128x32xf32, #tpu.memory_space<vmem>>) attributes {dimension_semantics = [#tpu.dimension_semantics<parallel>, #tpu.dimension_semantics<arbitrary>], iteration_bounds = array<i64: 2, 2>, scalar_prefetch = 0 : i64, scratch_operands = 4 : i64, tpu.core_type = #tpu.core_type<tc>, window_params = [{transform_indices = @transform_0, window_bounds = array<i64: 128, 32>}, {transform_indices = @transform_1, window_bounds = array<i64: 128, 32>}, {pipeline_mode = #tpu.pipeline_mode<synchronous>, transform_indices = @transform_2, window_bounds = array<i64: 32, 32>}, {pipeline_mode = #tpu.pipeline_mode<synchronous>, transform_indices = @transform_3, window_bounds = array<i64: 2, 16>}, {pipeline_mode = #tpu.pipeline_mode<synchronous>, transform_indices = @transform_4, window_bounds = array<i64: 2, 16>}, {transform_indices = @transform_5, window_bounds = array<i64: 128, 128>}, {transform_indices = @transform_6, window_bounds = array<i64: 128, 32>}]} {
    %c0 = arith.constant 0 : index
    %c0_0 = arith.constant 0 : index
    %0 = vector.load %arg4[%c0, %c0_0] : memref<32x32xbf16, #tpu.memory_space<vmem>>, vector<32x32xbf16>
    %c0_i32 = arith.constant 0 : i32
    %1 = arith.cmpi eq, %arg1, %c0_i32 : i32
    %2 = arith.extui %1 : i1 to i32
    %c0_i32_1 = arith.constant 0 : i32
    %3 = arith.cmpi ne, %2, %c0_i32_1 : i32
    scf.if %3 {
      %c0_54 = arith.constant 0 : index
      %c0_55 = arith.constant 0 : index
      %94 = vector.load %arg2[%c0_54, %c0_55] : memref<128x32xf32, #tpu.memory_space<vmem>>, vector<128x32xf32>
      %95 = arith.truncf %94 : vector<128x32xf32> to vector<128x32xbf16>
      %cst_56 = arith.constant dense<0.000000e+00> : vector<128x32xf32>
      %96 = tpu.matmul %95, %0, %cst_56 {dimension_numbers = #tpu.dot_dimension_numbers<[1], [0], [0], [1], [0, 0, 1, 1], [], []>} : vector<128x32xbf16>, vector<32x32xbf16>, vector<128x32xf32> -> vector<128x32xf32>
      %97 = vector.extract_strided_slice %96 {offsets = [0, 0], sizes = [128, 16], strides = [1, 1]} : vector<128x32xf32> to vector<128x16xf32>
      %c0_57 = arith.constant 0 : index
      %c0_58 = arith.constant 0 : index
      %98 = vector.load %arg6[%c0_57, %c0_58] : memref<2x16xf32, #tpu.memory_space<vmem>>, vector<1x16xf32>
      %cst_59 = arith.constant dense<0.000000e+00> : vector<128x1xf32>
      %99 = tpu.matmul %97, %98, %cst_59 {dimension_numbers = #tpu.dot_dimension_numbers<[1], [1], [0], [0], [0, 0, 1, 0], [], []>} : vector<128x16xf32>, vector<1x16xf32>, vector<128x1xf32> -> vector<128x1xf32>
      %c0_60 = arith.constant 0 : index
      %c0_61 = arith.constant 0 : index
      %100 = vector.load %arg9[%c0_60, %c0_61] : memref<128x2xf32, #tpu.memory_space<vmem>>, vector<128x1xf32>
      tpu.vector_store %arg9[%c0_60, %c0_61], %99 {strides = array<i32>} : memref<128x2xf32, #tpu.memory_space<vmem>>, vector<128x1xf32>,
      %101 = vector.extract_strided_slice %96 {offsets = [0, 16], sizes = [128, 16], strides = [1, 1]} : vector<128x32xf32> to vector<128x16xf32>
      %c1_62 = arith.constant 1 : index
      %c0_63 = arith.constant 0 : index
      %102 = vector.load %arg6[%c1_62, %c0_63] : memref<2x16xf32, #tpu.memory_space<vmem>>, vector<1x16xf32>
      %cst_64 = arith.constant dense<0.000000e+00> : vector<128x1xf32>
      %103 = tpu.matmul %101, %102, %cst_64 {dimension_numbers = #tpu.dot_dimension_numbers<[1], [1], [0], [0], [0, 0, 1, 0], [], []>} : vector<128x16xf32>, vector<1x16xf32>, vector<128x1xf32> -> vector<128x1xf32>
      %c0_65 = arith.constant 0 : index
      %c1_66 = arith.constant 1 : index
      %104 = vector.load %arg9[%c0_65, %c1_66] : memref<128x2xf32, #tpu.memory_space<vmem>>, vector<128x1xf32>
      tpu.vector_store %arg9[%c0_65, %c1_66], %103 {strides = array<i32>} : memref<128x2xf32, #tpu.memory_space<vmem>>, vector<128x1xf32>,
      %cst_67 = arith.constant 0xFF800000 : f32
      %105 = vector.broadcast %cst_67 : f32 to vector<128x2xf32>
      %c0_68 = arith.constant 0 : index
      %c0_69 = arith.constant 0 : index
      %106 = vector.load %arg10[%c0_68, %c0_69] : memref<128x2xf32, #tpu.memory_space<vmem>>, vector<128x2xf32>
      tpu.vector_store %arg10[%c0_68, %c0_69], %105 {strides = array<i32>} : memref<128x2xf32, #tpu.memory_space<vmem>>, vector<128x2xf32>,
      %cst_70 = arith.constant 0.000000e+00 : f32
      %107 = vector.broadcast %cst_70 : f32 to vector<128x2xf32>
      %c0_71 = arith.constant 0 : index
      %c0_72 = arith.constant 0 : index
      %108 = vector.load %arg11[%c0_71, %c0_72] : memref<128x2xf32, #tpu.memory_space<vmem>>, vector<128x2xf32>
      tpu.vector_store %arg11[%c0_71, %c0_72], %107 {strides = array<i32>} : memref<128x2xf32, #tpu.memory_space<vmem>>, vector<128x2xf32>,
      %cst_73 = arith.constant 0.000000e+00 : f32
      %109 = vector.broadcast %cst_73 : f32 to vector<128x32xf32>
      %c0_74 = arith.constant 0 : index
      %c0_75 = arith.constant 0 : index
      %110 = vector.load %arg12[%c0_74, %c0_75] : memref<128x32xf32, #tpu.memory_space<vmem>>, vector<128x32xf32>
      tpu.vector_store %arg12[%c0_74, %c0_75], %109 {strides = array<i32>} : memref<128x32xf32, #tpu.memory_space<vmem>>, vector<128x32xf32>,
    } else {
    }
    %c0_2 = arith.constant 0 : index
    %c0_3 = arith.constant 0 : index
    %4 = vector.load %arg3[%c0_2, %c0_3] : memref<128x32xf32, #tpu.memory_space<vmem>>, vector<128x32xf32>
    %5 = arith.truncf %4 : vector<128x32xf32> to vector<128x32xbf16>
    %cst = arith.constant dense<0.000000e+00> : vector<128x32xf32>
    %6 = tpu.matmul %5, %0, %cst {dimension_numbers = #tpu.dot_dimension_numbers<[1], [0], [0], [1], [0, 0, 1, 1], [], []>} : vector<128x32xbf16>, vector<32x32xbf16>, vector<128x32xf32> -> vector<128x32xf32>
    %c0_4 = arith.constant 0 : index
    %c0_5 = arith.constant 0 : index
    %7 = vector.load %arg7[%c0_4, %c0_5] : memref<128x128xi8, #tpu.memory_space<vmem>>, vector<128x128xi8>
    %8 = arith.sitofp %7 : vector<128x128xi8> to vector<128x128xf32>
    %cst_6 = arith.constant 0.000000e+00 : f32
    %9 = vector.broadcast %cst_6 : f32 to vector<128x128xf32>
    %10 = arith.cmpf ogt, %8, %9 : vector<128x128xf32>
    %11 = vector.extract_strided_slice %6 {offsets = [0, 0], sizes = [128, 16], strides = [1, 1]} : vector<128x32xf32> to vector<128x16xf32>
    %c0_7 = arith.constant 0 : index
    %c0_8 = arith.constant 0 : index
    %12 = vector.load %arg5[%c0_7, %c0_8] : memref<2x16xf32, #tpu.memory_space<vmem>>, vector<1x16xf32>
    %cst_9 = arith.constant dense<0.000000e+00> : vector<1x128xf32>
    %13 = tpu.matmul %12, %11, %cst_9 {dimension_numbers = #tpu.dot_dimension_numbers<[1], [1], [0], [0], [0, 0, 1, 0], [], []>} : vector<1x16xf32>, vector<128x16xf32>, vector<1x128xf32> -> vector<1x128xf32>
    %c0_10 = arith.constant 0 : index
    %c0_11 = arith.constant 0 : index
    %14 = vector.load %arg9[%c0_10, %c0_11] : memref<128x2xf32, #tpu.memory_space<vmem>>, vector<128x1xf32>
    %15 = vector.broadcast %14 : vector<128x1xf32> to vector<128x128xf32>
    %16 = vector.broadcast %13 : vector<1x128xf32> to vector<128x128xf32>
    %17 = arith.addf %15, %16 : vector<128x128xf32>
    %cst_12 = arith.constant 0.000000e+00 : f32
    %18 = vector.broadcast %cst_12 : f32 to vector<128x128xf32>
    %19 = arith.cmpf ogt, %17, %18 : vector<128x128xf32>
    %cst_13 = arith.constant 0.00999999977 : f32
    %20 = vector.broadcast %cst_13 : f32 to vector<128x128xf32>
    %21 = arith.mulf %20, %17 : vector<128x128xf32>
    %22 = arith.select %19, %17, %21 : vector<128x128xi1>, vector<128x128xf32>
    %cst_14 = arith.constant -1.000000e+30 : f32
    %23 = vector.broadcast %cst_14 : f32 to vector<128x128xf32>
    %24 = arith.select %10, %22, %23 : vector<128x128xi1>, vector<128x128xf32>
    %c0_15 = arith.constant 0 : index
    %c0_16 = arith.constant 0 : index
    %25 = vector.load %arg10[%c0_15, %c0_16] : memref<128x2xf32, #tpu.memory_space<vmem>>, vector<128x1xf32>
    %cst_17 = arith.constant dense<0xFF800000> : vector<128xf32>
    %26 = vector.multi_reduction <maximumf>, %24, %cst_17 [1] : vector<128x128xf32> to vector<128xf32>
    %27 = vector.shape_cast %26 : vector<128xf32> to vector<128x1xf32>
    %28 = arith.maximumf %25, %27 : vector<128x1xf32>
    %29 = arith.subf %25, %28 : vector<128x1xf32>
    %30 = math.exp %29 : vector<128x1xf32>
    %31 = vector.broadcast %28 : vector<128x1xf32> to vector<128x128xf32>
    %32 = arith.subf %24, %31 : vector<128x128xf32>
    %33 = math.exp %32 : vector<128x128xf32>
    %cst_18 = arith.constant 0.000000e+00 : f32
    %34 = vector.broadcast %cst_18 : f32 to vector<128x128xf32>
    %35 = arith.select %10, %33, %34 : vector<128x128xi1>, vector<128x128xf32>
    %c0_19 = arith.constant 0 : index
    %c0_20 = arith.constant 0 : index
    %36 = vector.load %arg11[%c0_19, %c0_20] : memref<128x2xf32, #tpu.memory_space<vmem>>, vector<128x1xf32>
    %37 = arith.mulf %30, %36 : vector<128x1xf32>
    %cst_21 = arith.constant dense<0.000000e+00> : vector<128xf32>
    %38 = vector.multi_reduction <add>, %35, %cst_21 [1] : vector<128x128xf32> to vector<128xf32>
    %39 = vector.shape_cast %38 : vector<128xf32> to vector<128x1xf32>
    %40 = arith.addf %37, %39 : vector<128x1xf32>
    %c0_22 = arith.constant 0 : index
    %c0_23 = arith.constant 0 : index
    %41 = vector.load %arg11[%c0_22, %c0_23] : memref<128x2xf32, #tpu.memory_space<vmem>>, vector<128x1xf32>
    tpu.vector_store %arg11[%c0_22, %c0_23], %40 {strides = array<i32>} : memref<128x2xf32, #tpu.memory_space<vmem>>, vector<128x1xf32>,
    %c0_24 = arith.constant 0 : index
    %c0_25 = arith.constant 0 : index
    %42 = vector.load %arg12[%c0_24, %c0_25] : memref<128x32xf32, #tpu.memory_space<vmem>>, vector<128x16xf32>
    %43 = vector.broadcast %30 : vector<128x1xf32> to vector<128x16xf32>
    %44 = arith.mulf %43, %42 : vector<128x16xf32>
    %45 = arith.truncf %35 : vector<128x128xf32> to vector<128x128xbf16>
    %46 = arith.truncf %11 : vector<128x16xf32> to vector<128x16xbf16>
    %cst_26 = arith.constant dense<0.000000e+00> : vector<128x16xf32>
    %47 = tpu.matmul %45, %46, %cst_26 {dimension_numbers = #tpu.dot_dimension_numbers<[1], [0], [0], [1], [0, 0, 1, 1], [], []>} : vector<128x128xbf16>, vector<128x16xbf16>, vector<128x16xf32> -> vector<128x16xf32>
    %48 = arith.addf %44, %47 : vector<128x16xf32>
    %c0_27 = arith.constant 0 : index
    %c0_28 = arith.constant 0 : index
    %49 = vector.load %arg12[%c0_27, %c0_28] : memref<128x32xf32, #tpu.memory_space<vmem>>, vector<128x16xf32>
    tpu.vector_store %arg12[%c0_27, %c0_28], %48 {strides = array<i32>} : memref<128x32xf32, #tpu.memory_space<vmem>>, vector<128x16xf32>,
    %c0_29 = arith.constant 0 : index
    %c0_30 = arith.constant 0 : index
    %50 = vector.load %arg10[%c0_29, %c0_30] : memref<128x2xf32, #tpu.memory_space<vmem>>, vector<128x1xf32>
    tpu.vector_store %arg10[%c0_29, %c0_30], %28 {strides = array<i32>} : memref<128x2xf32, #tpu.memory_space<vmem>>, vector<128x1xf32>,
    %51 = vector.extract_strided_slice %6 {offsets = [0, 16], sizes = [128, 16], strides = [1, 1]} : vector<128x32xf32> to vector<128x16xf32>
    %c1 = arith.constant 1 : index
    %c0_31 = arith.constant 0 : index
    %52 = vector.load %arg5[%c1, %c0_31] : memref<2x16xf32, #tpu.memory_space<vmem>>, vector<1x16xf32>
    %cst_32 = arith.constant dense<0.000000e+00> : vector<1x128xf32>
    %53 = tpu.matmul %52, %51, %cst_32 {dimension_numbers = #tpu.dot_dimension_numbers<[1], [1], [0], [0], [0, 0, 1, 0], [], []>} : vector<1x16xf32>, vector<128x16xf32>, vector<1x128xf32> -> vector<1x128xf32>
    %c0_33 = arith.constant 0 : index
    %c1_34 = arith.constant 1 : index
    %54 = vector.load %arg9[%c0_33, %c1_34] : memref<128x2xf32, #tpu.memory_space<vmem>>, vector<128x1xf32>
    %55 = vector.broadcast %54 : vector<128x1xf32> to vector<128x128xf32>
    %56 = vector.broadcast %53 : vector<1x128xf32> to vector<128x128xf32>
    %57 = arith.addf %55, %56 : vector<128x128xf32>
    %cst_35 = arith.constant 0.000000e+00 : f32
    %58 = vector.broadcast %cst_35 : f32 to vector<128x128xf32>
    %59 = arith.cmpf ogt, %57, %58 : vector<128x128xf32>
    %cst_36 = arith.constant 0.00999999977 : f32
    %60 = vector.broadcast %cst_36 : f32 to vector<128x128xf32>
    %61 = arith.mulf %60, %57 : vector<128x128xf32>
    %62 = arith.select %59, %57, %61 : vector<128x128xi1>, vector<128x128xf32>
    %cst_37 = arith.constant -1.000000e+30 : f32
    %63 = vector.broadcast %cst_37 : f32 to vector<128x128xf32>
    %64 = arith.select %10, %62, %63 : vector<128x128xi1>, vector<128x128xf32>
    %c0_38 = arith.constant 0 : index
    %c1_39 = arith.constant 1 : index
    %65 = vector.load %arg10[%c0_38, %c1_39] : memref<128x2xf32, #tpu.memory_space<vmem>>, vector<128x1xf32>
    %cst_40 = arith.constant dense<0xFF800000> : vector<128xf32>
    %66 = vector.multi_reduction <maximumf>, %64, %cst_40 [1] : vector<128x128xf32> to vector<128xf32>
    %67 = vector.shape_cast %66 : vector<128xf32> to vector<128x1xf32>
    %68 = arith.maximumf %65, %67 : vector<128x1xf32>
    %69 = arith.subf %65, %68 : vector<128x1xf32>
    %70 = math.exp %69 : vector<128x1xf32>
    %71 = vector.broadcast %68 : vector<128x1xf32> to vector<128x128xf32>
    %72 = arith.subf %64, %71 : vector<128x128xf32>
    %73 = math.exp %72 : vector<128x128xf32>
    %cst_41 = arith.constant 0.000000e+00 : f32
    %74 = vector.broadcast %cst_41 : f32 to vector<128x128xf32>
    %75 = arith.select %10, %73, %74 : vector<128x128xi1>, vector<128x128xf32>
    %c0_42 = arith.constant 0 : index
    %c1_43 = arith.constant 1 : index
    %76 = vector.load %arg11[%c0_42, %c1_43] : memref<128x2xf32, #tpu.memory_space<vmem>>, vector<128x1xf32>
    %77 = arith.mulf %70, %76 : vector<128x1xf32>
    %cst_44 = arith.constant dense<0.000000e+00> : vector<128xf32>
    %78 = vector.multi_reduction <add>, %75, %cst_44 [1] : vector<128x128xf32> to vector<128xf32>
    %79 = vector.shape_cast %78 : vector<128xf32> to vector<128x1xf32>
    %80 = arith.addf %77, %79 : vector<128x1xf32>
    %c0_45 = arith.constant 0 : index
    %c1_46 = arith.constant 1 : index
    %81 = vector.load %arg11[%c0_45, %c1_46] : memref<128x2xf32, #tpu.memory_space<vmem>>, vector<128x1xf32>
    tpu.vector_store %arg11[%c0_45, %c1_46], %80 {strides = array<i32>} : memref<128x2xf32, #tpu.memory_space<vmem>>, vector<128x1xf32>,
    %c0_47 = arith.constant 0 : index
    %c16 = arith.constant 16 : index
    %82 = vector.load %arg12[%c0_47, %c16] : memref<128x32xf32, #tpu.memory_space<vmem>>, vector<128x16xf32>
    %83 = vector.broadcast %70 : vector<128x1xf32> to vector<128x16xf32>
    %84 = arith.mulf %83, %82 : vector<128x16xf32>
    %85 = arith.truncf %75 : vector<128x128xf32> to vector<128x128xbf16>
    %86 = arith.truncf %51 : vector<128x16xf32> to vector<128x16xbf16>
    %cst_48 = arith.constant dense<0.000000e+00> : vector<128x16xf32>
    %87 = tpu.matmul %85, %86, %cst_48 {dimension_numbers = #tpu.dot_dimension_numbers<[1], [0], [0], [1], [0, 0, 1, 1], [], []>} : vector<128x128xbf16>, vector<128x16xbf16>, vector<128x16xf32> -> vector<128x16xf32>
    %88 = arith.addf %84, %87 : vector<128x16xf32>
    %c0_49 = arith.constant 0 : index
    %c16_50 = arith.constant 16 : index
    %89 = vector.load %arg12[%c0_49, %c16_50] : memref<128x32xf32, #tpu.memory_space<vmem>>, vector<128x16xf32>
    tpu.vector_store %arg12[%c0_49, %c16_50], %88 {strides = array<i32>} : memref<128x32xf32, #tpu.memory_space<vmem>>, vector<128x16xf32>,
    %c0_51 = arith.constant 0 : index
    %c1_52 = arith.constant 1 : index
    %90 = vector.load %arg10[%c0_51, %c1_52] : memref<128x2xf32, #tpu.memory_space<vmem>>, vector<128x1xf32>
    tpu.vector_store %arg10[%c0_51, %c1_52], %68 {strides = array<i32>} : memref<128x2xf32, #tpu.memory_space<vmem>>, vector<128x1xf32>,
    %c1_i32 = arith.constant 1 : i32
    %91 = arith.cmpi eq, %arg1, %c1_i32 : i32
    %92 = arith.extui %91 : i1 to i32
    %c0_i32_53 = arith.constant 0 : i32
    %93 = arith.cmpi ne, %92, %c0_i32_53 : i32
    scf.if %93 {
      %c0_54 = arith.constant 0 : index
      %c0_55 = arith.constant 0 : index
      %94 = vector.load %arg11[%c0_54, %c0_55] : memref<128x2xf32, #tpu.memory_space<vmem>>, vector<128x2xf32>
      %cst_56 = arith.constant 1.000000e-30 : f32
      %95 = vector.broadcast %cst_56 : f32 to vector<128x2xf32>
      %96 = arith.maximumf %94, %95 : vector<128x2xf32>
      %97 = tpu.reciprocal %96 {approx = true} : vector<128x2xf32> -> vector<128x2xf32>
      %c0_57 = arith.constant 0 : index
      %c0_58 = arith.constant 0 : index
      %98 = vector.load %arg12[%c0_57, %c0_58] : memref<128x32xf32, #tpu.memory_space<vmem>>, vector<128x16xf32>
      %99 = vector.extract_strided_slice %97 {offsets = [0, 0], sizes = [128, 1], strides = [1, 1]} : vector<128x2xf32> to vector<128x1xf32>
      %100 = vector.broadcast %99 : vector<128x1xf32> to vector<128x16xf32>
      %101 = arith.mulf %98, %100 : vector<128x16xf32>
      %102 = arith.truncf %101 : vector<128x16xf32> to vector<128x16xbf16>
      %c0_59 = arith.constant 0 : index
      %c0_60 = arith.constant 0 : index
      %103 = vector.load %arg8[%c0_59, %c0_60] : memref<128x32xbf16, #tpu.memory_space<vmem>>, vector<128x16xbf16>
      tpu.vector_store %arg8[%c0_59, %c0_60], %102 {strides = array<i32>} : memref<128x32xbf16, #tpu.memory_space<vmem>>, vector<128x16xbf16>,
      %c0_61 = arith.constant 0 : index
      %c16_62 = arith.constant 16 : index
      %104 = vector.load %arg12[%c0_61, %c16_62] : memref<128x32xf32, #tpu.memory_space<vmem>>, vector<128x16xf32>
      %105 = vector.extract_strided_slice %97 {offsets = [0, 1], sizes = [128, 1], strides = [1, 1]} : vector<128x2xf32> to vector<128x1xf32>
      %106 = vector.broadcast %105 : vector<128x1xf32> to vector<128x16xf32>
      %107 = arith.mulf %104, %106 : vector<128x16xf32>
      %108 = arith.truncf %107 : vector<128x16xf32> to vector<128x16xbf16>
      %c0_63 = arith.constant 0 : index
      %c16_64 = arith.constant 16 : index
      %109 = vector.load %arg8[%c0_63, %c16_64] : memref<128x32xbf16, #tpu.memory_space<vmem>>, vector<128x16xbf16>
      tpu.vector_store %arg8[%c0_63, %c16_64], %108 {strides = array<i32>} : memref<128x32xbf16, #tpu.memory_space<vmem>>, vector<128x16xbf16>,
    } else {
    }
    return
  }
  func.func @transform_0(%arg0: i32, %arg1: i32) -> (i32, i32) {
    %c0_i32 = arith.constant 0 : i32
    %c0_i32_0 = arith.constant 0 : i32
    return %arg0, %c0_i32 : i32, i32
  }
  func.func @transform_1(%arg0: i32, %arg1: i32) -> (i32, i32) {
    %c0_i32 = arith.constant 0 : i32
    %c0_i32_0 = arith.constant 0 : i32
    return %arg1, %c0_i32 : i32, i32
  }
  func.func @transform_2(%arg0: i32, %arg1: i32) -> (i32, i32) {
    %c0_i32 = arith.constant 0 : i32
    %c0_i32_0 = arith.constant 0 : i32
    %c0_i32_1 = arith.constant 0 : i32
    return %c0_i32, %c0_i32_0 : i32, i32
  }
  func.func @transform_3(%arg0: i32, %arg1: i32) -> (i32, i32) {
    %c0_i32 = arith.constant 0 : i32
    %c0_i32_0 = arith.constant 0 : i32
    %c0_i32_1 = arith.constant 0 : i32
    return %c0_i32, %c0_i32_0 : i32, i32
  }
  func.func @transform_4(%arg0: i32, %arg1: i32) -> (i32, i32) {
    %c0_i32 = arith.constant 0 : i32
    %c0_i32_0 = arith.constant 0 : i32
    %c0_i32_1 = arith.constant 0 : i32
    return %c0_i32, %c0_i32_0 : i32, i32
  }
  func.func @transform_5(%arg0: i32, %arg1: i32) -> (i32, i32) {
    %c0_i32 = arith.constant 0 : i32
    return %arg0, %arg1 : i32, i32
  }
  func.func @transform_6(%arg0: i32, %arg1: i32) -> (i32, i32) {
    %c0_i32 = arith.constant 0 : i32
    %c0_i32_0 = arith.constant 0 : i32
    return %arg0, %c0_i32 : i32, i32
  }
}

</mosaic_0001>

<llo_original>
// kernel: tpu_custom_call.1
$region0: #{tpu_custom_call.1}
  #allocation0 [shape = 'u32[]', space=smem, size = 0x4, offset = 0x4, fixed_abs, tag = 'smem constant byte address 0x4 - core index']
  #allocation1 [shape = 'u32[144,128]{1,0:T(1,128)}', space=vmem, size = 0x12000, scoped, tag = 'internal scratch']
  #allocation2 [shape = 'f32[128,2]{1,0:T(8,128)}', space=vmem, size = 0x10000, scoped, tag = 'scratch operand']
  #allocation3 [shape = 'f32[128,2]{1,0:T(8,128)}', space=vmem, size = 0x10000, scoped, tag = 'scratch operand']
  #allocation4 [shape = 'f32[128,2]{1,0:T(8,128)}', space=vmem, size = 0x10000, scoped, tag = 'scratch operand']
  #allocation5 [shape = 'f32[128,32]{1,0:T(8,128)}', space=vmem, size = 0x10000, scoped, tag = 'scratch operand']
  %s0 = inlined_call_operand.vmem [shape: f32[256,32], index: 0, kind: input, shape index: {}]
  %s1 = inlined_call_operand.vmem [shape: f32[256,32], index: 1, kind: input, shape index: {}]
  %s2 = inlined_call_operand.vmem [shape: bf16[32,32], index: 2, kind: input, shape index: {}]
  %s3 = inlined_call_operand.vmem [shape: f32[2,16], index: 3, kind: input, shape index: {}]
  %s4 = inlined_call_operand.vmem [shape: f32[2,16], index: 4, kind: input, shape index: {}]
  %s5 = inlined_call_operand.vmem [shape: s8[256,256], index: 5, kind: input, shape index: {}]
  %s6 = inlined_call_operand.vmem [shape: bf16[256,32], index: 6, kind: output, shape index: {}]
  %s7 = sld [smem:[#allocation0]]
  $region103: #{tpu_custom_call.1} parent=0
    _
  %s9 = ssub.s32 1, %s7
  %s10 = scalar_select 0, %s9, %s7
  $region1: #{tpu_custom_call.1} parent=0
    #allocation6 [shape = 'u8[32768]{0}', space=vmem, size = 0x8000, scoped, tag = 'input window, operand 5']
    loop: start=0, step=1, limit=6
    $region2: #{tpu_custom_call.1} parent=1 // loop_pre_header
      _
    $region3: #{tpu_custom_call.1} parent=1 // loop_header
      %s12 = sphi 0, %s16
      %p13 = scmp.ge.s32.totalorder %s12, 6
      %s19 = sphi 0, %s31
      %s20 = sphi 0, %s27
      %s21 = sphi 0, %s19
      %s22 = sphi 0, %s20
      %s23 = sphi 0, %s21
      %s24 = sphi 0, %s22
      %s34 = sphi 0, %s36
      %s37 = sphi 0, %s34
      %s38 = sphi 0, %s37
      %s54 = sphi 0, %s38
      %s60 = sphi 0, %s62
      %s63 = sphi 0, %s60
      %s64 = sphi 0, %s63
      %s80 = sphi 0, %s64
      %s84 = sphi 0, %s84
      %s86 = sphi 0, %s84
      %s87 = sphi 0, %s86
      %s101 = sphi 0, %s87
      %s105 = sphi 0, %s105
      %s107 = sphi 0, %s105
      %s108 = sphi 0, %s107
      %s122 = sphi 0, %s108
      %s126 = sphi 0, %s126
      %s128 = sphi 0, %s126
      %s129 = sphi 0, %s128
      %s143 = sphi 0, %s129
      %s151 = sphi 0, %s153
      %s154 = sphi 0, %s151
      %s155 = sphi 0, %s154
      %s171 = sphi 0, %s155
      %s177 = sphi 0, %s179
      %s180 = sphi 0, %s177
      %s181 = sphi 0, %s180
      %s197 = sphi 0, %s181
    $region4: #{tpu_custom_call.1} parent=1 // loop_header_branch
      %15 = sbr.rel (%p13) target = $region8
    $region5: #{tpu_custom_call.1} parent=1 // loop_body
      %s17 = ssub.s32 %s12, 1
      %s18 = ssub.s32 %s12, 2
      %s25 = sadd.s32 1, %s20
      %p26 = scmp.ge.s32.totalorder %s25, 2
      %s27 = scalar_select %p26, 0, %s25
      %s28 = sadd.s32 1, %s19
      %s29 = scalar_select %p26, %s28, %s19
      %p30 = scmp.ge.s32.totalorder %s29, 2
      %s31 = scalar_select %p30, 0, %s29
      %s32 = ssub.s32 %s19, %s31
      %p33 = scmp.eq.s32.totalorder %s32, 0
      %s35 = sadd.s32 %s34, 1
      %s36 = scalar_select %p33, %s34, %s35
      %p39 = pneg %p33
      %p40 = scmp.eq.s32.totalorder %s12, 3
      %p41 = por %p39, %p40
      %p42 = scmp.ne.s32.totalorder %s34, %s37
      %p43 = scmp.eq.s32.totalorder %s12, 0
      %p44 = por %p42, %p43
      %p45 = scmp.ne.s32.totalorder %s34, %s37
      %p46 = scmp.eq.s32.totalorder %s17, 3
      %p47 = por %p45, %p46
      %p48 = scmp.ne.s32.totalorder %s37, %s38
      %p49 = scmp.eq.s32.totalorder %s17, 0
      %p50 = por %p48, %p49
      %p51 = scmp.ne.s32.totalorder %s37, %s38
      %p52 = scmp.eq.s32.totalorder %s18, 3
      %p53 = por %p51, %p52
      %p55 = scmp.ne.s32.totalorder %s38, %s54
      %p56 = scmp.eq.s32.totalorder %s18, 0
      %p57 = por %p55, %p56
      %s58 = ssub.s32 %s20, %s27
      %p59 = scmp.eq.s32.totalorder %s58, 0
      %s61 = sadd.s32 %s60, 1
      %s62 = scalar_select %p59, %s60, %s61
      %p65 = pneg %p59
      %p66 = scmp.eq.s32.totalorder %s12, 3
      %p67 = por %p65, %p66
      %p68 = scmp.ne.s32.totalorder %s60, %s63
      %p69 = scmp.eq.s32.totalorder %s12, 0
      %p70 = por %p68, %p69
      %p71 = scmp.ne.s32.totalorder %s60, %s63
      %p72 = scmp.eq.s32.totalorder %s17, 3
      %p73 = por %p71, %p72
      %p74 = scmp.ne.s32.totalorder %s63, %s64
      %p75 = scmp.eq.s32.totalorder %s17, 0
      %p76 = por %p74, %p75
      %p77 = scmp.ne.s32.totalorder %s63, %s64
      %p78 = scmp.eq.s32.totalorder %s18, 3
      %p79 = por %p77, %p78
      %p81 = scmp.ne.s32.totalorder %s64, %s80
      %p82 = scmp.eq.s32.totalorder %s18, 0
      %p83 = por %p81, %p82
      %s85 = sadd.s32 %s84, 1
      %p88 = scmp.eq.s32.totalorder %s12, 3
      %p89 = scmp.ne.s32.totalorder %s84, %s86
      %p90 = scmp.eq.s32.totalorder %s12, 0
      %p91 = por %p89, %p90
      %p92 = scmp.ne.s32.totalorder %s84, %s86
      %p93 = scmp.eq.s32.totalorder %s17, 3
      %p94 = por %p92, %p93
      %p95 = scmp.ne.s32.totalorder %s86, %s87
      %p96 = scmp.eq.s32.totalorder %s17, 0
      %p97 = por %p95, %p96
      %p98 = scmp.ne.s32.totalorder %s86, %s87
      %p99 = scmp.eq.s32.totalorder %s18, 3
      %p100 = por %p98, %p99
      %p102 = scmp.ne.s32.totalorder %s87, %s101
      %p103 = scmp.eq.s32.totalorder %s18, 0
      %p104 = por %p102, %p103
      %s106 = sadd.s32 %s105, 1
      %p109 = scmp.eq.s32.totalorder %s12, 3
      %p110 = scmp.ne.s32.totalorder %s105, %s107
      %p111 = scmp.eq.s32.totalorder %s12, 0
      %p112 = por %p110, %p111
      %p113 = scmp.ne.s32.totalorder %s105, %s107
      %p114 = scmp.eq.s32.totalorder %s17, 3
      %p115 = por %p113, %p114
      %p116 = scmp.ne.s32.totalorder %s107, %s108
      %p117 = scmp.eq.s32.totalorder %s17, 0
      %p118 = por %p116, %p117
      %p119 = scmp.ne.s32.totalorder %s107, %s108
      %p120 = scmp.eq.s32.totalorder %s18, 3
      %p121 = por %p119, %p120
      %p123 = scmp.ne.s32.totalorder %s108, %s122
      %p124 = scmp.eq.s32.totalorder %s18, 0
      %p125 = por %p123, %p124
      %s127 = sadd.s32 %s126, 1
      %p130 = scmp.eq.s32.totalorder %s12, 3
      %p131 = scmp.ne.s32.totalorder %s126, %s128
      %p132 = scmp.eq.s32.totalorder %s12, 0
      %p133 = por %p131, %p132
      %p134 = scmp.ne.s32.totalorder %s126, %s128
      %p135 = scmp.eq.s32.totalorder %s17, 3
      %p136 = por %p134, %p135
      %p137 = scmp.ne.s32.totalorder %s128, %s129
      %p138 = scmp.eq.s32.totalorder %s17, 0
      %p139 = por %p137, %p138
      %p140 = scmp.ne.s32.totalorder %s128, %s129
      %p141 = scmp.eq.s32.totalorder %s18, 3
      %p142 = por %p140, %p141
      %p144 = scmp.ne.s32.totalorder %s129, %s143
      %p145 = scmp.eq.s32.totalorder %s18, 0
      %p146 = por %p144, %p145
      %s147 = ssub.s32 %s19, %s31
      %s148 = ssub.s32 %s20, %s27
      %s149 = sor.u32 %s147, %s148
      %p150 = scmp.eq.s32.totalorder %s149, 0
      %s152 = sadd.s32 %s151, 1
      %s153 = scalar_select %p150, %s151, %s152
      %p156 = pneg %p150
      %p157 = scmp.eq.s32.totalorder %s12, 3
      %p158 = por %p156, %p157
      %p159 = scmp.ne.s32.totalorder %s151, %s154
      %p160 = scmp.eq.s32.totalorder %s12, 0
      %p161 = por %p159, %p160
      %p162 = scmp.ne.s32.totalorder %s151, %s154
      %p163 = scmp.eq.s32.totalorder %s17, 3
      %p164 = por %p162, %p163
      %p165 = scmp.ne.s32.totalorder %s154, %s155
      %p166 = scmp.eq.s32.totalorder %s17, 0
      %p167 = por %p165, %p166
      %p168 = scmp.ne.s32.totalorder %s154, %s155
      %p169 = scmp.eq.s32.totalorder %s18, 3
      %p170 = por %p168, %p169
      %p172 = scmp.ne.s32.totalorder %s155, %s171
      %p173 = scmp.eq.s32.totalorder %s18, 0
      %p174 = por %p172, %p173
      %s175 = ssub.s32 %s19, %s31
      %p176 = scmp.eq.s32.totalorder %s175, 0
      %s178 = sadd.s32 %s177, 1
      %s179 = scalar_select %p176, %s177, %s178
      %p182 = pneg %p176
      %p183 = scmp.eq.s32.totalorder %s12, 3
      %p184 = por %p182, %p183
      %p185 = scmp.ne.s32.totalorder %s177, %s180
      %p186 = scmp.eq.s32.totalorder %s12, 0
      %p187 = por %p185, %p186
      %p188 = scmp.ne.s32.totalorder %s177, %s180
      %p189 = scmp.eq.s32.totalorder %s17, 3
      %p190 = por %p188, %p189
      %p191 = scmp.ne.s32.totalorder %s180, %s181
      %p192 = scmp.eq.s32.totalorder %s17, 0
      %p193 = por %p191, %p192
      %p194 = scmp.ne.s32.totalorder %s180, %s181
      %p195 = scmp.eq.s32.totalorder %s18, 3
      %p196 = por %p194, %p195
      %p198 = scmp.ne.s32.totalorder %s181, %s197
      %p199 = scmp.eq.s32.totalorder %s18, 0
      %p200 = por %p198, %p199
      %p201 = scmp.le.s32.totalorder 1, %s12
      %p202 = scmp.lt.s32.totalorder %s12, 5
      %p203 = pnand %p201, %p202
      %p204 = pneg %p203
      // Predicated region
      $region9: #{tpu_custom_call.1} parent=5 // pred_check
        _
      $region10: #{tpu_custom_call.1} parent=5 // pred_check_branch
        %206 = sbr.rel (%p203) target = $region12
      $region11: #{tpu_custom_call.1} parent=5 // pred_region
        %s207 = ssub.s32 %s12, 1
        // Predicated region
        $region13: #{tpu_custom_call.1} parent=11 // pred_check
          %p208 = pneg %p97
        $region14: #{tpu_custom_call.1} parent=11 // pred_check_branch
          %210 = sbr.rel (%p208) target = $region16
        $region15: #{tpu_custom_call.1} parent=11 // pred_region
          _
        $region16: #{tpu_custom_call.1} parent=11 // pred_fallthru
          _
        // Predicated region
        $region17: #{tpu_custom_call.1} parent=11 // pred_check
          %p211 = pneg %p118
        $region18: #{tpu_custom_call.1} parent=11 // pred_check_branch
          %213 = sbr.rel (%p211) target = $region20
        $region19: #{tpu_custom_call.1} parent=11 // pred_region
          _
        $region20: #{tpu_custom_call.1} parent=11 // pred_fallthru
          _
        // Predicated region
        $region21: #{tpu_custom_call.1} parent=11 // pred_check
          %p214 = pneg %p139
        $region22: #{tpu_custom_call.1} parent=11 // pred_check_branch
          %216 = sbr.rel (%p214) target = $region24
        $region23: #{tpu_custom_call.1} parent=11 // pred_region
          _
        $region24: #{tpu_custom_call.1} parent=11 // pred_fallthru
          _
      $region12: #{tpu_custom_call.1} parent=5 // pred_fallthru
        _
      %p217 = scmp.lt.s32.totalorder %s12, 4
      // Predicated region
      $region25: #{tpu_custom_call.1} parent=5 // pred_check
        %p218 = pneg %p217
      $region26: #{tpu_custom_call.1} parent=5 // pred_check_branch
        %220 = sbr.rel (%p218) target = $region28
      $region27: #{tpu_custom_call.1} parent=5 // pred_region
        // Predicated region
        $region29: #{tpu_custom_call.1} parent=27 // pred_check
          %p221 = pneg %p44
        $region30: #{tpu_custom_call.1} parent=27 // pred_check_branch
          %223 = sbr.rel (%p221) target = $region32
        $region31: #{tpu_custom_call.1} parent=27 // pred_region
          %s224 = smul.u32 16, %s19
          %p225 = scmp.lt.s32.totalorder %s224, 31
          %s226 = scalar_select %p225, %s224, 31
          %s227 = smul.addr %s226, 8
          %s228 = scalar_lea.vmem %s0, %s227
          %s229 = smul.u32 16, %s19
        $region32: #{tpu_custom_call.1} parent=27 // pred_fallthru
          _
        // Predicated region
        $region33: #{tpu_custom_call.1} parent=27 // pred_check
          %p230 = pneg %p70
        $region34: #{tpu_custom_call.1} parent=27 // pred_check_branch
          %232 = sbr.rel (%p230) target = $region36
        $region35: #{tpu_custom_call.1} parent=27 // pred_region
          %s233 = smul.u32 16, %s20
          %p234 = scmp.lt.s32.totalorder %s233, 31
          %s235 = scalar_select %p234, %s233, 31
          %s236 = smul.addr %s235, 8
          %s237 = scalar_lea.vmem %s1, %s236
          %s238 = smul.u32 16, %s20
        $region36: #{tpu_custom_call.1} parent=27 // pred_fallthru
          _
        // Predicated region
        $region37: #{tpu_custom_call.1} parent=27 // pred_check
          %p239 = pneg %p161
        $region38: #{tpu_custom_call.1} parent=27 // pred_check_branch
          %241 = sbr.rel (%p239) target = $region40
        $region39: #{tpu_custom_call.1} parent=27 // pred_region
          %s242 = sand.u32 %s151, 1
          %s243 = sand.u32 %s151, 1
          %s244 = smul.addr %s243, 32
          %s245 = scalar_lea.vmem [#allocation6], %s244
          %s246 = smul.u32 4, %s19
          %s247 = smul.addr %s246, 2
          %s248 = sadd.s32 %s20, %s247
          %s249 = smul.addr %s248, 8
          %s250 = scalar_lea.vmem %s5, %s249
          // Predicated region
          $region41: #{tpu_custom_call.1} parent=39 // pred_check
            _
          $region42: #{tpu_custom_call.1} parent=39 // pred_check_branch
            %252 = sbr.rel (0) target = $region44
          $region43: #{tpu_custom_call.1} parent=39 // pred_region
            // Predicated region
            $region45: #{tpu_custom_call.1} parent=43 // pred_check
              _
            $region46: #{tpu_custom_call.1} parent=43 // pred_check_branch
              %254 = sbr.rel (0) target = $region48
            $region47: #{tpu_custom_call.1} parent=43 // pred_region
              // Predicated region
              $region60: #{tpu_custom_call.1} parent=47 // pred_check
                _
              $region61: #{tpu_custom_call.1} parent=47 // pred_check_branch
                %276 = sbr.rel (0) target = $region63
              $region62: #{tpu_custom_call.1} parent=47 // pred_region
                loop: start=0, step=1, limit=1
                $region64: #{tpu_custom_call.1} parent=62 // loop_pre_header
                  _
                $region65: #{tpu_custom_call.1} parent=62 // loop_header
                  %s278 = sphi 0, %s282
                  %p279 = scmp.ge.s32.totalorder %s278, 1
                  %s283 = sphi %s250, %s250
                  %s284 = sphi %s245, %s245
                $region66: #{tpu_custom_call.1} parent=62 // loop_header_branch
                  %281 = sbr.rel (%p279) target = $region70
                $region67: #{tpu_custom_call.1} parent=62 // loop_body
                  %v285 = vld [vmem:[%s283] sm:$0xff]
                  %286 = vst [vmem:[%s284] sm:$0xff] %v285
                  %v287 = vld [vmem:[%s283 + $0x10] sm:$0xff]
                  %288 = vst [vmem:[%s284 + $0x8] sm:$0xff] %v287
                  %v289 = vld [vmem:[%s283 + $0x20] sm:$0xff]
                  %290 = vst [vmem:[%s284 + $0x10] sm:$0xff] %v289
                  %v291 = vld [vmem:[%s283 + $0x30] sm:$0xff]
                  %292 = vst [vmem:[%s284 + $0x18] sm:$0xff] %v291
                $region68: #{tpu_custom_call.1} parent=62 // loop_footer
                  %s282 = sadd.s32 1, %s278
                $region69: #{tpu_custom_call.1} parent=62 // loop_footer_branch
                  %277 = sbr.rel target = $region65
                $region70: #{tpu_custom_call.1} parent=62 // loop_exit
                  _
              $region63: #{tpu_custom_call.1} parent=47 // pred_fallthru
                _
              // Predicated region
              $region71: #{tpu_custom_call.1} parent=47 // pred_check
                _
              $region72: #{tpu_custom_call.1} parent=47 // pred_check_branch
                %294 = sbr.rel target = $region74
              $region73: #{tpu_custom_call.1} parent=47 // pred_region
                _
              $region74: #{tpu_custom_call.1} parent=47 // pred_fallthru
                _
            $region48: #{tpu_custom_call.1} parent=43 // pred_fallthru
              _
            // Predicated region
            $region49: #{tpu_custom_call.1} parent=43 // pred_check
              _
            $region50: #{tpu_custom_call.1} parent=43 // pred_check_branch
              %256 = sbr.rel target = $region52
            $region51: #{tpu_custom_call.1} parent=43 // pred_region
              %s258 = ssub.s32 256, 1
              loop: start=0, step=1, limit=1
              $region53: #{tpu_custom_call.1} parent=51 // loop_pre_header
                _
              $region54: #{tpu_custom_call.1} parent=51 // loop_header
                %s260 = sphi 0, %s264
                %p261 = scmp.ge.s32.totalorder %s260, 1
                %s265 = sphi %s250, %s250
                %s266 = sphi %s245, %s245
              $region55: #{tpu_custom_call.1} parent=51 // loop_header_branch
                %263 = sbr.rel (%p261) target = $region59
              $region56: #{tpu_custom_call.1} parent=51 // loop_body
                %v267 = vld [vmem:[%s265] sm:%s258]
                %268 = vst [vmem:[%s266] sm:%s258] %v267
                %v269 = vld [vmem:[%s265 + $0x10] sm:%s258]
                %270 = vst [vmem:[%s266 + $0x8] sm:%s258] %v269
                %v271 = vld [vmem:[%s265 + $0x20] sm:%s258]
                %272 = vst [vmem:[%s266 + $0x10] sm:%s258] %v271
                %v273 = vld [vmem:[%s265 + $0x30] sm:%s258]
                %274 = vst [vmem:[%s266 + $0x18] sm:%s258] %v273
              $region57: #{tpu_custom_call.1} parent=51 // loop_footer
                %s264 = sadd.s32 1, %s260
              $region58: #{tpu_custom_call.1} parent=51 // loop_footer_branch
                %259 = sbr.rel target = $region54
              $region59: #{tpu_custom_call.1} parent=51 // loop_exit
                _
            $region52: #{tpu_custom_call.1} parent=43 // pred_fallthru
              _
          $region44: #{tpu_custom_call.1} parent=39 // pred_fallthru
            _
          %295 = vnop
        $region40: #{tpu_custom_call.1} parent=27 // pred_fallthru
          _
      $region28: #{tpu_custom_call.1} parent=5 // pred_fallthru
        _
      %p296 = scmp.le.s32.totalorder 1, %s12
      %p297 = scmp.lt.s32.totalorder %s12, 5
      %p298 = pnand %p296, %p297
      %p299 = pneg %p298
      // Predicated region
      $region75: #{tpu_custom_call.1} parent=5 // pred_check
        _
      $region76: #{tpu_custom_call.1} parent=5 // pred_check_branch
        %301 = sbr.rel (%p298) target = $region78
      $region77: #{tpu_custom_call.1} parent=5 // pred_region
        %s302 = ssub.s32 %s12, 1
        %s303 = sand.u32 %s154, 1
        %s304 = sand.u32 %s154, 1
        %s305 = smul.addr %s304, 32
        %s306 = scalar_lea.vmem [#allocation6], %s305
        // Predicated region
        $region79: #{tpu_custom_call.1} parent=77 // pred_check
          %p307 = pneg %p167
        $region80: #{tpu_custom_call.1} parent=77 // pred_check_branch
          %309 = sbr.rel (%p307) target = $region82
        $region81: #{tpu_custom_call.1} parent=77 // pred_region
          _
        $region82: #{tpu_custom_call.1} parent=77 // pred_fallthru
          _
        %s310 = smul.u32 16, %s21
        %p311 = scmp.lt.s32.totalorder %s310, 31
        %s312 = scalar_select %p311, %s310, 31
        %s313 = smul.addr %s312, 8
        %s314 = scalar_lea.vmem %s0, %s313
        %p315 = pneg %p50
        %p316 = pneg %p47
        %s317 = smul.u32 16, %s22
        %p318 = scmp.lt.s32.totalorder %s317, 31
        %s319 = scalar_select %p318, %s317, 31
        %s320 = smul.addr %s319, 8
        %s321 = scalar_lea.vmem %s1, %s320
        %p322 = pneg %p76
        %p323 = pneg %p73
        %p324 = pneg %p97
        %p325 = pneg %p94
        %p326 = pneg %p118
        %p327 = pneg %p115
        %p328 = pneg %p139
        %p329 = pneg %p136
        %s330 = sand.u32 %s154, 1
        %s331 = sand.u32 %s154, 1
        %s332 = smul.addr %s331, 32
        %s333 = scalar_lea.vmem [#allocation6], %s332
        %p334 = pneg %p167
        %p335 = pneg %p164
        %p336 = pneg %p193
        %p337 = pneg %p190
        %s338 = smul.u32 16, %s21
        %p339 = scmp.lt.s32.totalorder %s338, 31
        %s340 = scalar_select %p339, %s338, 31
        %s341 = smul.addr %s340, 4
        %s342 = scalar_lea.vmem %s6, %s341
        %s343 = smul.u32 16, %s21
        %p344 = scmp.lt.s32.totalorder %s343, 31
        %s345 = scalar_select %p344, %s343, 31
        %s346 = smul.addr %s345, 8
        %s347 = scalar_lea.vmem %s0, %s346
        %s348 = smul.u32 16, %s21
        %s349 = smul.u32 16, %s22
        %p350 = scmp.lt.s32.totalorder %s349, 31
        %s351 = scalar_select %p350, %s349, 31
        %s352 = smul.addr %s351, 8
        %s353 = scalar_lea.vmem %s1, %s352
        %s354 = smul.u32 16, %s22
        %s355 = smul.u32 4, %s21
        %s356 = smul.u32 16, %s21
        %p357 = scmp.lt.s32.totalorder %s356, 31
        %s358 = scalar_select %p357, %s356, 31
        %s359 = smul.addr %s358, 4
        %s360 = scalar_lea.vmem %s6, %s359
        %s361 = smul.u32 16, %s21
        %v363 = vld [vmem:[%s2] sm:$0xf]
        %v364 = vld [vmem:[%s2 + $0x4] sm:$0xf]
        %v365 = vld [vmem:[%s2 + $0x8] sm:$0xf]
        %v366 = vld [vmem:[%s2 + $0xc] sm:$0xf]
        %p367 = scmp.eq.s32.totalorder %s22, 0
        // Predicated region
        $region83: #{tpu_custom_call.1} parent=77 // pred_check
          %p368 = pneg %p367
        $region84: #{tpu_custom_call.1} parent=77 // pred_check_branch
          %370 = sbr.rel (%p368) target = $region86
        $region85: #{tpu_custom_call.1} parent=77 // pred_region
          %v371 = vld [vmem:[%s347] sm:$0xff]
          %v372 = vld [vmem:[%s347 + $0x8] sm:$0xff]
          %v373 = vld [vmem:[%s347 + $0x10] sm:$0xff]
          %v374 = vld [vmem:[%s347 + $0x18] sm:$0xff]
          %v375 = vld [vmem:[%s347 + $0x20] sm:$0xff]
          %v376 = vld [vmem:[%s347 + $0x28] sm:$0xff]
          %v377 = vld [vmem:[%s347 + $0x30] sm:$0xff]
          %v378 = vld [vmem:[%s347 + $0x38] sm:$0xff]
          %v379 = vld [vmem:[%s347 + $0x40] sm:$0xff]
          %v380 = vld [vmem:[%s347 + $0x48] sm:$0xff]
          %v381 = vld [vmem:[%s347 + $0x50] sm:$0xff]
          %v382 = vld [vmem:[%s347 + $0x58] sm:$0xff]
          %v383 = vld [vmem:[%s347 + $0x60] sm:$0xff]
          %v384 = vld [vmem:[%s347 + $0x68] sm:$0xff]
          %v385 = vld [vmem:[%s347 + $0x70] sm:$0xff]
          %v386 = vld [vmem:[%s347 + $0x78] sm:$0xff]
          %v387 = vpack.c.bf16 %v372, %v371
          %v388 = vpack.c.bf16 %v374, %v373
          %v389 = vpack.c.bf16 %v376, %v375
          %v390 = vpack.c.bf16 %v378, %v377
          %v391 = vpack.c.bf16 %v380, %v379
          %v392 = vpack.c.bf16 %v382, %v381
          %v393 = vpack.c.bf16 %v384, %v383
          %v394 = vpack.c.bf16 %v386, %v385
          %v399 = vunpack.c.l.b16 %v363
          %v400 = vunpack.c.l.b16 %v364
          %v401 = vunpack.c.l.b16 %v365
          %v402 = vunpack.c.l.b16 %v366
          %v403 = vpack.c.b16 %v400, %v399
          %v404 = vpack.c.b16 %v402, %v401
          %vm407 = vcmask 261120
          %v409 = vsel %vm407, %v387, 0
          %v412 = vsel %vm407, %v388, 0
          %v415 = vsel %vm407, %v389, 0
          %v418 = vsel %vm407, %v390, 0
          %v421 = vsel %vm407, %v391, 0
          %v424 = vsel %vm407, %v392, 0
          %v427 = vsel %vm407, %v393, 0
          %v430 = vsel %vm407, %v394, 0
          %432 = vmatprep.subr.bf16.mxu0 0
          %433 = vmatpush1.bf16.msra.mxu0 0
          %434 = vmatprep.subr.bf16.mxu0 0
          %435 = vmatpush1.bf16.msra.mxu0 0
          %436 = vmatprep.subr.bf16.mxu0 0
          %437 = vmatpush1.bf16.msra.mxu0 0
          %438 = vmatprep.subr.bf16.mxu0 0
          %439 = vmatpush1.bf16.msra.mxu0 0
          %440 = vmatprep.subr.bf16.mxu0 0
          %441 = vmatpush1.bf16.msra.mxu0 0
          %442 = vmatprep.subr.bf16.mxu0 0
          %443 = vmatpush1.bf16.msra.mxu0 0
          %444 = vmatprep.subr.bf16.mxu0 0
          %445 = vmatpush1.bf16.msra.mxu0 %v404
          %446 = vmatprep.subr.bf16.mxu0 0
          %447 = vmatpush1.bf16.msra.mxu0 %v403
          %448 = vmatprep.subr.bf16.mxu0 0
          %449 = vmatpush2.bf16.msra.mxu0 0
          %450 = vmatprep.subr.bf16.mxu0 0
          %451 = vmatpush2.bf16.msra.mxu0 0
          %452 = vmatprep.subr.bf16.mxu0 0
          %453 = vmatpush2.bf16.msra.mxu0 0
          %454 = vmatprep.subr.bf16.mxu0 0
          %455 = vmatpush2.bf16.msra.mxu0 0
          %456 = vmatprep.subr.bf16.mxu0 0
          %457 = vmatpush2.bf16.msra.mxu0 0
          %458 = vmatprep.subr.bf16.mxu0 0
          %459 = vmatpush2.bf16.msra.mxu0 0
          %460 = vmatprep.subr.bf16.mxu0 0
          %461 = vmatpush2.bf16.msra.mxu0 0
          %462 = vmatprep.subr.bf16.mxu0 0
          %463 = vmatpush2.bf16.msra.mxu0 0
          %464 = vmatprep.mubr.bf16.mxu0 0
          %465 = vmatmul.mubr.bf16.gmra.mxu0 %v409
          %v466 = vpop.f32.mrf.mxu0
          %v467 = vadd.f32 0.0, %v466
          %v468 = vpop.f32.mrf.mxu0
          %v469 = vpop.f32.mrf.mxu0
          %v470 = vadd.f32 0.0, %v469
          %v471 = vpop.f32.mrf.mxu0
          %472 = vmatprep.mubr.bf16.mxu0 0
          %473 = vmatmul.mubr.bf16.gmra.mxu0 %v412
          %v474 = vpop.f32.mrf.mxu0
          %v475 = vadd.f32 0.0, %v474
          %v476 = vpop.f32.mrf.mxu0
          %v477 = vpop.f32.mrf.mxu0
          %v478 = vadd.f32 0.0, %v477
          %v479 = vpop.f32.mrf.mxu0
          %480 = vmatprep.mubr.bf16.mxu0 0
          %481 = vmatmul.mubr.bf16.gmra.mxu0 %v415
          %v482 = vpop.f32.mrf.mxu0
          %v483 = vadd.f32 0.0, %v482
          %v484 = vpop.f32.mrf.mxu0
          %v485 = vpop.f32.mrf.mxu0
          %v486 = vadd.f32 0.0, %v485
          %v487 = vpop.f32.mrf.mxu0
          %488 = vmatprep.mubr.bf16.mxu0 0
          %489 = vmatmul.mubr.bf16.gmra.mxu0 %v418
          %v490 = vpop.f32.mrf.mxu0
          %v491 = vadd.f32 0.0, %v490
          %v492 = vpop.f32.mrf.mxu0
          %v493 = vpop.f32.mrf.mxu0
          %v494 = vadd.f32 0.0, %v493
          %v495 = vpop.f32.mrf.mxu0
          %496 = vmatprep.mubr.bf16.mxu0 0
          %497 = vmatmul.mubr.bf16.gmra.mxu0 %v421
          %v498 = vpop.f32.mrf.mxu0
          %v499 = vadd.f32 0.0, %v498
          %v500 = vpop.f32.mrf.mxu0
          %v501 = vpop.f32.mrf.mxu0
          %v502 = vadd.f32 0.0, %v501
          %v503 = vpop.f32.mrf.mxu0
          %504 = vmatprep.mubr.bf16.mxu0 0
          %505 = vmatmul.mubr.bf16.gmra.mxu0 %v424
          %v506 = vpop.f32.mrf.mxu0
          %v507 = vadd.f32 0.0, %v506
          %v508 = vpop.f32.mrf.mxu0
          %v509 = vpop.f32.mrf.mxu0
          %v510 = vadd.f32 0.0, %v509
          %v511 = vpop.f32.mrf.mxu0
          %512 = vmatprep.mubr.bf16.mxu0 0
          %513 = vmatmul.mubr.bf16.gmra.mxu0 %v427
          %v514 = vpop.f32.mrf.mxu0
          %v515 = vadd.f32 0.0, %v514
          %v516 = vpop.f32.mrf.mxu0
          %v517 = vpop.f32.mrf.mxu0
          %v518 = vadd.f32 0.0, %v517
          %v519 = vpop.f32.mrf.mxu0
          %520 = vmatprep.mubr.bf16.mxu0 0
          %521 = vmatmul.mubr.bf16.gmra.mxu0 %v430
          %v522 = vpop.f32.mrf.mxu0
          %v523 = vadd.f32 0.0, %v522
          %v524 = vpop.f32.mrf.mxu0
          %v525 = vpop.f32.mrf.mxu0
          %v526 = vadd.f32 0.0, %v525
          %v527 = vpop.f32.mrf.mxu0
          %528 = vdwg.mxu0
          %v529 = vld [vmem:[%s4] sm:$0x1]
          %v530 = vlaneseq
          %v531 = vshrl.u32 %v530, 7
          %v532 = vsub.s32 0, %v531
          %v533 = vrot.slane %v529, %v532
          %v534 = vmul.f32 %v467, %v533
          %v535 = vmul.f32 %v470, %v533
          %v536 = vmul.f32 %v475, %v533
          %v537 = vmul.f32 %v478, %v533
          %v538 = vmul.f32 %v483, %v533
          %v539 = vmul.f32 %v486, %v533
          %v540 = vmul.f32 %v491, %v533
          %v541 = vmul.f32 %v494, %v533
          %v542 = vmul.f32 %v499, %v533
          %v543 = vmul.f32 %v502, %v533
          %v544 = vmul.f32 %v507, %v533
          %v545 = vmul.f32 %v510, %v533
          %v546 = vmul.f32 %v515, %v533
          %v547 = vmul.f32 %v518, %v533
          %v548 = vmul.f32 %v523, %v533
          %v549 = vmul.f32 %v526, %v533
          %vm550 = vcmask 130048
          %v551 = vsel %vm550, %v534, 0.0
          %552 = vadd.xlane.f32.xlu0 %v551
          %v553 = vpop.xlane.xlu0 %552
          %v554 = vsel %vm550, %v535, 0.0
          %555 = vadd.xlane.f32.xlu0 %v554
          %v556 = vpop.xlane.xlu0 %555
          %v557 = vsel %vm550, %v536, 0.0
          %558 = vadd.xlane.f32.xlu0 %v557
          %v559 = vpop.xlane.xlu0 %558
          %v560 = vsel %vm550, %v537, 0.0
          %561 = vadd.xlane.f32.xlu0 %v560
          %v562 = vpop.xlane.xlu0 %561
          %v563 = vsel %vm550, %v538, 0.0
          %564 = vadd.xlane.f32.xlu0 %v563
          %v565 = vpop.xlane.xlu0 %564
          %v566 = vsel %vm550, %v539, 0.0
          %567 = vadd.xlane.f32.xlu0 %v566
          %v568 = vpop.xlane.xlu0 %567
          %v569 = vsel %vm550, %v540, 0.0
          %570 = vadd.xlane.f32.xlu0 %v569
          %v571 = vpop.xlane.xlu0 %570
          %v572 = vsel %vm550, %v541, 0.0
          %573 = vadd.xlane.f32.xlu0 %v572
          %v574 = vpop.xlane.xlu0 %573
          %v575 = vsel %vm550, %v542, 0.0
          %576 = vadd.xlane.f32.xlu0 %v575
          %v577 = vpop.xlane.xlu0 %576
          %v578 = vsel %vm550, %v543, 0.0
          %579 = vadd.xlane.f32.xlu0 %v578
          %v580 = vpop.xlane.xlu0 %579
          %v581 = vsel %vm550, %v544, 0.0
          %582 = vadd.xlane.f32.xlu0 %v581
          %v583 = vpop.xlane.xlu0 %582
          %v584 = vsel %vm550, %v545, 0.0
          %585 = vadd.xlane.f32.xlu0 %v584
          %v586 = vpop.xlane.xlu0 %585
          %v587 = vsel %vm550, %v546, 0.0
          %588 = vadd.xlane.f32.xlu0 %v587
          %v589 = vpop.xlane.xlu0 %588
          %v590 = vsel %vm550, %v547, 0.0
          %591 = vadd.xlane.f32.xlu0 %v590
          %v592 = vpop.xlane.xlu0 %591
          %v593 = vsel %vm550, %v548, 0.0
          %594 = vadd.xlane.f32.xlu0 %v593
          %v595 = vpop.xlane.xlu0 %594
          %v596 = vsel %vm550, %v549, 0.0
          %597 = vadd.xlane.f32.xlu0 %v596
          %v598 = vpop.xlane.xlu0 %597
          %vm599 = vcmask 7168
          %600 = vst.msk [vmem:[#allocation2] sm:$0xff] %vm599, %v553
          %601 = vst.msk [vmem:[#allocation2 + $0x8] sm:$0xff] %vm599, %v556
          %602 = vst.msk [vmem:[#allocation2 + $0x10] sm:$0xff] %vm599, %v559
          %603 = vst.msk [vmem:[#allocation2 + $0x18] sm:$0xff] %vm599, %v562
          %604 = vst.msk [vmem:[#allocation2 + $0x20] sm:$0xff] %vm599, %v565
          %605 = vst.msk [vmem:[#allocation2 + $0x28] sm:$0xff] %vm599, %v568
          %606 = vst.msk [vmem:[#allocation2 + $0x30] sm:$0xff] %vm599, %v571
          %607 = vst.msk [vmem:[#allocation2 + $0x38] sm:$0xff] %vm599, %v574
          %608 = vst.msk [vmem:[#allocation2 + $0x40] sm:$0xff] %vm599, %v577
          %609 = vst.msk [vmem:[#allocation2 + $0x48] sm:$0xff] %vm599, %v580
          %610 = vst.msk [vmem:[#allocation2 + $0x50] sm:$0xff] %vm599, %v583
          %611 = vst.msk [vmem:[#allocation2 + $0x58] sm:$0xff] %vm599, %v586
          %612 = vst.msk [vmem:[#allocation2 + $0x60] sm:$0xff] %vm599, %v589
          %613 = vst.msk [vmem:[#allocation2 + $0x68] sm:$0xff] %vm599, %v592
          %614 = vst.msk [vmem:[#allocation2 + $0x70] sm:$0xff] %vm599, %v595
          %615 = vst.msk [vmem:[#allocation2 + $0x78] sm:$0xff] %vm599, %v598
          %v616 = vld [vmem:[%s4 + $0x1] sm:$0x1]
          %v617 = vlaneseq
          %v618 = vshrl.u32 %v617, 7
          %v619 = vsub.s32 0, %v618
          %v620 = vrot.slane %v616, %v619
          %622 = vrot.lane.b32.xlu0 %v620, 16
          %v623 = vpop.permute.xlu0 %622
          %v625 = vmul.f32 %v467, %v623
          %v626 = vmul.f32 %v470, %v623
          %v627 = vmul.f32 %v475, %v623
          %v628 = vmul.f32 %v478, %v623
          %v629 = vmul.f32 %v483, %v623
          %v630 = vmul.f32 %v486, %v623
          %v631 = vmul.f32 %v491, %v623
          %v632 = vmul.f32 %v494, %v623
          %v633 = vmul.f32 %v499, %v623
          %v634 = vmul.f32 %v502, %v623
          %v635 = vmul.f32 %v507, %v623
          %v636 = vmul.f32 %v510, %v623
          %v637 = vmul.f32 %v515, %v623
          %v638 = vmul.f32 %v518, %v623
          %v639 = vmul.f32 %v523, %v623
          %v640 = vmul.f32 %v526, %v623
          %657 = vrot.lane.b32.xlu0 %v625, 112
          %v658 = vpop.permute.xlu0 %657
          %659 = vrot.lane.b32.xlu0 %v626, 112
          %v660 = vpop.permute.xlu0 %659
          %661 = vrot.lane.b32.xlu0 %v627, 112
          %v662 = vpop.permute.xlu0 %661
          %663 = vrot.lane.b32.xlu0 %v628, 112
          %v664 = vpop.permute.xlu0 %663
          %665 = vrot.lane.b32.xlu0 %v629, 112
          %v666 = vpop.permute.xlu0 %665
          %667 = vrot.lane.b32.xlu0 %v630, 112
          %v668 = vpop.permute.xlu0 %667
          %669 = vrot.lane.b32.xlu0 %v631, 112
          %v670 = vpop.permute.xlu0 %669
          %671 = vrot.lane.b32.xlu0 %v632, 112
          %v672 = vpop.permute.xlu0 %671
          %673 = vrot.lane.b32.xlu0 %v633, 112
          %v674 = vpop.permute.xlu0 %673
          %675 = vrot.lane.b32.xlu0 %v634, 112
          %v676 = vpop.permute.xlu0 %675
          %677 = vrot.lane.b32.xlu0 %v635, 112
          %v678 = vpop.permute.xlu0 %677
          %679 = vrot.lane.b32.xlu0 %v636, 112
          %v680 = vpop.permute.xlu0 %679
          %681 = vrot.lane.b32.xlu0 %v637, 112
          %v682 = vpop.permute.xlu0 %681
          %683 = vrot.lane.b32.xlu0 %v638, 112
          %v684 = vpop.permute.xlu0 %683
          %685 = vrot.lane.b32.xlu0 %v639, 112
          %v686 = vpop.permute.xlu0 %685
          %687 = vrot.lane.b32.xlu0 %v640, 112
          %v688 = vpop.permute.xlu0 %687
          %v705 = vsel %vm550, %v658, 0.0
          %706 = vadd.xlane.f32.xlu0 %v705
          %v707 = vpop.xlane.xlu0 %706
          %v708 = vsel %vm550, %v660, 0.0
          %709 = vadd.xlane.f32.xlu0 %v708
          %v710 = vpop.xlane.xlu0 %709
          %v711 = vsel %vm550, %v662, 0.0
          %712 = vadd.xlane.f32.xlu0 %v711
          %v713 = vpop.xlane.xlu0 %712
          %v714 = vsel %vm550, %v664, 0.0
          %715 = vadd.xlane.f32.xlu0 %v714
          %v716 = vpop.xlane.xlu0 %715
          %v717 = vsel %vm550, %v666, 0.0
          %718 = vadd.xlane.f32.xlu0 %v717
          %v719 = vpop.xlane.xlu0 %718
          %v720 = vsel %vm550, %v668, 0.0
          %721 = vadd.xlane.f32.xlu0 %v720
          %v722 = vpop.xlane.xlu0 %721
          %v723 = vsel %vm550, %v670, 0.0
          %724 = vadd.xlane.f32.xlu0 %v723
          %v725 = vpop.xlane.xlu0 %724
          %v726 = vsel %vm550, %v672, 0.0
          %727 = vadd.xlane.f32.xlu0 %v726
          %v728 = vpop.xlane.xlu0 %727
          %v729 = vsel %vm550, %v674, 0.0
          %730 = vadd.xlane.f32.xlu0 %v729
          %v731 = vpop.xlane.xlu0 %730
          %v732 = vsel %vm550, %v676, 0.0
          %733 = vadd.xlane.f32.xlu0 %v732
          %v734 = vpop.xlane.xlu0 %733
          %v735 = vsel %vm550, %v678, 0.0
          %736 = vadd.xlane.f32.xlu0 %v735
          %v737 = vpop.xlane.xlu0 %736
          %v738 = vsel %vm550, %v680, 0.0
          %739 = vadd.xlane.f32.xlu0 %v738
          %v740 = vpop.xlane.xlu0 %739
          %v741 = vsel %vm550, %v682, 0.0
          %742 = vadd.xlane.f32.xlu0 %v741
          %v743 = vpop.xlane.xlu0 %742
          %v744 = vsel %vm550, %v684, 0.0
          %745 = vadd.xlane.f32.xlu0 %v744
          %v746 = vpop.xlane.xlu0 %745
          %v747 = vsel %vm550, %v686, 0.0
          %748 = vadd.xlane.f32.xlu0 %v747
          %v749 = vpop.xlane.xlu0 %748
          %v750 = vsel %vm550, %v688, 0.0
          %751 = vadd.xlane.f32.xlu0 %v750
          %v752 = vpop.xlane.xlu0 %751
          %vm753 = vcmask 15368
          %754 = vst.msk [vmem:[#allocation2] sm:$0xff] %vm753, %v707
          %755 = vst.msk [vmem:[#allocation2 + $0x8] sm:$0xff] %vm753, %v710
          %756 = vst.msk [vmem:[#allocation2 + $0x10] sm:$0xff] %vm753, %v713
          %757 = vst.msk [vmem:[#allocation2 + $0x18] sm:$0xff] %vm753, %v716
          %758 = vst.msk [vmem:[#allocation2 + $0x20] sm:$0xff] %vm753, %v719
          %759 = vst.msk [vmem:[#allocation2 + $0x28] sm:$0xff] %vm753, %v722
          %760 = vst.msk [vmem:[#allocation2 + $0x30] sm:$0xff] %vm753, %v725
          %761 = vst.msk [vmem:[#allocation2 + $0x38] sm:$0xff] %vm753, %v728
          %762 = vst.msk [vmem:[#allocation2 + $0x40] sm:$0xff] %vm753, %v731
          %763 = vst.msk [vmem:[#allocation2 + $0x48] sm:$0xff] %vm753, %v734
          %764 = vst.msk [vmem:[#allocation2 + $0x50] sm:$0xff] %vm753, %v737
          %765 = vst.msk [vmem:[#allocation2 + $0x58] sm:$0xff] %vm753, %v740
          %766 = vst.msk [vmem:[#allocation2 + $0x60] sm:$0xff] %vm753, %v743
          %767 = vst.msk [vmem:[#allocation2 + $0x68] sm:$0xff] %vm753, %v746
          %768 = vst.msk [vmem:[#allocation2 + $0x70] sm:$0xff] %vm753, %v749
          %769 = vst.msk [vmem:[#allocation2 + $0x78] sm:$0xff] %vm753, %v752
          %vm770 = vcmask 15360
          %771 = vst.msk [vmem:[#allocation3] sm:$0xff] %vm770, -inf
          %772 = vst.msk [vmem:[#allocation3 + $0x8] sm:$0xff] %vm770, -inf
          %773 = vst.msk [vmem:[#allocation3 + $0x10] sm:$0xff] %vm770, -inf
          %774 = vst.msk [vmem:[#allocation3 + $0x18] sm:$0xff] %vm770, -inf
          %775 = vst.msk [vmem:[#allocation3 + $0x20] sm:$0xff] %vm770, -inf
          %776 = vst.msk [vmem:[#allocation3 + $0x28] sm:$0xff] %vm770, -inf
          %777 = vst.msk [vmem:[#allocation3 + $0x30] sm:$0xff] %vm770, -inf
          %778 = vst.msk [vmem:[#allocation3 + $0x38] sm:$0xff] %vm770, -inf
          %779 = vst.msk [vmem:[#allocation3 + $0x40] sm:$0xff] %vm770, -inf
          %780 = vst.msk [vmem:[#allocation3 + $0x48] sm:$0xff] %vm770, -inf
          %781 = vst.msk [vmem:[#allocation3 + $0x50] sm:$0xff] %vm770, -inf
          %782 = vst.msk [vmem:[#allocation3 + $0x58] sm:$0xff] %vm770, -inf
          %783 = vst.msk [vmem:[#allocation3 + $0x60] sm:$0xff] %vm770, -inf
          %784 = vst.msk [vmem:[#allocation3 + $0x68] sm:$0xff] %vm770, -inf
          %785 = vst.msk [vmem:[#allocation3 + $0x70] sm:$0xff] %vm770, -inf
          %786 = vst.msk [vmem:[#allocation3 + $0x78] sm:$0xff] %vm770, -inf
          %787 = vst.msk [vmem:[#allocation4] sm:$0xff] %vm770, 0.0
          %788 = vst.msk [vmem:[#allocation4 + $0x8] sm:$0xff] %vm770, 0.0
          %789 = vst.msk [vmem:[#allocation4 + $0x10] sm:$0xff] %vm770, 0.0
          %790 = vst.msk [vmem:[#allocation4 + $0x18] sm:$0xff] %vm770, 0.0
          %791 = vst.msk [vmem:[#allocation4 + $0x20] sm:$0xff] %vm770, 0.0
          %792 = vst.msk [vmem:[#allocation4 + $0x28] sm:$0xff] %vm770, 0.0
          %793 = vst.msk [vmem:[#allocation4 + $0x30] sm:$0xff] %vm770, 0.0
          %794 = vst.msk [vmem:[#allocation4 + $0x38] sm:$0xff] %vm770, 0.0
          %795 = vst.msk [vmem:[#allocation4 + $0x40] sm:$0xff] %vm770, 0.0
          %796 = vst.msk [vmem:[#allocation4 + $0x48] sm:$0xff] %vm770, 0.0
          %797 = vst.msk [vmem:[#allocation4 + $0x50] sm:$0xff] %vm770, 0.0
          %798 = vst.msk [vmem:[#allocation4 + $0x58] sm:$0xff] %vm770, 0.0
          %799 = vst.msk [vmem:[#allocation4 + $0x60] sm:$0xff] %vm770, 0.0
          %800 = vst.msk [vmem:[#allocation4 + $0x68] sm:$0xff] %vm770, 0.0
          %801 = vst.msk [vmem:[#allocation4 + $0x70] sm:$0xff] %vm770, 0.0
          %802 = vst.msk [vmem:[#allocation4 + $0x78] sm:$0xff] %vm770, 0.0
          %803 = vst.msk [vmem:[#allocation5] sm:$0xff] %vm407, 0.0
          %804 = vst.msk [vmem:[#allocation5 + $0x8] sm:$0xff] %vm407, 0.0
          %805 = vst.msk [vmem:[#allocation5 + $0x10] sm:$0xff] %vm407, 0.0
          %806 = vst.msk [vmem:[#allocation5 + $0x18] sm:$0xff] %vm407, 0.0
          %807 = vst.msk [vmem:[#allocation5 + $0x20] sm:$0xff] %vm407, 0.0
          %808 = vst.msk [vmem:[#allocation5 + $0x28] sm:$0xff] %vm407, 0.0
          %809 = vst.msk [vmem:[#allocation5 + $0x30] sm:$0xff] %vm407, 0.0
          %810 = vst.msk [vmem:[#allocation5 + $0x38] sm:$0xff] %vm407, 0.0
          %811 = vst.msk [vmem:[#allocation5 + $0x40] sm:$0xff] %vm407, 0.0
          %812 = vst.msk [vmem:[#allocation5 + $0x48] sm:$0xff] %vm407, 0.0
          %813 = vst.msk [vmem:[#allocation5 + $0x50] sm:$0xff] %vm407, 0.0
          %814 = vst.msk [vmem:[#allocation5 + $0x58] sm:$0xff] %vm407, 0.0
          %815 = vst.msk [vmem:[#allocation5 + $0x60] sm:$0xff] %vm407, 0.0
          %816 = vst.msk [vmem:[#allocation5 + $0x68] sm:$0xff] %vm407, 0.0
          %817 = vst.msk [vmem:[#allocation5 + $0x70] sm:$0xff] %vm407, 0.0
          %818 = vst.msk [vmem:[#allocation5 + $0x78] sm:$0xff] %vm407, 0.0
        $region86: #{tpu_custom_call.1} parent=77 // pred_fallthru
          _
        %v819 = vld [vmem:[%s353] sm:$0xff]
        %v820 = vld [vmem:[%s353 + $0x8] sm:$0xff]
        %v821 = vld [vmem:[%s353 + $0x10] sm:$0xff]
        %v822 = vld [vmem:[%s353 + $0x18] sm:$0xff]
        %v823 = vld [vmem:[%s353 + $0x20] sm:$0xff]
        %v824 = vld [vmem:[%s353 + $0x28] sm:$0xff]
        %v825 = vld [vmem:[%s353 + $0x30] sm:$0xff]
        %v826 = vld [vmem:[%s353 + $0x38] sm:$0xff]
        %v827 = vld [vmem:[%s353 + $0x40] sm:$0xff]
        %v828 = vld [vmem:[%s353 + $0x48] sm:$0xff]
        %v829 = vld [vmem:[%s353 + $0x50] sm:$0xff]
        %v830 = vld [vmem:[%s353 + $0x58] sm:$0xff]
        %v831 = vld [vmem:[%s353 + $0x60] sm:$0xff]
        %v832 = vld [vmem:[%s353 + $0x68] sm:$0xff]
        %v833 = vld [vmem:[%s353 + $0x70] sm:$0xff]
        %v834 = vld [vmem:[%s353 + $0x78] sm:$0xff]
        %v835 = vpack.c.bf16 %v820, %v819
        %v836 = vpack.c.bf16 %v822, %v821
        %v837 = vpack.c.bf16 %v824, %v823
        %v838 = vpack.c.bf16 %v826, %v825
        %v839 = vpack.c.bf16 %v828, %v827
        %v840 = vpack.c.bf16 %v830, %v829
        %v841 = vpack.c.bf16 %v832, %v831
        %v842 = vpack.c.bf16 %v834, %v833
        %v847 = vunpack.c.l.b16 %v363
        %v848 = vunpack.c.l.b16 %v364
        %v849 = vunpack.c.l.b16 %v365
        %v850 = vunpack.c.l.b16 %v366
        %v851 = vpack.c.b16 %v848, %v847
        %v852 = vpack.c.b16 %v850, %v849
        %vm855 = vcmask 261120
        %v857 = vsel %vm855, %v835, 0
        %v860 = vsel %vm855, %v836, 0
        %v863 = vsel %vm855, %v837, 0
        %v866 = vsel %vm855, %v838, 0
        %v869 = vsel %vm855, %v839, 0
        %v872 = vsel %vm855, %v840, 0
        %v875 = vsel %vm855, %v841, 0
        %v878 = vsel %vm855, %v842, 0
        %880 = vmatprep.subr.bf16.mxu0 0
        %881 = vmatpush1.bf16.msra.mxu0 0
        %882 = vmatprep.subr.bf16.mxu0 0
        %883 = vmatpush1.bf16.msra.mxu0 0
        %884 = vmatprep.subr.bf16.mxu0 0
        %885 = vmatpush1.bf16.msra.mxu0 0
        %886 = vmatprep.subr.bf16.mxu0 0
        %887 = vmatpush1.bf16.msra.mxu0 0
        %888 = vmatprep.subr.bf16.mxu0 0
        %889 = vmatpush1.bf16.msra.mxu0 0
        %890 = vmatprep.subr.bf16.mxu0 0
        %891 = vmatpush1.bf16.msra.mxu0 0
        %892 = vmatprep.subr.bf16.mxu0 0
        %893 = vmatpush1.bf16.msra.mxu0 %v852
        %894 = vmatprep.subr.bf16.mxu0 0
        %895 = vmatpush1.bf16.msra.mxu0 %v851
        %896 = vmatprep.subr.bf16.mxu0 0
        %897 = vmatpush2.bf16.msra.mxu0 0
        %898 = vmatprep.subr.bf16.mxu0 0
        %899 = vmatpush2.bf16.msra.mxu0 0
        %900 = vmatprep.subr.bf16.mxu0 0
        %901 = vmatpush2.bf16.msra.mxu0 0
        %902 = vmatprep.subr.bf16.mxu0 0
        %903 = vmatpush2.bf16.msra.mxu0 0
        %904 = vmatprep.subr.bf16.mxu0 0
        %905 = vmatpush2.bf16.msra.mxu0 0
        %906 = vmatprep.subr.bf16.mxu0 0
        %907 = vmatpush2.bf16.msra.mxu0 0
        %908 = vmatprep.subr.bf16.mxu0 0
        %909 = vmatpush2.bf16.msra.mxu0 0
        %910 = vmatprep.subr.bf16.mxu0 0
        %911 = vmatpush2.bf16.msra.mxu0 0
        %912 = vmatprep.mubr.bf16.mxu0 0
        %913 = vmatmul.mubr.bf16.gmra.mxu0 %v857
        %v914 = vpop.f32.mrf.mxu0
        %v915 = vadd.f32 0.0, %v914
        %v916 = vpop.f32.mrf.mxu0
        %v917 = vpop.f32.mrf.mxu0
        %v918 = vadd.f32 0.0, %v917
        %v919 = vpop.f32.mrf.mxu0
        %920 = vmatprep.mubr.bf16.mxu0 0
        %921 = vmatmul.mubr.bf16.gmra.mxu0 %v860
        %v922 = vpop.f32.mrf.mxu0
        %v923 = vadd.f32 0.0, %v922
        %v924 = vpop.f32.mrf.mxu0
        %v925 = vpop.f32.mrf.mxu0
        %v926 = vadd.f32 0.0, %v925
        %v927 = vpop.f32.mrf.mxu0
        %928 = vmatprep.mubr.bf16.mxu0 0
        %929 = vmatmul.mubr.bf16.gmra.mxu0 %v863
        %v930 = vpop.f32.mrf.mxu0
        %v931 = vadd.f32 0.0, %v930
        %v932 = vpop.f32.mrf.mxu0
        %v933 = vpop.f32.mrf.mxu0
        %v934 = vadd.f32 0.0, %v933
        %v935 = vpop.f32.mrf.mxu0
        %936 = vmatprep.mubr.bf16.mxu0 0
        %937 = vmatmul.mubr.bf16.gmra.mxu0 %v866
        %v938 = vpop.f32.mrf.mxu0
        %v939 = vadd.f32 0.0, %v938
        %v940 = vpop.f32.mrf.mxu0
        %v941 = vpop.f32.mrf.mxu0
        %v942 = vadd.f32 0.0, %v941
        %v943 = vpop.f32.mrf.mxu0
        %944 = vmatprep.mubr.bf16.mxu0 0
        %945 = vmatmul.mubr.bf16.gmra.mxu0 %v869
        %v946 = vpop.f32.mrf.mxu0
        %v947 = vadd.f32 0.0, %v946
        %v948 = vpop.f32.mrf.mxu0
        %v949 = vpop.f32.mrf.mxu0
        %v950 = vadd.f32 0.0, %v949
        %v951 = vpop.f32.mrf.mxu0
        %952 = vmatprep.mubr.bf16.mxu0 0
        %953 = vmatmul.mubr.bf16.gmra.mxu0 %v872
        %v954 = vpop.f32.mrf.mxu0
        %v955 = vadd.f32 0.0, %v954
        %v956 = vpop.f32.mrf.mxu0
        %v957 = vpop.f32.mrf.mxu0
        %v958 = vadd.f32 0.0, %v957
        %v959 = vpop.f32.mrf.mxu0
        %960 = vmatprep.mubr.bf16.mxu0 0
        %961 = vmatmul.mubr.bf16.gmra.mxu0 %v875
        %v962 = vpop.f32.mrf.mxu0
        %v963 = vadd.f32 0.0, %v962
        %v964 = vpop.f32.mrf.mxu0
        %v965 = vpop.f32.mrf.mxu0
        %v966 = vadd.f32 0.0, %v965
        %v967 = vpop.f32.mrf.mxu0
        %968 = vmatprep.mubr.bf16.mxu0 0
        %969 = vmatmul.mubr.bf16.gmra.mxu0 %v878
        %v970 = vpop.f32.mrf.mxu0
        %v971 = vadd.f32 0.0, %v970
        %v972 = vpop.f32.mrf.mxu0
        %v973 = vpop.f32.mrf.mxu0
        %v974 = vadd.f32 0.0, %v973
        %v975 = vpop.f32.mrf.mxu0
        %976 = vdwg.mxu0
        %v977 = vld [vmem:[%s306] sm:$0xff]
        %v978 = vld [vmem:[%s306 + $0x8] sm:$0xff]
        %v979 = vld [vmem:[%s306 + $0x10] sm:$0xff]
        %v980 = vld [vmem:[%s306 + $0x18] sm:$0xff]
        %v981 = vunpack.c.0.s8 %v977
        %v982 = vunpack.c.1.s8 %v977
        %v983 = vunpack.c.2.s8 %v977
        %v984 = vunpack.c.3.s8 %v977
        %v985 = vunpack.c.0.s8 %v978
        %v986 = vunpack.c.1.s8 %v978
        %v987 = vunpack.c.2.s8 %v978
        %v988 = vunpack.c.3.s8 %v978
        %v989 = vunpack.c.0.s8 %v979
        %v990 = vunpack.c.1.s8 %v979
        %v991 = vunpack.c.2.s8 %v979
        %v992 = vunpack.c.3.s8 %v979
        %v993 = vunpack.c.0.s8 %v980
        %v994 = vunpack.c.1.s8 %v980
        %v995 = vunpack.c.2.s8 %v980
        %v996 = vunpack.c.3.s8 %v980
        %v997 = vcvt.s32.f32 %v981
        %v998 = vcvt.s32.f32 %v982
        %v999 = vcvt.s32.f32 %v983
        %v1000 = vcvt.s32.f32 %v984
        %v1001 = vcvt.s32.f32 %v985
        %v1002 = vcvt.s32.f32 %v986
        %v1003 = vcvt.s32.f32 %v987
        %v1004 = vcvt.s32.f32 %v988
        %v1005 = vcvt.s32.f32 %v989
        %v1006 = vcvt.s32.f32 %v990
        %v1007 = vcvt.s32.f32 %v991
        %v1008 = vcvt.s32.f32 %v992
        %v1009 = vcvt.s32.f32 %v993
        %v1010 = vcvt.s32.f32 %v994
        %v1011 = vcvt.s32.f32 %v995
        %v1012 = vcvt.s32.f32 %v996
        %vm1013 = vcmp.gt.f32.partialorder %v997, 0.0
        %vm1014 = vcmp.gt.f32.partialorder %v998, 0.0
        %vm1015 = vcmp.gt.f32.partialorder %v999, 0.0
        %vm1016 = vcmp.gt.f32.partialorder %v1000, 0.0
        %vm1017 = vcmp.gt.f32.partialorder %v1001, 0.0
        %vm1018 = vcmp.gt.f32.partialorder %v1002, 0.0
        %vm1019 = vcmp.gt.f32.partialorder %v1003, 0.0
        %vm1020 = vcmp.gt.f32.partialorder %v1004, 0.0
        %vm1021 = vcmp.gt.f32.partialorder %v1005, 0.0
        %vm1022 = vcmp.gt.f32.partialorder %v1006, 0.0
        %vm1023 = vcmp.gt.f32.partialorder %v1007, 0.0
        %vm1024 = vcmp.gt.f32.partialorder %v1008, 0.0
        %vm1025 = vcmp.gt.f32.partialorder %v1009, 0.0
        %vm1026 = vcmp.gt.f32.partialorder %v1010, 0.0
        %vm1027 = vcmp.gt.f32.partialorder %v1011, 0.0
        %vm1028 = vcmp.gt.f32.partialorder %v1012, 0.0
        %v1029 = vld [vmem:[%s3] sm:$0x1]
        %vm1030 = vcmask 130048
        %v1032 = vsel %vm1030, %v1029, 0
        %v1035 = vsel %vm1030, %v915, 0
        %v1038 = vsel %vm1030, %v918, 0
        %v1041 = vsel %vm1030, %v923, 0
        %v1044 = vsel %vm1030, %v926, 0
        %v1047 = vsel %vm1030, %v931, 0
        %v1050 = vsel %vm1030, %v934, 0
        %v1053 = vsel %vm1030, %v939, 0
        %v1056 = vsel %vm1030, %v942, 0
        %v1059 = vsel %vm1030, %v947, 0
        %v1062 = vsel %vm1030, %v950, 0
        %v1065 = vsel %vm1030, %v955, 0
        %v1068 = vsel %vm1030, %v958, 0
        %v1071 = vsel %vm1030, %v963, 0
        %v1074 = vsel %vm1030, %v966, 0
        %v1077 = vsel %vm1030, %v971, 0
        %v1080 = vsel %vm1030, %v974, 0
        %1082 = vmatprep.subr.mxu0 0.0
        %1083 = vmatpush1.xpose.msra.mxu0 %v1080
        %1084 = vmatprep.subr.mxu0 0.0
        %1085 = vmatpush1.xpose.msra.mxu0 %v1077
        %1086 = vmatprep.subr.mxu0 0.0
        %1087 = vmatpush1.xpose.msra.mxu0 %v1074
        %1088 = vmatprep.subr.mxu0 0.0
        %1089 = vmatpush1.xpose.msra.mxu0 %v1071
        %1090 = vmatprep.subr.mxu0 0.0
        %1091 = vmatpush1.xpose.msra.mxu0 %v1068
        %1092 = vmatprep.subr.mxu0 0.0
        %1093 = vmatpush1.xpose.msra.mxu0 %v1065
        %1094 = vmatprep.subr.mxu0 0.0
        %1095 = vmatpush1.xpose.msra.mxu0 %v1062
        %1096 = vmatprep.subr.mxu0 0.0
        %1097 = vmatpush1.xpose.msra.mxu0 %v1059
        %1098 = vmatprep.subr.mxu0 0.0
        %1099 = vmatpush1.xpose.msra.mxu0 %v1056
        %1100 = vmatprep.subr.mxu0 0.0
        %1101 = vmatpush1.xpose.msra.mxu0 %v1053
        %1102 = vmatprep.subr.mxu0 0.0
        %1103 = vmatpush1.xpose.msra.mxu0 %v1050
        %1104 = vmatprep.subr.mxu0 0.0
        %1105 = vmatpush1.xpose.msra.mxu0 %v1047
        %1106 = vmatprep.subr.mxu0 0.0
        %1107 = vmatpush1.xpose.msra.mxu0 %v1044
        %1108 = vmatprep.subr.mxu0 0.0
        %1109 = vmatpush1.xpose.msra.mxu0 %v1041
        %1110 = vmatprep.subr.mxu0 0.0
        %1111 = vmatpush1.xpose.msra.mxu0 %v1038
        %1112 = vmatprep.subr.mxu0 0.0
        %1113 = vmatpush1.xpose.msra.mxu0 %v1035
        %1114 = vmatprep.subr.mxu0 0.0
        %1115 = vmatpush2.xpose.msra.mxu0 0.0
        %1116 = vmatprep.subr.mxu0 0.0
        %1117 = vmatpush2.xpose.msra.mxu0 0.0
        %1118 = vmatprep.subr.mxu0 0.0
        %1119 = vmatpush2.xpose.msra.mxu0 0.0
        %1120 = vmatprep.subr.mxu0 0.0
        %1121 = vmatpush2.xpose.msra.mxu0 0.0
        %1122 = vmatprep.subr.mxu0 0.0
        %1123 = vmatpush2.xpose.msra.mxu0 0.0
        %1124 = vmatprep.subr.mxu0 0.0
        %1125 = vmatpush2.xpose.msra.mxu0 0.0
        %1126 = vmatprep.subr.mxu0 0.0
        %1127 = vmatpush2.xpose.msra.mxu0 0.0
        %1128 = vmatprep.subr.mxu0 0.0
        %1129 = vmatpush2.xpose.msra.mxu0 0.0
        %1130 = vmatprep.subr.mxu0 0.0
        %1131 = vmatpush2.xpose.msra.mxu0 0.0
        %1132 = vmatprep.subr.mxu0 0.0
        %1133 = vmatpush2.xpose.msra.mxu0 0.0
        %1134 = vmatprep.subr.mxu0 0.0
        %1135 = vmatpush2.xpose.msra.mxu0 0.0
        %1136 = vmatprep.subr.mxu0 0.0
        %1137 = vmatpush2.xpose.msra.mxu0 0.0
        %1138 = vmatprep.subr.mxu0 0.0
        %1139 = vmatpush2.xpose.msra.mxu0 0.0
        %1140 = vmatprep.subr.mxu0 0.0
        %1141 = vmatpush2.xpose.msra.mxu0 0.0
        %1142 = vmatprep.subr.mxu0 0.0
        %1143 = vmatpush2.xpose.msra.mxu0 0.0
        %1144 = vmatprep.subr.mxu0 0.0
        %1145 = vmatpush2.xpose.msra.mxu0 0.0
        %1146 = vmatprep.mubr.f32.mxu0 0.0
        %1147 = vmatmul.mubr.f32.gmra.mxu0 %v1032
        %v1148 = vpop.f32.mrf.mxu0
        %v1149 = vadd.f32 0.0, %v1148
        %v1150 = vpop.f32.mrf.mxu0
        %1151 = vdwg.mxu0
        %v1152 = vld [vmem:[#allocation2] sm:$0xff]
        %v1153 = vld [vmem:[#allocation2 + $0x8] sm:$0xff]
        %v1154 = vld [vmem:[#allocation2 + $0x10] sm:$0xff]
        %v1155 = vld [vmem:[#allocation2 + $0x18] sm:$0xff]
        %v1156 = vld [vmem:[#allocation2 + $0x20] sm:$0xff]
        %v1157 = vld [vmem:[#allocation2 + $0x28] sm:$0xff]
        %v1158 = vld [vmem:[#allocation2 + $0x30] sm:$0xff]
        %v1159 = vld [vmem:[#allocation2 + $0x38] sm:$0xff]
        %v1160 = vld [vmem:[#allocation2 + $0x40] sm:$0xff]
        %v1161 = vld [vmem:[#allocation2 + $0x48] sm:$0xff]
        %v1162 = vld [vmem:[#allocation2 + $0x50] sm:$0xff]
        %v1163 = vld [vmem:[#allocation2 + $0x58] sm:$0xff]
        %v1164 = vld [vmem:[#allocation2 + $0x60] sm:$0xff]
        %v1165 = vld [vmem:[#allocation2 + $0x68] sm:$0xff]
        %v1166 = vld [vmem:[#allocation2 + $0x70] sm:$0xff]
        %v1167 = vld [vmem:[#allocation2 + $0x78] sm:$0xff]
        %1169 = vset.pattern.permute.xlu0 0
        %1170 = vperm.xlu0 %1169, %v1152
        %v1171 = vpop.permute.xlu0 %1170
        %1174 = vset.pattern.permute.xlu0 0
        %1175 = vperm.xlu0 %1174, %v1153
        %v1176 = vpop.permute.xlu0 %1175
        %1179 = vset.pattern.permute.xlu0 0
        %1180 = vperm.xlu0 %1179, %v1154
        %v1181 = vpop.permute.xlu0 %1180
        %1184 = vset.pattern.permute.xlu0 0
        %1185 = vperm.xlu0 %1184, %v1155
        %v1186 = vpop.permute.xlu0 %1185
        %1189 = vset.pattern.permute.xlu0 0
        %1190 = vperm.xlu0 %1189, %v1156
        %v1191 = vpop.permute.xlu0 %1190
        %1194 = vset.pattern.permute.xlu0 0
        %1195 = vperm.xlu0 %1194, %v1157
        %v1196 = vpop.permute.xlu0 %1195
        %1199 = vset.pattern.permute.xlu0 0
        %1200 = vperm.xlu0 %1199, %v1158
        %v1201 = vpop.permute.xlu0 %1200
        %1204 = vset.pattern.permute.xlu0 0
        %1205 = vperm.xlu0 %1204, %v1159
        %v1206 = vpop.permute.xlu0 %1205
        %1209 = vset.pattern.permute.xlu0 0
        %1210 = vperm.xlu0 %1209, %v1160
        %v1211 = vpop.permute.xlu0 %1210
        %1214 = vset.pattern.permute.xlu0 0
        %1215 = vperm.xlu0 %1214, %v1161
        %v1216 = vpop.permute.xlu0 %1215
        %1219 = vset.pattern.permute.xlu0 0
        %1220 = vperm.xlu0 %1219, %v1162
        %v1221 = vpop.permute.xlu0 %1220
        %1224 = vset.pattern.permute.xlu0 0
        %1225 = vperm.xlu0 %1224, %v1163
        %v1226 = vpop.permute.xlu0 %1225
        %1229 = vset.pattern.permute.xlu0 0
        %1230 = vperm.xlu0 %1229, %v1164
        %v1231 = vpop.permute.xlu0 %1230
        %1234 = vset.pattern.permute.xlu0 0
        %1235 = vperm.xlu0 %1234, %v1165
        %v1236 = vpop.permute.xlu0 %1235
        %1239 = vset.pattern.permute.xlu0 0
        %1240 = vperm.xlu0 %1239, %v1166
        %v1241 = vpop.permute.xlu0 %1240
        %1244 = vset.pattern.permute.xlu0 0
        %1245 = vperm.xlu0 %1244, %v1167
        %v1246 = vpop.permute.xlu0 %1245
        %v1248 = vlaneseq
        %v1249 = vshrl.u32 %v1248, 7
        %v1250 = vsub.s32 0, %v1249
        %v1251 = vrot.slane %v1149, %v1250
        %v1252 = vadd.f32 %v1171, %v1251
        %v1253 = vadd.f32 %v1176, %v1251
        %v1254 = vadd.f32 %v1181, %v1251
        %v1255 = vadd.f32 %v1186, %v1251
        %v1256 = vadd.f32 %v1191, %v1251
        %v1257 = vadd.f32 %v1196, %v1251
        %v1258 = vadd.f32 %v1201, %v1251
        %v1259 = vadd.f32 %v1206, %v1251
        %v1260 = vadd.f32 %v1211, %v1251
        %v1261 = vadd.f32 %v1216, %v1251
        %v1262 = vadd.f32 %v1221, %v1251
        %v1263 = vadd.f32 %v1226, %v1251
        %v1264 = vadd.f32 %v1231, %v1251
        %v1265 = vadd.f32 %v1236, %v1251
        %v1266 = vadd.f32 %v1241, %v1251
        %v1267 = vadd.f32 %v1246, %v1251
        %vm1268 = vcmp.gt.f32.partialorder %v1252, 0.0
        %vm1269 = vcmp.gt.f32.partialorder %v1253, 0.0
        %vm1270 = vcmp.gt.f32.partialorder %v1254, 0.0
        %vm1271 = vcmp.gt.f32.partialorder %v1255, 0.0
        %vm1272 = vcmp.gt.f32.partialorder %v1256, 0.0
        %vm1273 = vcmp.gt.f32.partialorder %v1257, 0.0
        %vm1274 = vcmp.gt.f32.partialorder %v1258, 0.0
        %vm1275 = vcmp.gt.f32.partialorder %v1259, 0.0
        %vm1276 = vcmp.gt.f32.partialorder %v1260, 0.0
        %vm1277 = vcmp.gt.f32.partialorder %v1261, 0.0
        %vm1278 = vcmp.gt.f32.partialorder %v1262, 0.0
        %vm1279 = vcmp.gt.f32.partialorder %v1263, 0.0
        %vm1280 = vcmp.gt.f32.partialorder %v1264, 0.0
        %vm1281 = vcmp.gt.f32.partialorder %v1265, 0.0
        %vm1282 = vcmp.gt.f32.partialorder %v1266, 0.0
        %vm1283 = vcmp.gt.f32.partialorder %v1267, 0.0
        %v1284 = vmul.f32 %v1252, 0.01
        %v1285 = vmul.f32 %v1253, 0.01
        %v1286 = vmul.f32 %v1254, 0.01
        %v1287 = vmul.f32 %v1255, 0.01
        %v1288 = vmul.f32 %v1256, 0.01
        %v1289 = vmul.f32 %v1257, 0.01
        %v1290 = vmul.f32 %v1258, 0.01
        %v1291 = vmul.f32 %v1259, 0.01
        %v1292 = vmul.f32 %v1260, 0.01
        %v1293 = vmul.f32 %v1261, 0.01
        %v1294 = vmul.f32 %v1262, 0.01
        %v1295 = vmul.f32 %v1263, 0.01
        %v1296 = vmul.f32 %v1264, 0.01
        %v1297 = vmul.f32 %v1265, 0.01
        %v1298 = vmul.f32 %v1266, 0.01
        %v1299 = vmul.f32 %v1267, 0.01
        %v1300 = vsel %vm1268, %v1252, %v1284
        %v1301 = vsel %vm1269, %v1253, %v1285
        %v1302 = vsel %vm1270, %v1254, %v1286
        %v1303 = vsel %vm1271, %v1255, %v1287
        %v1304 = vsel %vm1272, %v1256, %v1288
        %v1305 = vsel %vm1273, %v1257, %v1289
        %v1306 = vsel %vm1274, %v1258, %v1290
        %v1307 = vsel %vm1275, %v1259, %v1291
        %v1308 = vsel %vm1276, %v1260, %v1292
        %v1309 = vsel %vm1277, %v1261, %v1293
        %v1310 = vsel %vm1278, %v1262, %v1294
        %v1311 = vsel %vm1279, %v1263, %v1295
        %v1312 = vsel %vm1280, %v1264, %v1296
        %v1313 = vsel %vm1281, %v1265, %v1297
        %v1314 = vsel %vm1282, %v1266, %v1298
        %v1315 = vsel %vm1283, %v1267, %v1299
        %v1316 = vsel %vm1013, %v1300, -1e+30
        %v1317 = vsel %vm1014, %v1301, -1e+30
        %v1318 = vsel %vm1015, %v1302, -1e+30
        %v1319 = vsel %vm1016, %v1303, -1e+30
        %v1320 = vsel %vm1017, %v1304, -1e+30
        %v1321 = vsel %vm1018, %v1305, -1e+30
        %v1322 = vsel %vm1019, %v1306, -1e+30
        %v1323 = vsel %vm1020, %v1307, -1e+30
        %v1324 = vsel %vm1021, %v1308, -1e+30
        %v1325 = vsel %vm1022, %v1309, -1e+30
        %v1326 = vsel %vm1023, %v1310, -1e+30
        %v1327 = vsel %vm1024, %v1311, -1e+30
        %v1328 = vsel %vm1025, %v1312, -1e+30
        %v1329 = vsel %vm1026, %v1313, -1e+30
        %v1330 = vsel %vm1027, %v1314, -1e+30
        %v1331 = vsel %vm1028, %v1315, -1e+30
        %v1332 = vld [vmem:[#allocation3] sm:$0xff]
        %v1333 = vld [vmem:[#allocation3 + $0x8] sm:$0xff]
        %v1334 = vld [vmem:[#allocation3 + $0x10] sm:$0xff]
        %v1335 = vld [vmem:[#allocation3 + $0x18] sm:$0xff]
        %v1336 = vld [vmem:[#allocation3 + $0x20] sm:$0xff]
        %v1337 = vld [vmem:[#allocation3 + $0x28] sm:$0xff]
        %v1338 = vld [vmem:[#allocation3 + $0x30] sm:$0xff]
        %v1339 = vld [vmem:[#allocation3 + $0x38] sm:$0xff]
        %v1340 = vld [vmem:[#allocation3 + $0x40] sm:$0xff]
        %v1341 = vld [vmem:[#allocation3 + $0x48] sm:$0xff]
        %v1342 = vld [vmem:[#allocation3 + $0x50] sm:$0xff]
        %v1343 = vld [vmem:[#allocation3 + $0x58] sm:$0xff]
        %v1344 = vld [vmem:[#allocation3 + $0x60] sm:$0xff]
        %v1345 = vld [vmem:[#allocation3 + $0x68] sm:$0xff]
        %v1346 = vld [vmem:[#allocation3 + $0x70] sm:$0xff]
        %v1347 = vld [vmem:[#allocation3 + $0x78] sm:$0xff]
        %1348 = vmax.xlane.f32.xlu0 %v1316
        %v1349 = vpop.xlane.xlu0 %1348
        %1350 = vmax.xlane.f32.xlu0 %v1317
        %v1351 = vpop.xlane.xlu0 %1350
        %1352 = vmax.xlane.f32.xlu0 %v1318
        %v1353 = vpop.xlane.xlu0 %1352
        %1354 = vmax.xlane.f32.xlu0 %v1319
        %v1355 = vpop.xlane.xlu0 %1354
        %1356 = vmax.xlane.f32.xlu0 %v1320
        %v1357 = vpop.xlane.xlu0 %1356
        %1358 = vmax.xlane.f32.xlu0 %v1321
        %v1359 = vpop.xlane.xlu0 %1358
        %1360 = vmax.xlane.f32.xlu0 %v1322
        %v1361 = vpop.xlane.xlu0 %1360
        %1362 = vmax.xlane.f32.xlu0 %v1323
        %v1363 = vpop.xlane.xlu0 %1362
        %1364 = vmax.xlane.f32.xlu0 %v1324
        %v1365 = vpop.xlane.xlu0 %1364
        %1366 = vmax.xlane.f32.xlu0 %v1325
        %v1367 = vpop.xlane.xlu0 %1366
        %1368 = vmax.xlane.f32.xlu0 %v1326
        %v1369 = vpop.xlane.xlu0 %1368
        %1370 = vmax.xlane.f32.xlu0 %v1327
        %v1371 = vpop.xlane.xlu0 %1370
        %1372 = vmax.xlane.f32.xlu0 %v1328
        %v1373 = vpop.xlane.xlu0 %1372
        %1374 = vmax.xlane.f32.xlu0 %v1329
        %v1375 = vpop.xlane.xlu0 %1374
        %1376 = vmax.xlane.f32.xlu0 %v1330
        %v1377 = vpop.xlane.xlu0 %1376
        %1378 = vmax.xlane.f32.xlu0 %v1331
        %v1379 = vpop.xlane.xlu0 %1378
        %v1380 = vmax.f32 %v1332, %v1349
        %v1381 = vmax.f32 %v1333, %v1351
        %v1382 = vmax.f32 %v1334, %v1353
        %v1383 = vmax.f32 %v1335, %v1355
        %v1384 = vmax.f32 %v1336, %v1357
        %v1385 = vmax.f32 %v1337, %v1359
        %v1386 = vmax.f32 %v1338, %v1361
        %v1387 = vmax.f32 %v1339, %v1363
        %v1388 = vmax.f32 %v1340, %v1365
        %v1389 = vmax.f32 %v1341, %v1367
        %v1390 = vmax.f32 %v1342, %v1369
        %v1391 = vmax.f32 %v1343, %v1371
        %v1392 = vmax.f32 %v1344, %v1373
        %v1393 = vmax.f32 %v1345, %v1375
        %v1394 = vmax.f32 %v1346, %v1377
        %v1395 = vmax.f32 %v1347, %v1379
        %v1396 = vsub.f32 %v1332, %v1380
        %v1397 = vsub.f32 %v1333, %v1381
        %v1398 = vsub.f32 %v1334, %v1382
        %v1399 = vsub.f32 %v1335, %v1383
        %v1400 = vsub.f32 %v1336, %v1384
        %v1401 = vsub.f32 %v1337, %v1385
        %v1402 = vsub.f32 %v1338, %v1386
        %v1403 = vsub.f32 %v1339, %v1387
        %v1404 = vsub.f32 %v1340, %v1388
        %v1405 = vsub.f32 %v1341, %v1389
        %v1406 = vsub.f32 %v1342, %v1390
        %v1407 = vsub.f32 %v1343, %v1391
        %v1408 = vsub.f32 %v1344, %v1392
        %v1409 = vsub.f32 %v1345, %v1393
        %v1410 = vsub.f32 %v1346, %v1394
        %v1411 = vsub.f32 %v1347, %v1395
        %v1412 = vmul.f32 %v1396, 1.442695
        %v1413 = vpow.pop %v1412
        %v1414 = vmul.f32 %v1397, 1.442695
        %v1415 = vpow.pop %v1414
        %v1416 = vmul.f32 %v1398, 1.442695
        %v1417 = vpow.pop %v1416
        %v1418 = vmul.f32 %v1399, 1.442695
        %v1419 = vpow.pop %v1418
        %v1420 = vmul.f32 %v1400, 1.442695
        %v1421 = vpow.pop %v1420
        %v1422 = vmul.f32 %v1401, 1.442695
        %v1423 = vpow.pop %v1422
        %v1424 = vmul.f32 %v1402, 1.442695
        %v1425 = vpow.pop %v1424
        %v1426 = vmul.f32 %v1403, 1.442695
        %v1427 = vpow.pop %v1426
        %v1428 = vmul.f32 %v1404, 1.442695
        %v1429 = vpow.pop %v1428
        %v1430 = vmul.f32 %v1405, 1.442695
        %v1431 = vpow.pop %v1430
        %v1432 = vmul.f32 %v1406, 1.442695
        %v1433 = vpow.pop %v1432
        %v1434 = vmul.f32 %v1407, 1.442695
        %v1435 = vpow.pop %v1434
        %v1436 = vmul.f32 %v1408, 1.442695
        %v1437 = vpow.pop %v1436
        %v1438 = vmul.f32 %v1409, 1.442695
        %v1439 = vpow.pop %v1438
        %v1440 = vmul.f32 %v1410, 1.442695
        %v1441 = vpow.pop %v1440
        %v1442 = vmul.f32 %v1411, 1.442695
        %v1443 = vpow.pop %v1442
        %1445 = vset.pattern.permute.xlu0 0
        %1446 = vperm.xlu0 %1445, %v1380
        %v1447 = vpop.permute.xlu0 %1446
        %1450 = vset.pattern.permute.xlu0 0
        %1451 = vperm.xlu0 %1450, %v1381
        %v1452 = vpop.permute.xlu0 %1451
        %1455 = vset.pattern.permute.xlu0 0
        %1456 = vperm.xlu0 %1455, %v1382
        %v1457 = vpop.permute.xlu0 %1456
        %1460 = vset.pattern.permute.xlu0 0
        %1461 = vperm.xlu0 %1460, %v1383
        %v1462 = vpop.permute.xlu0 %1461
        %1465 = vset.pattern.permute.xlu0 0
        %1466 = vperm.xlu0 %1465, %v1384
        %v1467 = vpop.permute.xlu0 %1466
        %1470 = vset.pattern.permute.xlu0 0
        %1471 = vperm.xlu0 %1470, %v1385
        %v1472 = vpop.permute.xlu0 %1471
        %1475 = vset.pattern.permute.xlu0 0
        %1476 = vperm.xlu0 %1475, %v1386
        %v1477 = vpop.permute.xlu0 %1476
        %1480 = vset.pattern.permute.xlu0 0
        %1481 = vperm.xlu0 %1480, %v1387
        %v1482 = vpop.permute.xlu0 %1481
        %1485 = vset.pattern.permute.xlu0 0
        %1486 = vperm.xlu0 %1485, %v1388
        %v1487 = vpop.permute.xlu0 %1486
        %1490 = vset.pattern.permute.xlu0 0
        %1491 = vperm.xlu0 %1490, %v1389
        %v1492 = vpop.permute.xlu0 %1491
        %1495 = vset.pattern.permute.xlu0 0
        %1496 = vperm.xlu0 %1495, %v1390
        %v1497 = vpop.permute.xlu0 %1496
        %1500 = vset.pattern.permute.xlu0 0
        %1501 = vperm.xlu0 %1500, %v1391
        %v1502 = vpop.permute.xlu0 %1501
        %1505 = vset.pattern.permute.xlu0 0
        %1506 = vperm.xlu0 %1505, %v1392
        %v1507 = vpop.permute.xlu0 %1506
        %1510 = vset.pattern.permute.xlu0 0
        %1511 = vperm.xlu0 %1510, %v1393
        %v1512 = vpop.permute.xlu0 %1511
        %1515 = vset.pattern.permute.xlu0 0
        %1516 = vperm.xlu0 %1515, %v1394
        %v1517 = vpop.permute.xlu0 %1516
        %1520 = vset.pattern.permute.xlu0 0
        %1521 = vperm.xlu0 %1520, %v1395
        %v1522 = vpop.permute.xlu0 %1521
        %v1524 = vsub.f32 %v1316, %v1447
        %v1525 = vsub.f32 %v1317, %v1452
        %v1526 = vsub.f32 %v1318, %v1457
        %v1527 = vsub.f32 %v1319, %v1462
        %v1528 = vsub.f32 %v1320, %v1467
        %v1529 = vsub.f32 %v1321, %v1472
        %v1530 = vsub.f32 %v1322, %v1477
        %v1531 = vsub.f32 %v1323, %v1482
        %v1532 = vsub.f32 %v1324, %v1487
        %v1533 = vsub.f32 %v1325, %v1492
        %v1534 = vsub.f32 %v1326, %v1497
        %v1535 = vsub.f32 %v1327, %v1502
        %v1536 = vsub.f32 %v1328, %v1507
        %v1537 = vsub.f32 %v1329, %v1512
        %v1538 = vsub.f32 %v1330, %v1517
        %v1539 = vsub.f32 %v1331, %v1522
        %v1540 = vmul.f32 %v1524, 1.442695
        %v1541 = vpow.pop %v1540
        %v1542 = vmul.f32 %v1525, 1.442695
        %v1543 = vpow.pop %v1542
        %v1544 = vmul.f32 %v1526, 1.442695
        %v1545 = vpow.pop %v1544
        %v1546 = vmul.f32 %v1527, 1.442695
        %v1547 = vpow.pop %v1546
        %v1548 = vmul.f32 %v1528, 1.442695
        %v1549 = vpow.pop %v1548
        %v1550 = vmul.f32 %v1529, 1.442695
        %v1551 = vpow.pop %v1550
        %v1552 = vmul.f32 %v1530, 1.442695
        %v1553 = vpow.pop %v1552
        %v1554 = vmul.f32 %v1531, 1.442695
        %v1555 = vpow.pop %v1554
        %v1556 = vmul.f32 %v1532, 1.442695
        %v1557 = vpow.pop %v1556
        %v1558 = vmul.f32 %v1533, 1.442695
        %v1559 = vpow.pop %v1558
        %v1560 = vmul.f32 %v1534, 1.442695
        %v1561 = vpow.pop %v1560
        %v1562 = vmul.f32 %v1535, 1.442695
        %v1563 = vpow.pop %v1562
        %v1564 = vmul.f32 %v1536, 1.442695
        %v1565 = vpow.pop %v1564
        %v1566 = vmul.f32 %v1537, 1.442695
        %v1567 = vpow.pop %v1566
        %v1568 = vmul.f32 %v1538, 1.442695
        %v1569 = vpow.pop %v1568
        %v1570 = vmul.f32 %v1539, 1.442695
        %v1571 = vpow.pop %v1570
        %v1572 = vsel %vm1013, %v1541, 0.0
        %v1573 = vsel %vm1014, %v1543, 0.0
        %v1574 = vsel %vm1015, %v1545, 0.0
        %v1575 = vsel %vm1016, %v1547, 0.0
        %v1576 = vsel %vm1017, %v1549, 0.0
        %v1577 = vsel %vm1018, %v1551, 0.0
        %v1578 = vsel %vm1019, %v1553, 0.0
        %v1579 = vsel %vm1020, %v1555, 0.0
        %v1580 = vsel %vm1021, %v1557, 0.0
        %v1581 = vsel %vm1022, %v1559, 0.0
        %v1582 = vsel %vm1023, %v1561, 0.0
        %v1583 = vsel %vm1024, %v1563, 0.0
        %v1584 = vsel %vm1025, %v1565, 0.0
        %v1585 = vsel %vm1026, %v1567, 0.0
        %v1586 = vsel %vm1027, %v1569, 0.0
        %v1587 = vsel %vm1028, %v1571, 0.0
        %v1588 = vld [vmem:[#allocation4] sm:$0xff]
        %v1589 = vld [vmem:[#allocation4 + $0x8] sm:$0xff]
        %v1590 = vld [vmem:[#allocation4 + $0x10] sm:$0xff]
        %v1591 = vld [vmem:[#allocation4 + $0x18] sm:$0xff]
        %v1592 = vld [vmem:[#allocation4 + $0x20] sm:$0xff]
        %v1593 = vld [vmem:[#allocation4 + $0x28] sm:$0xff]
        %v1594 = vld [vmem:[#allocation4 + $0x30] sm:$0xff]
        %v1595 = vld [vmem:[#allocation4 + $0x38] sm:$0xff]
        %v1596 = vld [vmem:[#allocation4 + $0x40] sm:$0xff]
        %v1597 = vld [vmem:[#allocation4 + $0x48] sm:$0xff]
        %v1598 = vld [vmem:[#allocation4 + $0x50] sm:$0xff]
        %v1599 = vld [vmem:[#allocation4 + $0x58] sm:$0xff]
        %v1600 = vld [vmem:[#allocation4 + $0x60] sm:$0xff]
        %v1601 = vld [vmem:[#allocation4 + $0x68] sm:$0xff]
        %v1602 = vld [vmem:[#allocation4 + $0x70] sm:$0xff]
        %v1603 = vld [vmem:[#allocation4 + $0x78] sm:$0xff]
        %v1604 = vmul.f32 %v1413, %v1588
        %v1605 = vmul.f32 %v1415, %v1589
        %v1606 = vmul.f32 %v1417, %v1590
        %v1607 = vmul.f32 %v1419, %v1591
        %v1608 = vmul.f32 %v1421, %v1592
        %v1609 = vmul.f32 %v1423, %v1593
        %v1610 = vmul.f32 %v1425, %v1594
        %v1611 = vmul.f32 %v1427, %v1595
        %v1612 = vmul.f32 %v1429, %v1596
        %v1613 = vmul.f32 %v1431, %v1597
        %v1614 = vmul.f32 %v1433, %v1598
        %v1615 = vmul.f32 %v1435, %v1599
        %v1616 = vmul.f32 %v1437, %v1600
        %v1617 = vmul.f32 %v1439, %v1601
        %v1618 = vmul.f32 %v1441, %v1602
        %v1619 = vmul.f32 %v1443, %v1603
        %1620 = vadd.xlane.f32.xlu0 %v1572
        %v1621 = vpop.xlane.xlu0 %1620
        %1622 = vadd.xlane.f32.xlu0 %v1573
        %v1623 = vpop.xlane.xlu0 %1622
        %1624 = vadd.xlane.f32.xlu0 %v1574
        %v1625 = vpop.xlane.xlu0 %1624
        %1626 = vadd.xlane.f32.xlu0 %v1575
        %v1627 = vpop.xlane.xlu0 %1626
        %1628 = vadd.xlane.f32.xlu0 %v1576
        %v1629 = vpop.xlane.xlu0 %1628
        %1630 = vadd.xlane.f32.xlu0 %v1577
        %v1631 = vpop.xlane.xlu0 %1630
        %1632 = vadd.xlane.f32.xlu0 %v1578
        %v1633 = vpop.xlane.xlu0 %1632
        %1634 = vadd.xlane.f32.xlu0 %v1579
        %v1635 = vpop.xlane.xlu0 %1634
        %1636 = vadd.xlane.f32.xlu0 %v1580
        %v1637 = vpop.xlane.xlu0 %1636
        %1638 = vadd.xlane.f32.xlu0 %v1581
        %v1639 = vpop.xlane.xlu0 %1638
        %1640 = vadd.xlane.f32.xlu0 %v1582
        %v1641 = vpop.xlane.xlu0 %1640
        %1642 = vadd.xlane.f32.xlu0 %v1583
        %v1643 = vpop.xlane.xlu0 %1642
        %1644 = vadd.xlane.f32.xlu0 %v1584
        %v1645 = vpop.xlane.xlu0 %1644
        %1646 = vadd.xlane.f32.xlu0 %v1585
        %v1647 = vpop.xlane.xlu0 %1646
        %1648 = vadd.xlane.f32.xlu0 %v1586
        %v1649 = vpop.xlane.xlu0 %1648
        %1650 = vadd.xlane.f32.xlu0 %v1587
        %v1651 = vpop.xlane.xlu0 %1650
        %v1652 = vadd.f32 %v1604, %v1621
        %v1653 = vadd.f32 %v1605, %v1623
        %v1654 = vadd.f32 %v1606, %v1625
        %v1655 = vadd.f32 %v1607, %v1627
        %v1656 = vadd.f32 %v1608, %v1629
        %v1657 = vadd.f32 %v1609, %v1631
        %v1658 = vadd.f32 %v1610, %v1633
        %v1659 = vadd.f32 %v1611, %v1635
        %v1660 = vadd.f32 %v1612, %v1637
        %v1661 = vadd.f32 %v1613, %v1639
        %v1662 = vadd.f32 %v1614, %v1641
        %v1663 = vadd.f32 %v1615, %v1643
        %v1664 = vadd.f32 %v1616, %v1645
        %v1665 = vadd.f32 %v1617, %v1647
        %v1666 = vadd.f32 %v1618, %v1649
        %v1667 = vadd.f32 %v1619, %v1651
        %vm1668 = vcmask 7168
        %1669 = vst.msk [vmem:[#allocation4] sm:$0xff] %vm1668, %v1652
        %1670 = vst.msk [vmem:[#allocation4 + $0x8] sm:$0xff] %vm1668, %v1653
        %1671 = vst.msk [vmem:[#allocation4 + $0x10] sm:$0xff] %vm1668, %v1654
        %1672 = vst.msk [vmem:[#allocation4 + $0x18] sm:$0xff] %vm1668, %v1655
        %1673 = vst.msk [vmem:[#allocation4 + $0x20] sm:$0xff] %vm1668, %v1656
        %1674 = vst.msk [vmem:[#allocation4 + $0x28] sm:$0xff] %vm1668, %v1657
        %1675 = vst.msk [vmem:[#allocation4 + $0x30] sm:$0xff] %vm1668, %v1658
        %1676 = vst.msk [vmem:[#allocation4 + $0x38] sm:$0xff] %vm1668, %v1659
        %1677 = vst.msk [vmem:[#allocation4 + $0x40] sm:$0xff] %vm1668, %v1660
        %1678 = vst.msk [vmem:[#allocation4 + $0x48] sm:$0xff] %vm1668, %v1661
        %1679 = vst.msk [vmem:[#allocation4 + $0x50] sm:$0xff] %vm1668, %v1662
        %1680 = vst.msk [vmem:[#allocation4 + $0x58] sm:$0xff] %vm1668, %v1663
        %1681 = vst.msk [vmem:[#allocation4 + $0x60] sm:$0xff] %vm1668, %v1664
        %1682 = vst.msk [vmem:[#allocation4 + $0x68] sm:$0xff] %vm1668, %v1665
        %1683 = vst.msk [vmem:[#allocation4 + $0x70] sm:$0xff] %vm1668, %v1666
        %1684 = vst.msk [vmem:[#allocation4 + $0x78] sm:$0xff] %vm1668, %v1667
        %v1685 = vld [vmem:[#allocation5] sm:$0xff]
        %v1686 = vld [vmem:[#allocation5 + $0x8] sm:$0xff]
        %v1687 = vld [vmem:[#allocation5 + $0x10] sm:$0xff]
        %v1688 = vld [vmem:[#allocation5 + $0x18] sm:$0xff]
        %v1689 = vld [vmem:[#allocation5 + $0x20] sm:$0xff]
        %v1690 = vld [vmem:[#allocation5 + $0x28] sm:$0xff]
        %v1691 = vld [vmem:[#allocation5 + $0x30] sm:$0xff]
        %v1692 = vld [vmem:[#allocation5 + $0x38] sm:$0xff]
        %v1693 = vld [vmem:[#allocation5 + $0x40] sm:$0xff]
        %v1694 = vld [vmem:[#allocation5 + $0x48] sm:$0xff]
        %v1695 = vld [vmem:[#allocation5 + $0x50] sm:$0xff]
        %v1696 = vld [vmem:[#allocation5 + $0x58] sm:$0xff]
        %v1697 = vld [vmem:[#allocation5 + $0x60] sm:$0xff]
        %v1698 = vld [vmem:[#allocation5 + $0x68] sm:$0xff]
        %v1699 = vld [vmem:[#allocation5 + $0x70] sm:$0xff]
        %v1700 = vld [vmem:[#allocation5 + $0x78] sm:$0xff]
        %1702 = vset.pattern.permute.xlu0 0
        %1703 = vperm.xlu0 %1702, %v1413
        %v1704 = vpop.permute.xlu0 %1703
        %1707 = vset.pattern.permute.xlu0 0
        %1708 = vperm.xlu0 %1707, %v1415
        %v1709 = vpop.permute.xlu0 %1708
        %1712 = vset.pattern.permute.xlu0 0
        %1713 = vperm.xlu0 %1712, %v1417
        %v1714 = vpop.permute.xlu0 %1713
        %1717 = vset.pattern.permute.xlu0 0
        %1718 = vperm.xlu0 %1717, %v1419
        %v1719 = vpop.permute.xlu0 %1718
        %1722 = vset.pattern.permute.xlu0 0
        %1723 = vperm.xlu0 %1722, %v1421
        %v1724 = vpop.permute.xlu0 %1723
        %1727 = vset.pattern.permute.xlu0 0
        %1728 = vperm.xlu0 %1727, %v1423
        %v1729 = vpop.permute.xlu0 %1728
        %1732 = vset.pattern.permute.xlu0 0
        %1733 = vperm.xlu0 %1732, %v1425
        %v1734 = vpop.permute.xlu0 %1733
        %1737 = vset.pattern.permute.xlu0 0
        %1738 = vperm.xlu0 %1737, %v1427
        %v1739 = vpop.permute.xlu0 %1738
        %1742 = vset.pattern.permute.xlu0 0
        %1743 = vperm.xlu0 %1742, %v1429
        %v1744 = vpop.permute.xlu0 %1743
        %1747 = vset.pattern.permute.xlu0 0
        %1748 = vperm.xlu0 %1747, %v1431
        %v1749 = vpop.permute.xlu0 %1748
        %1752 = vset.pattern.permute.xlu0 0
        %1753 = vperm.xlu0 %1752, %v1433
        %v1754 = vpop.permute.xlu0 %1753
        %1757 = vset.pattern.permute.xlu0 0
        %1758 = vperm.xlu0 %1757, %v1435
        %v1759 = vpop.permute.xlu0 %1758
        %1762 = vset.pattern.permute.xlu0 0
        %1763 = vperm.xlu0 %1762, %v1437
        %v1764 = vpop.permute.xlu0 %1763
        %1767 = vset.pattern.permute.xlu0 0
        %1768 = vperm.xlu0 %1767, %v1439
        %v1769 = vpop.permute.xlu0 %1768
        %1772 = vset.pattern.permute.xlu0 0
        %1773 = vperm.xlu0 %1772, %v1441
        %v1774 = vpop.permute.xlu0 %1773
        %1777 = vset.pattern.permute.xlu0 0
        %1778 = vperm.xlu0 %1777, %v1443
        %v1779 = vpop.permute.xlu0 %1778
        %v1781 = vmul.f32 %v1704, %v1685
        %v1782 = vmul.f32 %v1709, %v1686
        %v1783 = vmul.f32 %v1714, %v1687
        %v1784 = vmul.f32 %v1719, %v1688
        %v1785 = vmul.f32 %v1724, %v1689
        %v1786 = vmul.f32 %v1729, %v1690
        %v1787 = vmul.f32 %v1734, %v1691
        %v1788 = vmul.f32 %v1739, %v1692
        %v1789 = vmul.f32 %v1744, %v1693
        %v1790 = vmul.f32 %v1749, %v1694
        %v1791 = vmul.f32 %v1754, %v1695
        %v1792 = vmul.f32 %v1759, %v1696
        %v1793 = vmul.f32 %v1764, %v1697
        %v1794 = vmul.f32 %v1769, %v1698
        %v1795 = vmul.f32 %v1774, %v1699
        %v1796 = vmul.f32 %v1779, %v1700
        %v1797 = vpack.c.bf16 %v1573, %v1572
        %v1798 = vpack.c.bf16 %v1575, %v1574
        %v1799 = vpack.c.bf16 %v1577, %v1576
        %v1800 = vpack.c.bf16 %v1579, %v1578
        %v1801 = vpack.c.bf16 %v1581, %v1580
        %v1802 = vpack.c.bf16 %v1583, %v1582
        %v1803 = vpack.c.bf16 %v1585, %v1584
        %v1804 = vpack.c.bf16 %v1587, %v1586
        %v1805 = vpack.c.bf16 %v918, %v915
        %v1806 = vpack.c.bf16 %v926, %v923
        %v1807 = vpack.c.bf16 %v934, %v931
        %v1808 = vpack.c.bf16 %v942, %v939
        %v1809 = vpack.c.bf16 %v950, %v947
        %v1810 = vpack.c.bf16 %v958, %v955
        %v1811 = vpack.c.bf16 %v966, %v963
        %v1812 = vpack.c.bf16 %v974, %v971
        %1813 = vmatprep.subr.bf16.mxu0 0
        %1814 = vmatpush1.bf16.msra.mxu0 %v1812
        %1815 = vmatprep.subr.bf16.mxu0 0
        %1816 = vmatpush1.bf16.msra.mxu0 %v1811
        %1817 = vmatprep.subr.bf16.mxu0 0
        %1818 = vmatpush1.bf16.msra.mxu0 %v1810
        %1819 = vmatprep.subr.bf16.mxu0 0
        %1820 = vmatpush1.bf16.msra.mxu0 %v1809
        %1821 = vmatprep.subr.bf16.mxu0 0
        %1822 = vmatpush1.bf16.msra.mxu0 %v1808
        %1823 = vmatprep.subr.bf16.mxu0 0
        %1824 = vmatpush1.bf16.msra.mxu0 %v1807
        %1825 = vmatprep.subr.bf16.mxu0 0
        %1826 = vmatpush1.bf16.msra.mxu0 %v1806
        %1827 = vmatprep.subr.bf16.mxu0 0
        %1828 = vmatpush1.bf16.msra.mxu0 %v1805
        %1829 = vmatprep.subr.bf16.mxu0 0
        %1830 = vmatpush2.bf16.msra.mxu0 0
        %1831 = vmatprep.subr.bf16.mxu0 0
        %1832 = vmatpush2.bf16.msra.mxu0 0
        %1833 = vmatprep.subr.bf16.mxu0 0
        %1834 = vmatpush2.bf16.msra.mxu0 0
        %1835 = vmatprep.subr.bf16.mxu0 0
        %1836 = vmatpush2.bf16.msra.mxu0 0
        %1837 = vmatprep.subr.bf16.mxu0 0
        %1838 = vmatpush2.bf16.msra.mxu0 0
        %1839 = vmatprep.subr.bf16.mxu0 0
        %1840 = vmatpush2.bf16.msra.mxu0 0
        %1841 = vmatprep.subr.bf16.mxu0 0
        %1842 = vmatpush2.bf16.msra.mxu0 0
        %1843 = vmatprep.subr.bf16.mxu0 0
        %1844 = vmatpush2.bf16.msra.mxu0 0
        %1845 = vmatprep.mubr.bf16.mxu0 0
        %1846 = vmatmul.mubr.bf16.gmra.mxu0 %v1797
        %v1847 = vpop.f32.mrf.mxu0
        %v1848 = vadd.f32 0.0, %v1847
        %v1849 = vpop.f32.mrf.mxu0
        %v1850 = vpop.f32.mrf.mxu0
        %v1851 = vadd.f32 0.0, %v1850
        %v1852 = vpop.f32.mrf.mxu0
        %1853 = vmatprep.mubr.bf16.mxu0 0
        %1854 = vmatmul.mubr.bf16.gmra.mxu0 %v1798
        %v1855 = vpop.f32.mrf.mxu0
        %v1856 = vadd.f32 0.0, %v1855
        %v1857 = vpop.f32.mrf.mxu0
        %v1858 = vpop.f32.mrf.mxu0
        %v1859 = vadd.f32 0.0, %v1858
        %v1860 = vpop.f32.mrf.mxu0
        %1861 = vmatprep.mubr.bf16.mxu0 0
        %1862 = vmatmul.mubr.bf16.gmra.mxu0 %v1799
        %v1863 = vpop.f32.mrf.mxu0
        %v1864 = vadd.f32 0.0, %v1863
        %v1865 = vpop.f32.mrf.mxu0
        %v1866 = vpop.f32.mrf.mxu0
        %v1867 = vadd.f32 0.0, %v1866
        %v1868 = vpop.f32.mrf.mxu0
        %1869 = vmatprep.mubr.bf16.mxu0 0
        %1870 = vmatmul.mubr.bf16.gmra.mxu0 %v1800
        %v1871 = vpop.f32.mrf.mxu0
        %v1872 = vadd.f32 0.0, %v1871
        %v1873 = vpop.f32.mrf.mxu0
        %v1874 = vpop.f32.mrf.mxu0
        %v1875 = vadd.f32 0.0, %v1874
        %v1876 = vpop.f32.mrf.mxu0
        %1877 = vmatprep.mubr.bf16.mxu0 0
        %1878 = vmatmul.mubr.bf16.gmra.mxu0 %v1801
        %v1879 = vpop.f32.mrf.mxu0
        %v1880 = vadd.f32 0.0, %v1879
        %v1881 = vpop.f32.mrf.mxu0
        %v1882 = vpop.f32.mrf.mxu0
        %v1883 = vadd.f32 0.0, %v1882
        %v1884 = vpop.f32.mrf.mxu0
        %1885 = vmatprep.mubr.bf16.mxu0 0
        %1886 = vmatmul.mubr.bf16.gmra.mxu0 %v1802
        %v1887 = vpop.f32.mrf.mxu0
        %v1888 = vadd.f32 0.0, %v1887
        %v1889 = vpop.f32.mrf.mxu0
        %v1890 = vpop.f32.mrf.mxu0
        %v1891 = vadd.f32 0.0, %v1890
        %v1892 = vpop.f32.mrf.mxu0
        %1893 = vmatprep.mubr.bf16.mxu0 0
        %1894 = vmatmul.mubr.bf16.gmra.mxu0 %v1803
        %v1895 = vpop.f32.mrf.mxu0
        %v1896 = vadd.f32 0.0, %v1895
        %v1897 = vpop.f32.mrf.mxu0
        %v1898 = vpop.f32.mrf.mxu0
        %v1899 = vadd.f32 0.0, %v1898
        %v1900 = vpop.f32.mrf.mxu0
        %1901 = vmatprep.mubr.bf16.mxu0 0
        %1902 = vmatmul.mubr.bf16.gmra.mxu0 %v1804
        %v1903 = vpop.f32.mrf.mxu0
        %v1904 = vadd.f32 0.0, %v1903
        %v1905 = vpop.f32.mrf.mxu0
        %v1906 = vpop.f32.mrf.mxu0
        %v1907 = vadd.f32 0.0, %v1906
        %v1908 = vpop.f32.mrf.mxu0
        %1909 = vdwg.mxu0
        %v1910 = vadd.f32 %v1781, %v1848
        %v1911 = vadd.f32 %v1782, %v1851
        %v1912 = vadd.f32 %v1783, %v1856
        %v1913 = vadd.f32 %v1784, %v1859
        %v1914 = vadd.f32 %v1785, %v1864
        %v1915 = vadd.f32 %v1786, %v1867
        %v1916 = vadd.f32 %v1787, %v1872
        %v1917 = vadd.f32 %v1788, %v1875
        %v1918 = vadd.f32 %v1789, %v1880
        %v1919 = vadd.f32 %v1790, %v1883
        %v1920 = vadd.f32 %v1791, %v1888
        %v1921 = vadd.f32 %v1792, %v1891
        %v1922 = vadd.f32 %v1793, %v1896
        %v1923 = vadd.f32 %v1794, %v1899
        %v1924 = vadd.f32 %v1795, %v1904
        %v1925 = vadd.f32 %v1796, %v1907
        %1926 = vst.msk [vmem:[#allocation5] sm:$0xff] %vm1030, %v1910
        %1927 = vst.msk [vmem:[#allocation5 + $0x8] sm:$0xff] %vm1030, %v1911
        %1928 = vst.msk [vmem:[#allocation5 + $0x10] sm:$0xff] %vm1030, %v1912
        %1929 = vst.msk [vmem:[#allocation5 + $0x18] sm:$0xff] %vm1030, %v1913
        %1930 = vst.msk [vmem:[#allocation5 + $0x20] sm:$0xff] %vm1030, %v1914
        %1931 = vst.msk [vmem:[#allocation5 + $0x28] sm:$0xff] %vm1030, %v1915
        %1932 = vst.msk [vmem:[#allocation5 + $0x30] sm:$0xff] %vm1030, %v1916
        %1933 = vst.msk [vmem:[#allocation5 + $0x38] sm:$0xff] %vm1030, %v1917
        %1934 = vst.msk [vmem:[#allocation5 + $0x40] sm:$0xff] %vm1030, %v1918
        %1935 = vst.msk [vmem:[#allocation5 + $0x48] sm:$0xff] %vm1030, %v1919
        %1936 = vst.msk [vmem:[#allocation5 + $0x50] sm:$0xff] %vm1030, %v1920
        %1937 = vst.msk [vmem:[#allocation5 + $0x58] sm:$0xff] %vm1030, %v1921
        %1938 = vst.msk [vmem:[#allocation5 + $0x60] sm:$0xff] %vm1030, %v1922
        %1939 = vst.msk [vmem:[#allocation5 + $0x68] sm:$0xff] %vm1030, %v1923
        %1940 = vst.msk [vmem:[#allocation5 + $0x70] sm:$0xff] %vm1030, %v1924
        %1941 = vst.msk [vmem:[#allocation5 + $0x78] sm:$0xff] %vm1030, %v1925
        %1942 = vst.msk [vmem:[#allocation3] sm:$0xff] %vm1668, %v1380
        %1943 = vst.msk [vmem:[#allocation3 + $0x8] sm:$0xff] %vm1668, %v1381
        %1944 = vst.msk [vmem:[#allocation3 + $0x10] sm:$0xff] %vm1668, %v1382
        %1945 = vst.msk [vmem:[#allocation3 + $0x18] sm:$0xff] %vm1668, %v1383
        %1946 = vst.msk [vmem:[#allocation3 + $0x20] sm:$0xff] %vm1668, %v1384
        %1947 = vst.msk [vmem:[#allocation3 + $0x28] sm:$0xff] %vm1668, %v1385
        %1948 = vst.msk [vmem:[#allocation3 + $0x30] sm:$0xff] %vm1668, %v1386
        %1949 = vst.msk [vmem:[#allocation3 + $0x38] sm:$0xff] %vm1668, %v1387
        %1950 = vst.msk [vmem:[#allocation3 + $0x40] sm:$0xff] %vm1668, %v1388
        %1951 = vst.msk [vmem:[#allocation3 + $0x48] sm:$0xff] %vm1668, %v1389
        %1952 = vst.msk [vmem:[#allocation3 + $0x50] sm:$0xff] %vm1668, %v1390
        %1953 = vst.msk [vmem:[#allocation3 + $0x58] sm:$0xff] %vm1668, %v1391
        %1954 = vst.msk [vmem:[#allocation3 + $0x60] sm:$0xff] %vm1668, %v1392
        %1955 = vst.msk [vmem:[#allocation3 + $0x68] sm:$0xff] %vm1668, %v1393
        %1956 = vst.msk [vmem:[#allocation3 + $0x70] sm:$0xff] %vm1668, %v1394
        %1957 = vst.msk [vmem:[#allocation3 + $0x78] sm:$0xff] %vm1668, %v1395
        %v1958 = vld [vmem:[%s3 + $0x1] sm:$0x1]
        %1959 = vrot.lane.b32.xlu0 %v915, 112
        %v1960 = vpop.permute.xlu0 %1959
        %1961 = vrot.lane.b32.xlu0 %v918, 112
        %v1962 = vpop.permute.xlu0 %1961
        %1963 = vrot.lane.b32.xlu0 %v923, 112
        %v1964 = vpop.permute.xlu0 %1963
        %1965 = vrot.lane.b32.xlu0 %v926, 112
        %v1966 = vpop.permute.xlu0 %1965
        %1967 = vrot.lane.b32.xlu0 %v931, 112
        %v1968 = vpop.permute.xlu0 %1967
        %1969 = vrot.lane.b32.xlu0 %v934, 112
        %v1970 = vpop.permute.xlu0 %1969
        %1971 = vrot.lane.b32.xlu0 %v939, 112
        %v1972 = vpop.permute.xlu0 %1971
        %1973 = vrot.lane.b32.xlu0 %v942, 112
        %v1974 = vpop.permute.xlu0 %1973
        %1975 = vrot.lane.b32.xlu0 %v947, 112
        %v1976 = vpop.permute.xlu0 %1975
        %1977 = vrot.lane.b32.xlu0 %v950, 112
        %v1978 = vpop.permute.xlu0 %1977
        %1979 = vrot.lane.b32.xlu0 %v955, 112
        %v1980 = vpop.permute.xlu0 %1979
        %1981 = vrot.lane.b32.xlu0 %v958, 112
        %v1982 = vpop.permute.xlu0 %1981
        %1983 = vrot.lane.b32.xlu0 %v963, 112
        %v1984 = vpop.permute.xlu0 %1983
        %1985 = vrot.lane.b32.xlu0 %v966, 112
        %v1986 = vpop.permute.xlu0 %1985
        %1987 = vrot.lane.b32.xlu0 %v971, 112
        %v1988 = vpop.permute.xlu0 %1987
        %1989 = vrot.lane.b32.xlu0 %v974, 112
        %v1990 = vpop.permute.xlu0 %1989
        %v1992 = vsel %vm1030, %v1958, 0
        %v1994 = vsel %vm1030, %v1960, 0
        %v1996 = vsel %vm1030, %v1962, 0
        %v1998 = vsel %vm1030, %v1964, 0
        %v2000 = vsel %vm1030, %v1966, 0
        %v2002 = vsel %vm1030, %v1968, 0
        %v2004 = vsel %vm1030, %v1970, 0
        %v2006 = vsel %vm1030, %v1972, 0
        %v2008 = vsel %vm1030, %v1974, 0
        %v2010 = vsel %vm1030, %v1976, 0
        %v2012 = vsel %vm1030, %v1978, 0
        %v2014 = vsel %vm1030, %v1980, 0
        %v2016 = vsel %vm1030, %v1982, 0
        %v2018 = vsel %vm1030, %v1984, 0
        %v2020 = vsel %vm1030, %v1986, 0
        %v2022 = vsel %vm1030, %v1988, 0
        %v2024 = vsel %vm1030, %v1990, 0
        %2026 = vmatprep.subr.mxu0 0.0
        %2027 = vmatpush1.xpose.msra.mxu0 %v2024
        %2028 = vmatprep.subr.mxu0 0.0
        %2029 = vmatpush1.xpose.msra.mxu0 %v2022
        %2030 = vmatprep.subr.mxu0 0.0
        %2031 = vmatpush1.xpose.msra.mxu0 %v2020
        %2032 = vmatprep.subr.mxu0 0.0
        %2033 = vmatpush1.xpose.msra.mxu0 %v2018
        %2034 = vmatprep.subr.mxu0 0.0
        %2035 = vmatpush1.xpose.msra.mxu0 %v2016
        %2036 = vmatprep.subr.mxu0 0.0
        %2037 = vmatpush1.xpose.msra.mxu0 %v2014
        %2038 = vmatprep.subr.mxu0 0.0
        %2039 = vmatpush1.xpose.msra.mxu0 %v2012
        %2040 = vmatprep.subr.mxu0 0.0
        %2041 = vmatpush1.xpose.msra.mxu0 %v2010
        %2042 = vmatprep.subr.mxu0 0.0
        %2043 = vmatpush1.xpose.msra.mxu0 %v2008
        %2044 = vmatprep.subr.mxu0 0.0
        %2045 = vmatpush1.xpose.msra.mxu0 %v2006
        %2046 = vmatprep.subr.mxu0 0.0
        %2047 = vmatpush1.xpose.msra.mxu0 %v2004
        %2048 = vmatprep.subr.mxu0 0.0
        %2049 = vmatpush1.xpose.msra.mxu0 %v2002
        %2050 = vmatprep.subr.mxu0 0.0
        %2051 = vmatpush1.xpose.msra.mxu0 %v2000
        %2052 = vmatprep.subr.mxu0 0.0
        %2053 = vmatpush1.xpose.msra.mxu0 %v1998
        %2054 = vmatprep.subr.mxu0 0.0
        %2055 = vmatpush1.xpose.msra.mxu0 %v1996
        %2056 = vmatprep.subr.mxu0 0.0
        %2057 = vmatpush1.xpose.msra.mxu0 %v1994
        %2058 = vmatprep.subr.mxu0 0.0
        %2059 = vmatpush2.xpose.msra.mxu0 0.0
        %2060 = vmatprep.subr.mxu0 0.0
        %2061 = vmatpush2.xpose.msra.mxu0 0.0
        %2062 = vmatprep.subr.mxu0 0.0
        %2063 = vmatpush2.xpose.msra.mxu0 0.0
        %2064 = vmatprep.subr.mxu0 0.0
        %2065 = vmatpush2.xpose.msra.mxu0 0.0
        %2066 = vmatprep.subr.mxu0 0.0
        %2067 = vmatpush2.xpose.msra.mxu0 0.0
        %2068 = vmatprep.subr.mxu0 0.0
        %2069 = vmatpush2.xpose.msra.mxu0 0.0
        %2070 = vmatprep.subr.mxu0 0.0
        %2071 = vmatpush2.xpose.msra.mxu0 0.0
        %2072 = vmatprep.subr.mxu0 0.0
        %2073 = vmatpush2.xpose.msra.mxu0 0.0
        %2074 = vmatprep.subr.mxu0 0.0
        %2075 = vmatpush2.xpose.msra.mxu0 0.0
        %2076 = vmatprep.subr.mxu0 0.0
        %2077 = vmatpush2.xpose.msra.mxu0 0.0
        %2078 = vmatprep.subr.mxu0 0.0
        %2079 = vmatpush2.xpose.msra.mxu0 0.0
        %2080 = vmatprep.subr.mxu0 0.0
        %2081 = vmatpush2.xpose.msra.mxu0 0.0
        %2082 = vmatprep.subr.mxu0 0.0
        %2083 = vmatpush2.xpose.msra.mxu0 0.0
        %2084 = vmatprep.subr.mxu0 0.0
        %2085 = vmatpush2.xpose.msra.mxu0 0.0
        %2086 = vmatprep.subr.mxu0 0.0
        %2087 = vmatpush2.xpose.msra.mxu0 0.0
        %2088 = vmatprep.subr.mxu0 0.0
        %2089 = vmatpush2.xpose.msra.mxu0 0.0
        %2090 = vmatprep.mubr.f32.mxu0 0.0
        %2091 = vmatmul.mubr.f32.gmra.mxu0 %v1992
        %v2092 = vpop.f32.mrf.mxu0
        %v2093 = vadd.f32 0.0, %v2092
        %v2094 = vpop.f32.mrf.mxu0
        %2095 = vdwg.mxu0
        %v2096 = vld [vmem:[#allocation2] sm:$0xff]
        %v2097 = vld [vmem:[#allocation2 + $0x8] sm:$0xff]
        %v2098 = vld [vmem:[#allocation2 + $0x10] sm:$0xff]
        %v2099 = vld [vmem:[#allocation2 + $0x18] sm:$0xff]
        %v2100 = vld [vmem:[#allocation2 + $0x20] sm:$0xff]
        %v2101 = vld [vmem:[#allocation2 + $0x28] sm:$0xff]
        %v2102 = vld [vmem:[#allocation2 + $0x30] sm:$0xff]
        %v2103 = vld [vmem:[#allocation2 + $0x38] sm:$0xff]
        %v2104 = vld [vmem:[#allocation2 + $0x40] sm:$0xff]
        %v2105 = vld [vmem:[#allocation2 + $0x48] sm:$0xff]
        %v2106 = vld [vmem:[#allocation2 + $0x50] sm:$0xff]
        %v2107 = vld [vmem:[#allocation2 + $0x58] sm:$0xff]
        %v2108 = vld [vmem:[#allocation2 + $0x60] sm:$0xff]
        %v2109 = vld [vmem:[#allocation2 + $0x68] sm:$0xff]
        %v2110 = vld [vmem:[#allocation2 + $0x70] sm:$0xff]
        %v2111 = vld [vmem:[#allocation2 + $0x78] sm:$0xff]
        %2113 = vset.pattern.permute.xlu0 1
        %2114 = vperm.xlu0 %2113, %v2096
        %v2115 = vpop.permute.xlu0 %2114
        %2118 = vset.pattern.permute.xlu0 1
        %2119 = vperm.xlu0 %2118, %v2097
        %v2120 = vpop.permute.xlu0 %2119
        %2123 = vset.pattern.permute.xlu0 1
        %2124 = vperm.xlu0 %2123, %v2098
        %v2125 = vpop.permute.xlu0 %2124
        %2128 = vset.pattern.permute.xlu0 1
        %2129 = vperm.xlu0 %2128, %v2099
        %v2130 = vpop.permute.xlu0 %2129
        %2133 = vset.pattern.permute.xlu0 1
        %2134 = vperm.xlu0 %2133, %v2100
        %v2135 = vpop.permute.xlu0 %2134
        %2138 = vset.pattern.permute.xlu0 1
        %2139 = vperm.xlu0 %2138, %v2101
        %v2140 = vpop.permute.xlu0 %2139
        %2143 = vset.pattern.permute.xlu0 1
        %2144 = vperm.xlu0 %2143, %v2102
        %v2145 = vpop.permute.xlu0 %2144
        %2148 = vset.pattern.permute.xlu0 1
        %2149 = vperm.xlu0 %2148, %v2103
        %v2150 = vpop.permute.xlu0 %2149
        %2153 = vset.pattern.permute.xlu0 1
        %2154 = vperm.xlu0 %2153, %v2104
        %v2155 = vpop.permute.xlu0 %2154
        %2158 = vset.pattern.permute.xlu0 1
        %2159 = vperm.xlu0 %2158, %v2105
        %v2160 = vpop.permute.xlu0 %2159
        %2163 = vset.pattern.permute.xlu0 1
        %2164 = vperm.xlu0 %2163, %v2106
        %v2165 = vpop.permute.xlu0 %2164
        %2168 = vset.pattern.permute.xlu0 1
        %2169 = vperm.xlu0 %2168, %v2107
        %v2170 = vpop.permute.xlu0 %2169
        %2173 = vset.pattern.permute.xlu0 1
        %2174 = vperm.xlu0 %2173, %v2108
        %v2175 = vpop.permute.xlu0 %2174
        %2178 = vset.pattern.permute.xlu0 1
        %2179 = vperm.xlu0 %2178, %v2109
        %v2180 = vpop.permute.xlu0 %2179
        %2183 = vset.pattern.permute.xlu0 1
        %2184 = vperm.xlu0 %2183, %v2110
        %v2185 = vpop.permute.xlu0 %2184
        %2188 = vset.pattern.permute.xlu0 1
        %2189 = vperm.xlu0 %2188, %v2111
        %v2190 = vpop.permute.xlu0 %2189
        %v2192 = vlaneseq
        %v2193 = vshrl.u32 %v2192, 7
        %v2194 = vsub.s32 0, %v2193
        %v2195 = vrot.slane %v2093, %v2194
        %v2196 = vadd.f32 %v2115, %v2195
        %v2197 = vadd.f32 %v2120, %v2195
        %v2198 = vadd.f32 %v2125, %v2195
        %v2199 = vadd.f32 %v2130, %v2195
        %v2200 = vadd.f32 %v2135, %v2195
        %v2201 = vadd.f32 %v2140, %v2195
        %v2202 = vadd.f32 %v2145, %v2195
        %v2203 = vadd.f32 %v2150, %v2195
        %v2204 = vadd.f32 %v2155, %v2195
        %v2205 = vadd.f32 %v2160, %v2195
        %v2206 = vadd.f32 %v2165, %v2195
        %v2207 = vadd.f32 %v2170, %v2195
        %v2208 = vadd.f32 %v2175, %v2195
        %v2209 = vadd.f32 %v2180, %v2195
        %v2210 = vadd.f32 %v2185, %v2195
        %v2211 = vadd.f32 %v2190, %v2195
        %vm2212 = vcmp.gt.f32.partialorder %v2196, 0.0
        %vm2213 = vcmp.gt.f32.partialorder %v2197, 0.0
        %vm2214 = vcmp.gt.f32.partialorder %v2198, 0.0
        %vm2215 = vcmp.gt.f32.partialorder %v2199, 0.0
        %vm2216 = vcmp.gt.f32.partialorder %v2200, 0.0
        %vm2217 = vcmp.gt.f32.partialorder %v2201, 0.0
        %vm2218 = vcmp.gt.f32.partialorder %v2202, 0.0
        %vm2219 = vcmp.gt.f32.partialorder %v2203, 0.0
        %vm2220 = vcmp.gt.f32.partialorder %v2204, 0.0
        %vm2221 = vcmp.gt.f32.partialorder %v2205, 0.0
        %vm2222 = vcmp.gt.f32.partialorder %v2206, 0.0
        %vm2223 = vcmp.gt.f32.partialorder %v2207, 0.0
        %vm2224 = vcmp.gt.f32.partialorder %v2208, 0.0
        %vm2225 = vcmp.gt.f32.partialorder %v2209, 0.0
        %vm2226 = vcmp.gt.f32.partialorder %v2210, 0.0
        %vm2227 = vcmp.gt.f32.partialorder %v2211, 0.0
        %v2228 = vmul.f32 %v2196, 0.01
        %v2229 = vmul.f32 %v2197, 0.01
        %v2230 = vmul.f32 %v2198, 0.01
        %v2231 = vmul.f32 %v2199, 0.01
        %v2232 = vmul.f32 %v2200, 0.01
        %v2233 = vmul.f32 %v2201, 0.01
        %v2234 = vmul.f32 %v2202, 0.01
        %v2235 = vmul.f32 %v2203, 0.01
        %v2236 = vmul.f32 %v2204, 0.01
        %v2237 = vmul.f32 %v2205, 0.01
        %v2238 = vmul.f32 %v2206, 0.01
        %v2239 = vmul.f32 %v2207, 0.01
        %v2240 = vmul.f32 %v2208, 0.01
        %v2241 = vmul.f32 %v2209, 0.01
        %v2242 = vmul.f32 %v2210, 0.01
        %v2243 = vmul.f32 %v2211, 0.01
        %v2244 = vsel %vm2212, %v2196, %v2228
        %v2245 = vsel %vm2213, %v2197, %v2229
        %v2246 = vsel %vm2214, %v2198, %v2230
        %v2247 = vsel %vm2215, %v2199, %v2231
        %v2248 = vsel %vm2216, %v2200, %v2232
        %v2249 = vsel %vm2217, %v2201, %v2233
        %v2250 = vsel %vm2218, %v2202, %v2234
        %v2251 = vsel %vm2219, %v2203, %v2235
        %v2252 = vsel %vm2220, %v2204, %v2236
        %v2253 = vsel %vm2221, %v2205, %v2237
        %v2254 = vsel %vm2222, %v2206, %v2238
        %v2255 = vsel %vm2223, %v2207, %v2239
        %v2256 = vsel %vm2224, %v2208, %v2240
        %v2257 = vsel %vm2225, %v2209, %v2241
        %v2258 = vsel %vm2226, %v2210, %v2242
        %v2259 = vsel %vm2227, %v2211, %v2243
        %v2260 = vsel %vm1013, %v2244, -1e+30
        %v2261 = vsel %vm1014, %v2245, -1e+30
        %v2262 = vsel %vm1015, %v2246, -1e+30
        %v2263 = vsel %vm1016, %v2247, -1e+30
        %v2264 = vsel %vm1017, %v2248, -1e+30
        %v2265 = vsel %vm1018, %v2249, -1e+30
        %v2266 = vsel %vm1019, %v2250, -1e+30
        %v2267 = vsel %vm1020, %v2251, -1e+30
        %v2268 = vsel %vm1021, %v2252, -1e+30
        %v2269 = vsel %vm1022, %v2253, -1e+30
        %v2270 = vsel %vm1023, %v2254, -1e+30
        %v2271 = vsel %vm1024, %v2255, -1e+30
        %v2272 = vsel %vm1025, %v2256, -1e+30
        %v2273 = vsel %vm1026, %v2257, -1e+30
        %v2274 = vsel %vm1027, %v2258, -1e+30
        %v2275 = vsel %vm1028, %v2259, -1e+30
        %v2276 = vld [vmem:[#allocation3] sm:$0xff]
        %v2277 = vld [vmem:[#allocation3 + $0x8] sm:$0xff]
        %v2278 = vld [vmem:[#allocation3 + $0x10] sm:$0xff]
        %v2279 = vld [vmem:[#allocation3 + $0x18] sm:$0xff]
        %v2280 = vld [vmem:[#allocation3 + $0x20] sm:$0xff]
        %v2281 = vld [vmem:[#allocation3 + $0x28] sm:$0xff]
        %v2282 = vld [vmem:[#allocation3 + $0x30] sm:$0xff]
        %v2283 = vld [vmem:[#allocation3 + $0x38] sm:$0xff]
        %v2284 = vld [vmem:[#allocation3 + $0x40] sm:$0xff]
        %v2285 = vld [vmem:[#allocation3 + $0x48] sm:$0xff]
        %v2286 = vld [vmem:[#allocation3 + $0x50] sm:$0xff]
        %v2287 = vld [vmem:[#allocation3 + $0x58] sm:$0xff]
        %v2288 = vld [vmem:[#allocation3 + $0x60] sm:$0xff]
        %v2289 = vld [vmem:[#allocation3 + $0x68] sm:$0xff]
        %v2290 = vld [vmem:[#allocation3 + $0x70] sm:$0xff]
        %v2291 = vld [vmem:[#allocation3 + $0x78] sm:$0xff]
        %2292 = vmax.xlane.f32.xlu0 %v2260
        %v2293 = vpop.xlane.xlu0 %2292
        %2294 = vmax.xlane.f32.xlu0 %v2261
        %v2295 = vpop.xlane.xlu0 %2294
        %2296 = vmax.xlane.f32.xlu0 %v2262
        %v2297 = vpop.xlane.xlu0 %2296
        %2298 = vmax.xlane.f32.xlu0 %v2263
        %v2299 = vpop.xlane.xlu0 %2298
        %2300 = vmax.xlane.f32.xlu0 %v2264
        %v2301 = vpop.xlane.xlu0 %2300
        %2302 = vmax.xlane.f32.xlu0 %v2265
        %v2303 = vpop.xlane.xlu0 %2302
        %2304 = vmax.xlane.f32.xlu0 %v2266
        %v2305 = vpop.xlane.xlu0 %2304
        %2306 = vmax.xlane.f32.xlu0 %v2267
        %v2307 = vpop.xlane.xlu0 %2306
        %2308 = vmax.xlane.f32.xlu0 %v2268
        %v2309 = vpop.xlane.xlu0 %2308
        %2310 = vmax.xlane.f32.xlu0 %v2269
        %v2311 = vpop.xlane.xlu0 %2310
        %2312 = vmax.xlane.f32.xlu0 %v2270
        %v2313 = vpop.xlane.xlu0 %2312
        %2314 = vmax.xlane.f32.xlu0 %v2271
        %v2315 = vpop.xlane.xlu0 %2314
        %2316 = vmax.xlane.f32.xlu0 %v2272
        %v2317 = vpop.xlane.xlu0 %2316
        %2318 = vmax.xlane.f32.xlu0 %v2273
        %v2319 = vpop.xlane.xlu0 %2318
        %2320 = vmax.xlane.f32.xlu0 %v2274
        %v2321 = vpop.xlane.xlu0 %2320
        %2322 = vmax.xlane.f32.xlu0 %v2275
        %v2323 = vpop.xlane.xlu0 %2322
        %v2324 = vmax.f32 %v2276, %v2293
        %v2325 = vmax.f32 %v2277, %v2295
        %v2326 = vmax.f32 %v2278, %v2297
        %v2327 = vmax.f32 %v2279, %v2299
        %v2328 = vmax.f32 %v2280, %v2301
        %v2329 = vmax.f32 %v2281, %v2303
        %v2330 = vmax.f32 %v2282, %v2305
        %v2331 = vmax.f32 %v2283, %v2307
        %v2332 = vmax.f32 %v2284, %v2309
        %v2333 = vmax.f32 %v2285, %v2311
        %v2334 = vmax.f32 %v2286, %v2313
        %v2335 = vmax.f32 %v2287, %v2315
        %v2336 = vmax.f32 %v2288, %v2317
        %v2337 = vmax.f32 %v2289, %v2319
        %v2338 = vmax.f32 %v2290, %v2321
        %v2339 = vmax.f32 %v2291, %v2323
        %v2340 = vsub.f32 %v2276, %v2324
        %v2341 = vsub.f32 %v2277, %v2325
        %v2342 = vsub.f32 %v2278, %v2326
        %v2343 = vsub.f32 %v2279, %v2327
        %v2344 = vsub.f32 %v2280, %v2328
        %v2345 = vsub.f32 %v2281, %v2329
        %v2346 = vsub.f32 %v2282, %v2330
        %v2347 = vsub.f32 %v2283, %v2331
        %v2348 = vsub.f32 %v2284, %v2332
        %v2349 = vsub.f32 %v2285, %v2333
        %v2350 = vsub.f32 %v2286, %v2334
        %v2351 = vsub.f32 %v2287, %v2335
        %v2352 = vsub.f32 %v2288, %v2336
        %v2353 = vsub.f32 %v2289, %v2337
        %v2354 = vsub.f32 %v2290, %v2338
        %v2355 = vsub.f32 %v2291, %v2339
        %v2356 = vmul.f32 %v2340, 1.442695
        %v2357 = vpow.pop %v2356
        %v2358 = vmul.f32 %v2341, 1.442695
        %v2359 = vpow.pop %v2358
        %v2360 = vmul.f32 %v2342, 1.442695
        %v2361 = vpow.pop %v2360
        %v2362 = vmul.f32 %v2343, 1.442695
        %v2363 = vpow.pop %v2362
        %v2364 = vmul.f32 %v2344, 1.442695
        %v2365 = vpow.pop %v2364
        %v2366 = vmul.f32 %v2345, 1.442695
        %v2367 = vpow.pop %v2366
        %v2368 = vmul.f32 %v2346, 1.442695
        %v2369 = vpow.pop %v2368
        %v2370 = vmul.f32 %v2347, 1.442695
        %v2371 = vpow.pop %v2370
        %v2372 = vmul.f32 %v2348, 1.442695
        %v2373 = vpow.pop %v2372
        %v2374 = vmul.f32 %v2349, 1.442695
        %v2375 = vpow.pop %v2374
        %v2376 = vmul.f32 %v2350, 1.442695
        %v2377 = vpow.pop %v2376
        %v2378 = vmul.f32 %v2351, 1.442695
        %v2379 = vpow.pop %v2378
        %v2380 = vmul.f32 %v2352, 1.442695
        %v2381 = vpow.pop %v2380
        %v2382 = vmul.f32 %v2353, 1.442695
        %v2383 = vpow.pop %v2382
        %v2384 = vmul.f32 %v2354, 1.442695
        %v2385 = vpow.pop %v2384
        %v2386 = vmul.f32 %v2355, 1.442695
        %v2387 = vpow.pop %v2386
        %2389 = vset.pattern.permute.xlu0 1
        %2390 = vperm.xlu0 %2389, %v2324
        %v2391 = vpop.permute.xlu0 %2390
        %2394 = vset.pattern.permute.xlu0 1
        %2395 = vperm.xlu0 %2394, %v2325
        %v2396 = vpop.permute.xlu0 %2395
        %2399 = vset.pattern.permute.xlu0 1
        %2400 = vperm.xlu0 %2399, %v2326
        %v2401 = vpop.permute.xlu0 %2400
        %2404 = vset.pattern.permute.xlu0 1
        %2405 = vperm.xlu0 %2404, %v2327
        %v2406 = vpop.permute.xlu0 %2405
        %2409 = vset.pattern.permute.xlu0 1
        %2410 = vperm.xlu0 %2409, %v2328
        %v2411 = vpop.permute.xlu0 %2410
        %2414 = vset.pattern.permute.xlu0 1
        %2415 = vperm.xlu0 %2414, %v2329
        %v2416 = vpop.permute.xlu0 %2415
        %2419 = vset.pattern.permute.xlu0 1
        %2420 = vperm.xlu0 %2419, %v2330
        %v2421 = vpop.permute.xlu0 %2420
        %2424 = vset.pattern.permute.xlu0 1
        %2425 = vperm.xlu0 %2424, %v2331
        %v2426 = vpop.permute.xlu0 %2425
        %2429 = vset.pattern.permute.xlu0 1
        %2430 = vperm.xlu0 %2429, %v2332
        %v2431 = vpop.permute.xlu0 %2430
        %2434 = vset.pattern.permute.xlu0 1
        %2435 = vperm.xlu0 %2434, %v2333
        %v2436 = vpop.permute.xlu0 %2435
        %2439 = vset.pattern.permute.xlu0 1
        %2440 = vperm.xlu0 %2439, %v2334
        %v2441 = vpop.permute.xlu0 %2440
        %2444 = vset.pattern.permute.xlu0 1
        %2445 = vperm.xlu0 %2444, %v2335
        %v2446 = vpop.permute.xlu0 %2445
        %2449 = vset.pattern.permute.xlu0 1
        %2450 = vperm.xlu0 %2449, %v2336
        %v2451 = vpop.permute.xlu0 %2450
        %2454 = vset.pattern.permute.xlu0 1
        %2455 = vperm.xlu0 %2454, %v2337
        %v2456 = vpop.permute.xlu0 %2455
        %2459 = vset.pattern.permute.xlu0 1
        %2460 = vperm.xlu0 %2459, %v2338
        %v2461 = vpop.permute.xlu0 %2460
        %2464 = vset.pattern.permute.xlu0 1
        %2465 = vperm.xlu0 %2464, %v2339
        %v2466 = vpop.permute.xlu0 %2465
        %v2468 = vsub.f32 %v2260, %v2391
        %v2469 = vsub.f32 %v2261, %v2396
        %v2470 = vsub.f32 %v2262, %v2401
        %v2471 = vsub.f32 %v2263, %v2406
        %v2472 = vsub.f32 %v2264, %v2411
        %v2473 = vsub.f32 %v2265, %v2416
        %v2474 = vsub.f32 %v2266, %v2421
        %v2475 = vsub.f32 %v2267, %v2426
        %v2476 = vsub.f32 %v2268, %v2431
        %v2477 = vsub.f32 %v2269, %v2436
        %v2478 = vsub.f32 %v2270, %v2441
        %v2479 = vsub.f32 %v2271, %v2446
        %v2480 = vsub.f32 %v2272, %v2451
        %v2481 = vsub.f32 %v2273, %v2456
        %v2482 = vsub.f32 %v2274, %v2461
        %v2483 = vsub.f32 %v2275, %v2466
        %v2484 = vmul.f32 %v2468, 1.442695
        %v2485 = vpow.pop %v2484
        %v2486 = vmul.f32 %v2469, 1.442695
        %v2487 = vpow.pop %v2486
        %v2488 = vmul.f32 %v2470, 1.442695
        %v2489 = vpow.pop %v2488
        %v2490 = vmul.f32 %v2471, 1.442695
        %v2491 = vpow.pop %v2490
        %v2492 = vmul.f32 %v2472, 1.442695
        %v2493 = vpow.pop %v2492
        %v2494 = vmul.f32 %v2473, 1.442695
        %v2495 = vpow.pop %v2494
        %v2496 = vmul.f32 %v2474, 1.442695
        %v2497 = vpow.pop %v2496
        %v2498 = vmul.f32 %v2475, 1.442695
        %v2499 = vpow.pop %v2498
        %v2500 = vmul.f32 %v2476, 1.442695
        %v2501 = vpow.pop %v2500
        %v2502 = vmul.f32 %v2477, 1.442695
        %v2503 = vpow.pop %v2502
        %v2504 = vmul.f32 %v2478, 1.442695
        %v2505 = vpow.pop %v2504
        %v2506 = vmul.f32 %v2479, 1.442695
        %v2507 = vpow.pop %v2506
        %v2508 = vmul.f32 %v2480, 1.442695
        %v2509 = vpow.pop %v2508
        %v2510 = vmul.f32 %v2481, 1.442695
        %v2511 = vpow.pop %v2510
        %v2512 = vmul.f32 %v2482, 1.442695
        %v2513 = vpow.pop %v2512
        %v2514 = vmul.f32 %v2483, 1.442695
        %v2515 = vpow.pop %v2514
        %v2516 = vsel %vm1013, %v2485, 0.0
        %v2517 = vsel %vm1014, %v2487, 0.0
        %v2518 = vsel %vm1015, %v2489, 0.0
        %v2519 = vsel %vm1016, %v2491, 0.0
        %v2520 = vsel %vm1017, %v2493, 0.0
        %v2521 = vsel %vm1018, %v2495, 0.0
        %v2522 = vsel %vm1019, %v2497, 0.0
        %v2523 = vsel %vm1020, %v2499, 0.0
        %v2524 = vsel %vm1021, %v2501, 0.0
        %v2525 = vsel %vm1022, %v2503, 0.0
        %v2526 = vsel %vm1023, %v2505, 0.0
        %v2527 = vsel %vm1024, %v2507, 0.0
        %v2528 = vsel %vm1025, %v2509, 0.0
        %v2529 = vsel %vm1026, %v2511, 0.0
        %v2530 = vsel %vm1027, %v2513, 0.0
        %v2531 = vsel %vm1028, %v2515, 0.0
        %v2532 = vld [vmem:[#allocation4] sm:$0xff]
        %v2533 = vld [vmem:[#allocation4 + $0x8] sm:$0xff]
        %v2534 = vld [vmem:[#allocation4 + $0x10] sm:$0xff]
        %v2535 = vld [vmem:[#allocation4 + $0x18] sm:$0xff]
        %v2536 = vld [vmem:[#allocation4 + $0x20] sm:$0xff]
        %v2537 = vld [vmem:[#allocation4 + $0x28] sm:$0xff]
        %v2538 = vld [vmem:[#allocation4 + $0x30] sm:$0xff]
        %v2539 = vld [vmem:[#allocation4 + $0x38] sm:$0xff]
        %v2540 = vld [vmem:[#allocation4 + $0x40] sm:$0xff]
        %v2541 = vld [vmem:[#allocation4 + $0x48] sm:$0xff]
        %v2542 = vld [vmem:[#allocation4 + $0x50] sm:$0xff]
        %v2543 = vld [vmem:[#allocation4 + $0x58] sm:$0xff]
        %v2544 = vld [vmem:[#allocation4 + $0x60] sm:$0xff]
        %v2545 = vld [vmem:[#allocation4 + $0x68] sm:$0xff]
        %v2546 = vld [vmem:[#allocation4 + $0x70] sm:$0xff]
        %v2547 = vld [vmem:[#allocation4 + $0x78] sm:$0xff]
        %v2548 = vmul.f32 %v2357, %v2532
        %v2549 = vmul.f32 %v2359, %v2533
        %v2550 = vmul.f32 %v2361, %v2534
        %v2551 = vmul.f32 %v2363, %v2535
        %v2552 = vmul.f32 %v2365, %v2536
        %v2553 = vmul.f32 %v2367, %v2537
        %v2554 = vmul.f32 %v2369, %v2538
        %v2555 = vmul.f32 %v2371, %v2539
        %v2556 = vmul.f32 %v2373, %v2540
        %v2557 = vmul.f32 %v2375, %v2541
        %v2558 = vmul.f32 %v2377, %v2542
        %v2559 = vmul.f32 %v2379, %v2543
        %v2560 = vmul.f32 %v2381, %v2544
        %v2561 = vmul.f32 %v2383, %v2545
        %v2562 = vmul.f32 %v2385, %v2546
        %v2563 = vmul.f32 %v2387, %v2547
        %2564 = vadd.xlane.f32.xlu0 %v2516
        %v2565 = vpop.xlane.xlu0 %2564
        %2566 = vadd.xlane.f32.xlu0 %v2517
        %v2567 = vpop.xlane.xlu0 %2566
        %2568 = vadd.xlane.f32.xlu0 %v2518
        %v2569 = vpop.xlane.xlu0 %2568
        %2570 = vadd.xlane.f32.xlu0 %v2519
        %v2571 = vpop.xlane.xlu0 %2570
        %2572 = vadd.xlane.f32.xlu0 %v2520
        %v2573 = vpop.xlane.xlu0 %2572
        %2574 = vadd.xlane.f32.xlu0 %v2521
        %v2575 = vpop.xlane.xlu0 %2574
        %2576 = vadd.xlane.f32.xlu0 %v2522
        %v2577 = vpop.xlane.xlu0 %2576
        %2578 = vadd.xlane.f32.xlu0 %v2523
        %v2579 = vpop.xlane.xlu0 %2578
        %2580 = vadd.xlane.f32.xlu0 %v2524
        %v2581 = vpop.xlane.xlu0 %2580
        %2582 = vadd.xlane.f32.xlu0 %v2525
        %v2583 = vpop.xlane.xlu0 %2582
        %2584 = vadd.xlane.f32.xlu0 %v2526
        %v2585 = vpop.xlane.xlu0 %2584
        %2586 = vadd.xlane.f32.xlu0 %v2527
        %v2587 = vpop.xlane.xlu0 %2586
        %2588 = vadd.xlane.f32.xlu0 %v2528
        %v2589 = vpop.xlane.xlu0 %2588
        %2590 = vadd.xlane.f32.xlu0 %v2529
        %v2591 = vpop.xlane.xlu0 %2590
        %2592 = vadd.xlane.f32.xlu0 %v2530
        %v2593 = vpop.xlane.xlu0 %2592
        %2594 = vadd.xlane.f32.xlu0 %v2531
        %v2595 = vpop.xlane.xlu0 %2594
        %v2596 = vadd.f32 %v2548, %v2565
        %v2597 = vadd.f32 %v2549, %v2567
        %v2598 = vadd.f32 %v2550, %v2569
        %v2599 = vadd.f32 %v2551, %v2571
        %v2600 = vadd.f32 %v2552, %v2573
        %v2601 = vadd.f32 %v2553, %v2575
        %v2602 = vadd.f32 %v2554, %v2577
        %v2603 = vadd.f32 %v2555, %v2579
        %v2604 = vadd.f32 %v2556, %v2581
        %v2605 = vadd.f32 %v2557, %v2583
        %v2606 = vadd.f32 %v2558, %v2585
        %v2607 = vadd.f32 %v2559, %v2587
        %v2608 = vadd.f32 %v2560, %v2589
        %v2609 = vadd.f32 %v2561, %v2591
        %v2610 = vadd.f32 %v2562, %v2593
        %v2611 = vadd.f32 %v2563, %v2595
        %vm2612 = vcmask 15368
        %2613 = vst.msk [vmem:[#allocation4] sm:$0xff] %vm2612, %v2596
        %2614 = vst.msk [vmem:[#allocation4 + $0x8] sm:$0xff] %vm2612, %v2597
        %2615 = vst.msk [vmem:[#allocation4 + $0x10] sm:$0xff] %vm2612, %v2598
        %2616 = vst.msk [vmem:[#allocation4 + $0x18] sm:$0xff] %vm2612, %v2599
        %2617 = vst.msk [vmem:[#allocation4 + $0x20] sm:$0xff] %vm2612, %v2600
        %2618 = vst.msk [vmem:[#allocation4 + $0x28] sm:$0xff] %vm2612, %v2601
        %2619 = vst.msk [vmem:[#allocation4 + $0x30] sm:$0xff] %vm2612, %v2602
        %2620 = vst.msk [vmem:[#allocation4 + $0x38] sm:$0xff] %vm2612, %v2603
        %2621 = vst.msk [vmem:[#allocation4 + $0x40] sm:$0xff] %vm2612, %v2604
        %2622 = vst.msk [vmem:[#allocation4 + $0x48] sm:$0xff] %vm2612, %v2605
        %2623 = vst.msk [vmem:[#allocation4 + $0x50] sm:$0xff] %vm2612, %v2606
        %2624 = vst.msk [vmem:[#allocation4 + $0x58] sm:$0xff] %vm2612, %v2607
        %2625 = vst.msk [vmem:[#allocation4 + $0x60] sm:$0xff] %vm2612, %v2608
        %2626 = vst.msk [vmem:[#allocation4 + $0x68] sm:$0xff] %vm2612, %v2609
        %2627 = vst.msk [vmem:[#allocation4 + $0x70] sm:$0xff] %vm2612, %v2610
        %2628 = vst.msk [vmem:[#allocation4 + $0x78] sm:$0xff] %vm2612, %v2611
        %v2629 = vld [vmem:[#allocation5] sm:$0xff]
        %v2630 = vld [vmem:[#allocation5 + $0x8] sm:$0xff]
        %v2631 = vld [vmem:[#allocation5 + $0x10] sm:$0xff]
        %v2632 = vld [vmem:[#allocation5 + $0x18] sm:$0xff]
        %v2633 = vld [vmem:[#allocation5 + $0x20] sm:$0xff]
        %v2634 = vld [vmem:[#allocation5 + $0x28] sm:$0xff]
        %v2635 = vld [vmem:[#allocation5 + $0x30] sm:$0xff]
        %v2636 = vld [vmem:[#allocation5 + $0x38] sm:$0xff]
        %v2637 = vld [vmem:[#allocation5 + $0x40] sm:$0xff]
        %v2638 = vld [vmem:[#allocation5 + $0x48] sm:$0xff]
        %v2639 = vld [vmem:[#allocation5 + $0x50] sm:$0xff]
        %v2640 = vld [vmem:[#allocation5 + $0x58] sm:$0xff]
        %v2641 = vld [vmem:[#allocation5 + $0x60] sm:$0xff]
        %v2642 = vld [vmem:[#allocation5 + $0x68] sm:$0xff]
        %v2643 = vld [vmem:[#allocation5 + $0x70] sm:$0xff]
        %v2644 = vld [vmem:[#allocation5 + $0x78] sm:$0xff]
        %2646 = vset.pattern.permute.xlu0 1
        %2647 = vperm.xlu0 %2646, %v2357
        %v2648 = vpop.permute.xlu0 %2647
        %2651 = vset.pattern.permute.xlu0 1
        %2652 = vperm.xlu0 %2651, %v2359
        %v2653 = vpop.permute.xlu0 %2652
        %2656 = vset.pattern.permute.xlu0 1
        %2657 = vperm.xlu0 %2656, %v2361
        %v2658 = vpop.permute.xlu0 %2657
        %2661 = vset.pattern.permute.xlu0 1
        %2662 = vperm.xlu0 %2661, %v2363
        %v2663 = vpop.permute.xlu0 %2662
        %2666 = vset.pattern.permute.xlu0 1
        %2667 = vperm.xlu0 %2666, %v2365
        %v2668 = vpop.permute.xlu0 %2667
        %2671 = vset.pattern.permute.xlu0 1
        %2672 = vperm.xlu0 %2671, %v2367
        %v2673 = vpop.permute.xlu0 %2672
        %2676 = vset.pattern.permute.xlu0 1
        %2677 = vperm.xlu0 %2676, %v2369
        %v2678 = vpop.permute.xlu0 %2677
        %2681 = vset.pattern.permute.xlu0 1
        %2682 = vperm.xlu0 %2681, %v2371
        %v2683 = vpop.permute.xlu0 %2682
        %2686 = vset.pattern.permute.xlu0 1
        %2687 = vperm.xlu0 %2686, %v2373
        %v2688 = vpop.permute.xlu0 %2687
        %2691 = vset.pattern.permute.xlu0 1
        %2692 = vperm.xlu0 %2691, %v2375
        %v2693 = vpop.permute.xlu0 %2692
        %2696 = vset.pattern.permute.xlu0 1
        %2697 = vperm.xlu0 %2696, %v2377
        %v2698 = vpop.permute.xlu0 %2697
        %2701 = vset.pattern.permute.xlu0 1
        %2702 = vperm.xlu0 %2701, %v2379
        %v2703 = vpop.permute.xlu0 %2702
        %2706 = vset.pattern.permute.xlu0 1
        %2707 = vperm.xlu0 %2706, %v2381
        %v2708 = vpop.permute.xlu0 %2707
        %2711 = vset.pattern.permute.xlu0 1
        %2712 = vperm.xlu0 %2711, %v2383
        %v2713 = vpop.permute.xlu0 %2712
        %2716 = vset.pattern.permute.xlu0 1
        %2717 = vperm.xlu0 %2716, %v2385
        %v2718 = vpop.permute.xlu0 %2717
        %2721 = vset.pattern.permute.xlu0 1
        %2722 = vperm.xlu0 %2721, %v2387
        %v2723 = vpop.permute.xlu0 %2722
        %v2725 = vmul.f32 %v2648, %v2629
        %v2726 = vmul.f32 %v2653, %v2630
        %v2727 = vmul.f32 %v2658, %v2631
        %v2728 = vmul.f32 %v2663, %v2632
        %v2729 = vmul.f32 %v2668, %v2633
        %v2730 = vmul.f32 %v2673, %v2634
        %v2731 = vmul.f32 %v2678, %v2635
        %v2732 = vmul.f32 %v2683, %v2636
        %v2733 = vmul.f32 %v2688, %v2637
        %v2734 = vmul.f32 %v2693, %v2638
        %v2735 = vmul.f32 %v2698, %v2639
        %v2736 = vmul.f32 %v2703, %v2640
        %v2737 = vmul.f32 %v2708, %v2641
        %v2738 = vmul.f32 %v2713, %v2642
        %v2739 = vmul.f32 %v2718, %v2643
        %v2740 = vmul.f32 %v2723, %v2644
        %v2741 = vpack.c.bf16 %v2517, %v2516
        %v2742 = vpack.c.bf16 %v2519, %v2518
        %v2743 = vpack.c.bf16 %v2521, %v2520
        %v2744 = vpack.c.bf16 %v2523, %v2522
        %v2745 = vpack.c.bf16 %v2525, %v2524
        %v2746 = vpack.c.bf16 %v2527, %v2526
        %v2747 = vpack.c.bf16 %v2529, %v2528
        %v2748 = vpack.c.bf16 %v2531, %v2530
        %2757 = vrot.lane.b32.xlu0 %v1805, 112
        %v2758 = vpop.permute.xlu0 %2757
        %2759 = vrot.lane.b32.xlu0 %v1806, 112
        %v2760 = vpop.permute.xlu0 %2759
        %2761 = vrot.lane.b32.xlu0 %v1807, 112
        %v2762 = vpop.permute.xlu0 %2761
        %2763 = vrot.lane.b32.xlu0 %v1808, 112
        %v2764 = vpop.permute.xlu0 %2763
        %2765 = vrot.lane.b32.xlu0 %v1809, 112
        %v2766 = vpop.permute.xlu0 %2765
        %2767 = vrot.lane.b32.xlu0 %v1810, 112
        %v2768 = vpop.permute.xlu0 %2767
        %2769 = vrot.lane.b32.xlu0 %v1811, 112
        %v2770 = vpop.permute.xlu0 %2769
        %2771 = vrot.lane.b32.xlu0 %v1812, 112
        %v2772 = vpop.permute.xlu0 %2771
        %2781 = vmatprep.subr.bf16.mxu0 0
        %2782 = vmatpush1.bf16.msra.mxu0 %v2772
        %2783 = vmatprep.subr.bf16.mxu0 0
        %2784 = vmatpush1.bf16.msra.mxu0 %v2770
        %2785 = vmatprep.subr.bf16.mxu0 0
        %2786 = vmatpush1.bf16.msra.mxu0 %v2768
        %2787 = vmatprep.subr.bf16.mxu0 0
        %2788 = vmatpush1.bf16.msra.mxu0 %v2766
        %2789 = vmatprep.subr.bf16.mxu0 0
        %2790 = vmatpush1.bf16.msra.mxu0 %v2764
        %2791 = vmatprep.subr.bf16.mxu0 0
        %2792 = vmatpush1.bf16.msra.mxu0 %v2762
        %2793 = vmatprep.subr.bf16.mxu0 0
        %2794 = vmatpush1.bf16.msra.mxu0 %v2760
        %2795 = vmatprep.subr.bf16.mxu0 0
        %2796 = vmatpush1.bf16.msra.mxu0 %v2758
        %2797 = vmatprep.subr.bf16.mxu0 0
        %2798 = vmatpush2.bf16.msra.mxu0 0
        %2799 = vmatprep.subr.bf16.mxu0 0
        %2800 = vmatpush2.bf16.msra.mxu0 0
        %2801 = vmatprep.subr.bf16.mxu0 0
        %2802 = vmatpush2.bf16.msra.mxu0 0
        %2803 = vmatprep.subr.bf16.mxu0 0
        %2804 = vmatpush2.bf16.msra.mxu0 0
        %2805 = vmatprep.subr.bf16.mxu0 0
        %2806 = vmatpush2.bf16.msra.mxu0 0
        %2807 = vmatprep.subr.bf16.mxu0 0
        %2808 = vmatpush2.bf16.msra.mxu0 0
        %2809 = vmatprep.subr.bf16.mxu0 0
        %2810 = vmatpush2.bf16.msra.mxu0 0
        %2811 = vmatprep.subr.bf16.mxu0 0
        %2812 = vmatpush2.bf16.msra.mxu0 0
        %2813 = vmatprep.mubr.bf16.mxu0 0
        %2814 = vmatmul.mubr.bf16.gmra.mxu0 %v2741
        %v2815 = vpop.f32.mrf.mxu0
        %v2816 = vadd.f32 0.0, %v2815
        %v2817 = vpop.f32.mrf.mxu0
        %v2818 = vpop.f32.mrf.mxu0
        %v2819 = vadd.f32 0.0, %v2818
        %v2820 = vpop.f32.mrf.mxu0
        %2821 = vmatprep.mubr.bf16.mxu0 0
        %2822 = vmatmul.mubr.bf16.gmra.mxu0 %v2742
        %v2823 = vpop.f32.mrf.mxu0
        %v2824 = vadd.f32 0.0, %v2823
        %v2825 = vpop.f32.mrf.mxu0
        %v2826 = vpop.f32.mrf.mxu0
        %v2827 = vadd.f32 0.0, %v2826
        %v2828 = vpop.f32.mrf.mxu0
        %2829 = vmatprep.mubr.bf16.mxu0 0
        %2830 = vmatmul.mubr.bf16.gmra.mxu0 %v2743
        %v2831 = vpop.f32.mrf.mxu0
        %v2832 = vadd.f32 0.0, %v2831
        %v2833 = vpop.f32.mrf.mxu0
        %v2834 = vpop.f32.mrf.mxu0
        %v2835 = vadd.f32 0.0, %v2834
        %v2836 = vpop.f32.mrf.mxu0
        %2837 = vmatprep.mubr.bf16.mxu0 0
        %2838 = vmatmul.mubr.bf16.gmra.mxu0 %v2744
        %v2839 = vpop.f32.mrf.mxu0
        %v2840 = vadd.f32 0.0, %v2839
        %v2841 = vpop.f32.mrf.mxu0
        %v2842 = vpop.f32.mrf.mxu0
        %v2843 = vadd.f32 0.0, %v2842
        %v2844 = vpop.f32.mrf.mxu0
        %2845 = vmatprep.mubr.bf16.mxu0 0
        %2846 = vmatmul.mubr.bf16.gmra.mxu0 %v2745
        %v2847 = vpop.f32.mrf.mxu0
        %v2848 = vadd.f32 0.0, %v2847
        %v2849 = vpop.f32.mrf.mxu0
        %v2850 = vpop.f32.mrf.mxu0
        %v2851 = vadd.f32 0.0, %v2850
        %v2852 = vpop.f32.mrf.mxu0
        %2853 = vmatprep.mubr.bf16.mxu0 0
        %2854 = vmatmul.mubr.bf16.gmra.mxu0 %v2746
        %v2855 = vpop.f32.mrf.mxu0
        %v2856 = vadd.f32 0.0, %v2855
        %v2857 = vpop.f32.mrf.mxu0
        %v2858 = vpop.f32.mrf.mxu0
        %v2859 = vadd.f32 0.0, %v2858
        %v2860 = vpop.f32.mrf.mxu0
        %2861 = vmatprep.mubr.bf16.mxu0 0
        %2862 = vmatmul.mubr.bf16.gmra.mxu0 %v2747
        %v2863 = vpop.f32.mrf.mxu0
        %v2864 = vadd.f32 0.0, %v2863
        %v2865 = vpop.f32.mrf.mxu0
        %v2866 = vpop.f32.mrf.mxu0
        %v2867 = vadd.f32 0.0, %v2866
        %v2868 = vpop.f32.mrf.mxu0
        %2869 = vmatprep.mubr.bf16.mxu0 0
        %2870 = vmatmul.mubr.bf16.gmra.mxu0 %v2748
        %v2871 = vpop.f32.mrf.mxu0
        %v2872 = vadd.f32 0.0, %v2871
        %v2873 = vpop.f32.mrf.mxu0
        %v2874 = vpop.f32.mrf.mxu0
        %v2875 = vadd.f32 0.0, %v2874
        %v2876 = vpop.f32.mrf.mxu0
        %2877 = vdwg.mxu0
        %2894 = vrot.lane.b32.xlu0 %v2816, 16
        %v2895 = vpop.permute.xlu0 %2894
        %2896 = vrot.lane.b32.xlu0 %v2819, 16
        %v2897 = vpop.permute.xlu0 %2896
        %2898 = vrot.lane.b32.xlu0 %v2824, 16
        %v2899 = vpop.permute.xlu0 %2898
        %2900 = vrot.lane.b32.xlu0 %v2827, 16
        %v2901 = vpop.permute.xlu0 %2900
        %2902 = vrot.lane.b32.xlu0 %v2832, 16
        %v2903 = vpop.permute.xlu0 %2902
        %2904 = vrot.lane.b32.xlu0 %v2835, 16
        %v2905 = vpop.permute.xlu0 %2904
        %2906 = vrot.lane.b32.xlu0 %v2840, 16
        %v2907 = vpop.permute.xlu0 %2906
        %2908 = vrot.lane.b32.xlu0 %v2843, 16
        %v2909 = vpop.permute.xlu0 %2908
        %2910 = vrot.lane.b32.xlu0 %v2848, 16
        %v2911 = vpop.permute.xlu0 %2910
        %2912 = vrot.lane.b32.xlu0 %v2851, 16
        %v2913 = vpop.permute.xlu0 %2912
        %2914 = vrot.lane.b32.xlu0 %v2856, 16
        %v2915 = vpop.permute.xlu0 %2914
        %2916 = vrot.lane.b32.xlu0 %v2859, 16
        %v2917 = vpop.permute.xlu0 %2916
        %2918 = vrot.lane.b32.xlu0 %v2864, 16
        %v2919 = vpop.permute.xlu0 %2918
        %2920 = vrot.lane.b32.xlu0 %v2867, 16
        %v2921 = vpop.permute.xlu0 %2920
        %2922 = vrot.lane.b32.xlu0 %v2872, 16
        %v2923 = vpop.permute.xlu0 %2922
        %2924 = vrot.lane.b32.xlu0 %v2875, 16
        %v2925 = vpop.permute.xlu0 %2924
        %v2942 = vadd.f32 %v2725, %v2895
        %v2943 = vadd.f32 %v2726, %v2897
        %v2944 = vadd.f32 %v2727, %v2899
        %v2945 = vadd.f32 %v2728, %v2901
        %v2946 = vadd.f32 %v2729, %v2903
        %v2947 = vadd.f32 %v2730, %v2905
        %v2948 = vadd.f32 %v2731, %v2907
        %v2949 = vadd.f32 %v2732, %v2909
        %v2950 = vadd.f32 %v2733, %v2911
        %v2951 = vadd.f32 %v2734, %v2913
        %v2952 = vadd.f32 %v2735, %v2915
        %v2953 = vadd.f32 %v2736, %v2917
        %v2954 = vadd.f32 %v2737, %v2919
        %v2955 = vadd.f32 %v2738, %v2921
        %v2956 = vadd.f32 %v2739, %v2923
        %v2957 = vadd.f32 %v2740, %v2925
        %vm2958 = vcmask 261248
        %2959 = vst.msk [vmem:[#allocation5] sm:$0xff] %vm2958, %v2942
        %2960 = vst.msk [vmem:[#allocation5 + $0x8] sm:$0xff] %vm2958, %v2943
        %2961 = vst.msk [vmem:[#allocation5 + $0x10] sm:$0xff] %vm2958, %v2944
        %2962 = vst.msk [vmem:[#allocation5 + $0x18] sm:$0xff] %vm2958, %v2945
        %2963 = vst.msk [vmem:[#allocation5 + $0x20] sm:$0xff] %vm2958, %v2946
        %2964 = vst.msk [vmem:[#allocation5 + $0x28] sm:$0xff] %vm2958, %v2947
        %2965 = vst.msk [vmem:[#allocation5 + $0x30] sm:$0xff] %vm2958, %v2948
        %2966 = vst.msk [vmem:[#allocation5 + $0x38] sm:$0xff] %vm2958, %v2949
        %2967 = vst.msk [vmem:[#allocation5 + $0x40] sm:$0xff] %vm2958, %v2950
        %2968 = vst.msk [vmem:[#allocation5 + $0x48] sm:$0xff] %vm2958, %v2951
        %2969 = vst.msk [vmem:[#allocation5 + $0x50] sm:$0xff] %vm2958, %v2952
        %2970 = vst.msk [vmem:[#allocation5 + $0x58] sm:$0xff] %vm2958, %v2953
        %2971 = vst.msk [vmem:[#allocation5 + $0x60] sm:$0xff] %vm2958, %v2954
        %2972 = vst.msk [vmem:[#allocation5 + $0x68] sm:$0xff] %vm2958, %v2955
        %2973 = vst.msk [vmem:[#allocation5 + $0x70] sm:$0xff] %vm2958, %v2956
        %2974 = vst.msk [vmem:[#allocation5 + $0x78] sm:$0xff] %vm2958, %v2957
        %2975 = vst.msk [vmem:[#allocation3] sm:$0xff] %vm2612, %v2324
        %2976 = vst.msk [vmem:[#allocation3 + $0x8] sm:$0xff] %vm2612, %v2325
        %2977 = vst.msk [vmem:[#allocation3 + $0x10] sm:$0xff] %vm2612, %v2326
        %2978 = vst.msk [vmem:[#allocation3 + $0x18] sm:$0xff] %vm2612, %v2327
        %2979 = vst.msk [vmem:[#allocation3 + $0x20] sm:$0xff] %vm2612, %v2328
        %2980 = vst.msk [vmem:[#allocation3 + $0x28] sm:$0xff] %vm2612, %v2329
        %2981 = vst.msk [vmem:[#allocation3 + $0x30] sm:$0xff] %vm2612, %v2330
        %2982 = vst.msk [vmem:[#allocation3 + $0x38] sm:$0xff] %vm2612, %v2331
        %2983 = vst.msk [vmem:[#allocation3 + $0x40] sm:$0xff] %vm2612, %v2332
        %2984 = vst.msk [vmem:[#allocation3 + $0x48] sm:$0xff] %vm2612, %v2333
        %2985 = vst.msk [vmem:[#allocation3 + $0x50] sm:$0xff] %vm2612, %v2334
        %2986 = vst.msk [vmem:[#allocation3 + $0x58] sm:$0xff] %vm2612, %v2335
        %2987 = vst.msk [vmem:[#allocation3 + $0x60] sm:$0xff] %vm2612, %v2336
        %2988 = vst.msk [vmem:[#allocation3 + $0x68] sm:$0xff] %vm2612, %v2337
        %2989 = vst.msk [vmem:[#allocation3 + $0x70] sm:$0xff] %vm2612, %v2338
        %2990 = vst.msk [vmem:[#allocation3 + $0x78] sm:$0xff] %vm2612, %v2339
        %p2991 = scmp.eq.s32.totalorder %s22, 1
        // Predicated region
        $region87: #{tpu_custom_call.1} parent=77 // pred_check
          %p2992 = pneg %p2991
        $region88: #{tpu_custom_call.1} parent=77 // pred_check_branch
          %2994 = sbr.rel (%p2992) target = $region90
        $region89: #{tpu_custom_call.1} parent=77 // pred_region
          %v2995 = vld [vmem:[#allocation4] sm:$0xff]
          %v2996 = vld [vmem:[#allocation4 + $0x8] sm:$0xff]
          %v2997 = vld [vmem:[#allocation4 + $0x10] sm:$0xff]
          %v2998 = vld [vmem:[#allocation4 + $0x18] sm:$0xff]
          %v2999 = vld [vmem:[#allocation4 + $0x20] sm:$0xff]
          %v3000 = vld [vmem:[#allocation4 + $0x28] sm:$0xff]
          %v3001 = vld [vmem:[#allocation4 + $0x30] sm:$0xff]
          %v3002 = vld [vmem:[#allocation4 + $0x38] sm:$0xff]
          %v3003 = vld [vmem:[#allocation4 + $0x40] sm:$0xff]
          %v3004 = vld [vmem:[#allocation4 + $0x48] sm:$0xff]
          %v3005 = vld [vmem:[#allocation4 + $0x50] sm:$0xff]
          %v3006 = vld [vmem:[#allocation4 + $0x58] sm:$0xff]
          %v3007 = vld [vmem:[#allocation4 + $0x60] sm:$0xff]
          %v3008 = vld [vmem:[#allocation4 + $0x68] sm:$0xff]
          %v3009 = vld [vmem:[#allocation4 + $0x70] sm:$0xff]
          %v3010 = vld [vmem:[#allocation4 + $0x78] sm:$0xff]
          %v3011 = vmax.f32 %v2995, 1e-30
          %v3012 = vmax.f32 %v2996, 1e-30
          %v3013 = vmax.f32 %v2997, 1e-30
          %v3014 = vmax.f32 %v2998, 1e-30
          %v3015 = vmax.f32 %v2999, 1e-30
          %v3016 = vmax.f32 %v3000, 1e-30
          %v3017 = vmax.f32 %v3001, 1e-30
          %v3018 = vmax.f32 %v3002, 1e-30
          %v3019 = vmax.f32 %v3003, 1e-30
          %v3020 = vmax.f32 %v3004, 1e-30
          %v3021 = vmax.f32 %v3005, 1e-30
          %v3022 = vmax.f32 %v3006, 1e-30
          %v3023 = vmax.f32 %v3007, 1e-30
          %v3024 = vmax.f32 %v3008, 1e-30
          %v3025 = vmax.f32 %v3009, 1e-30
          %v3026 = vmax.f32 %v3010, 1e-30
          %v3027 = vrcp.pop %v3011
          %v3028 = vrcp.pop %v3012
          %v3029 = vrcp.pop %v3013
          %v3030 = vrcp.pop %v3014
          %v3031 = vrcp.pop %v3015
          %v3032 = vrcp.pop %v3016
          %v3033 = vrcp.pop %v3017
          %v3034 = vrcp.pop %v3018
          %v3035 = vrcp.pop %v3019
          %v3036 = vrcp.pop %v3020
          %v3037 = vrcp.pop %v3021
          %v3038 = vrcp.pop %v3022
          %v3039 = vrcp.pop %v3023
          %v3040 = vrcp.pop %v3024
          %v3041 = vrcp.pop %v3025
          %v3042 = vrcp.pop %v3026
          %v3043 = vld [vmem:[#allocation5] sm:$0xff]
          %v3044 = vld [vmem:[#allocation5 + $0x8] sm:$0xff]
          %v3045 = vld [vmem:[#allocation5 + $0x10] sm:$0xff]
          %v3046 = vld [vmem:[#allocation5 + $0x18] sm:$0xff]
          %v3047 = vld [vmem:[#allocation5 + $0x20] sm:$0xff]
          %v3048 = vld [vmem:[#allocation5 + $0x28] sm:$0xff]
          %v3049 = vld [vmem:[#allocation5 + $0x30] sm:$0xff]
          %v3050 = vld [vmem:[#allocation5 + $0x38] sm:$0xff]
          %v3051 = vld [vmem:[#allocation5 + $0x40] sm:$0xff]
          %v3052 = vld [vmem:[#allocation5 + $0x48] sm:$0xff]
          %v3053 = vld [vmem:[#allocation5 + $0x50] sm:$0xff]
          %v3054 = vld [vmem:[#allocation5 + $0x58] sm:$0xff]
          %v3055 = vld [vmem:[#allocation5 + $0x60] sm:$0xff]
          %v3056 = vld [vmem:[#allocation5 + $0x68] sm:$0xff]
          %v3057 = vld [vmem:[#allocation5 + $0x70] sm:$0xff]
          %v3058 = vld [vmem:[#allocation5 + $0x78] sm:$0xff]
          %3060 = vset.pattern.permute.xlu0 0
          %3061 = vperm.xlu0 %3060, %v3027
          %v3062 = vpop.permute.xlu0 %3061
          %3065 = vset.pattern.permute.xlu0 0
          %3066 = vperm.xlu0 %3065, %v3028
          %v3067 = vpop.permute.xlu0 %3066
          %3070 = vset.pattern.permute.xlu0 0
          %3071 = vperm.xlu0 %3070, %v3029
          %v3072 = vpop.permute.xlu0 %3071
          %3075 = vset.pattern.permute.xlu0 0
          %3076 = vperm.xlu0 %3075, %v3030
          %v3077 = vpop.permute.xlu0 %3076
          %3080 = vset.pattern.permute.xlu0 0
          %3081 = vperm.xlu0 %3080, %v3031
          %v3082 = vpop.permute.xlu0 %3081
          %3085 = vset.pattern.permute.xlu0 0
          %3086 = vperm.xlu0 %3085, %v3032
          %v3087 = vpop.permute.xlu0 %3086
          %3090 = vset.pattern.permute.xlu0 0
          %3091 = vperm.xlu0 %3090, %v3033
          %v3092 = vpop.permute.xlu0 %3091
          %3095 = vset.pattern.permute.xlu0 0
          %3096 = vperm.xlu0 %3095, %v3034
          %v3097 = vpop.permute.xlu0 %3096
          %3100 = vset.pattern.permute.xlu0 0
          %3101 = vperm.xlu0 %3100, %v3035
          %v3102 = vpop.permute.xlu0 %3101
          %3105 = vset.pattern.permute.xlu0 0
          %3106 = vperm.xlu0 %3105, %v3036
          %v3107 = vpop.permute.xlu0 %3106
          %3110 = vset.pattern.permute.xlu0 0
          %3111 = vperm.xlu0 %3110, %v3037
          %v3112 = vpop.permute.xlu0 %3111
          %3115 = vset.pattern.permute.xlu0 0
          %3116 = vperm.xlu0 %3115, %v3038
          %v3117 = vpop.permute.xlu0 %3116
          %3120 = vset.pattern.permute.xlu0 0
          %3121 = vperm.xlu0 %3120, %v3039
          %v3122 = vpop.permute.xlu0 %3121
          %3125 = vset.pattern.permute.xlu0 0
          %3126 = vperm.xlu0 %3125, %v3040
          %v3127 = vpop.permute.xlu0 %3126
          %3130 = vset.pattern.permute.xlu0 0
          %3131 = vperm.xlu0 %3130, %v3041
          %v3132 = vpop.permute.xlu0 %3131
          %3135 = vset.pattern.permute.xlu0 0
          %3136 = vperm.xlu0 %3135, %v3042
          %v3137 = vpop.permute.xlu0 %3136
          %v3139 = vmul.f32 %v3043, %v3062
          %v3140 = vmul.f32 %v3044, %v3067
          %v3141 = vmul.f32 %v3045, %v3072
          %v3142 = vmul.f32 %v3046, %v3077
          %v3143 = vmul.f32 %v3047, %v3082
          %v3144 = vmul.f32 %v3048, %v3087
          %v3145 = vmul.f32 %v3049, %v3092
          %v3146 = vmul.f32 %v3050, %v3097
          %v3147 = vmul.f32 %v3051, %v3102
          %v3148 = vmul.f32 %v3052, %v3107
          %v3149 = vmul.f32 %v3053, %v3112
          %v3150 = vmul.f32 %v3054, %v3117
          %v3151 = vmul.f32 %v3055, %v3122
          %v3152 = vmul.f32 %v3056, %v3127
          %v3153 = vmul.f32 %v3057, %v3132
          %v3154 = vmul.f32 %v3058, %v3137
          %v3155 = vpack.c.bf16 %v3140, %v3139
          %v3156 = vpack.c.bf16 %v3142, %v3141
          %v3157 = vpack.c.bf16 %v3144, %v3143
          %v3158 = vpack.c.bf16 %v3146, %v3145
          %v3159 = vpack.c.bf16 %v3148, %v3147
          %v3160 = vpack.c.bf16 %v3150, %v3149
          %v3161 = vpack.c.bf16 %v3152, %v3151
          %v3162 = vpack.c.bf16 %v3154, %v3153
          %v3171 = vunpack.c.l.b16 %v3155
          %v3172 = vunpack.c.h.b16 %v3155
          %v3173 = vunpack.c.l.b16 %v3156
          %v3174 = vunpack.c.h.b16 %v3156
          %v3175 = vunpack.c.l.b16 %v3157
          %v3176 = vunpack.c.h.b16 %v3157
          %v3177 = vunpack.c.l.b16 %v3158
          %v3178 = vunpack.c.h.b16 %v3158
          %v3179 = vunpack.c.l.b16 %v3159
          %v3180 = vunpack.c.h.b16 %v3159
          %v3181 = vunpack.c.l.b16 %v3160
          %v3182 = vunpack.c.h.b16 %v3160
          %v3183 = vunpack.c.l.b16 %v3161
          %v3184 = vunpack.c.h.b16 %v3161
          %v3185 = vunpack.c.l.b16 %v3162
          %v3186 = vunpack.c.h.b16 %v3162
          %v3187 = vpack.c.b16 %v3171, %v3171
          %v3188 = vpack.c.b16 %v3172, %v3172
          %v3189 = vpack.c.b16 %v3173, %v3173
          %v3190 = vpack.c.b16 %v3174, %v3174
          %v3191 = vpack.c.b16 %v3175, %v3175
          %v3192 = vpack.c.b16 %v3176, %v3176
          %v3193 = vpack.c.b16 %v3177, %v3177
          %v3194 = vpack.c.b16 %v3178, %v3178
          %v3195 = vpack.c.b16 %v3179, %v3179
          %v3196 = vpack.c.b16 %v3180, %v3180
          %v3197 = vpack.c.b16 %v3181, %v3181
          %v3198 = vpack.c.b16 %v3182, %v3182
          %v3199 = vpack.c.b16 %v3183, %v3183
          %v3200 = vpack.c.b16 %v3184, %v3184
          %v3201 = vpack.c.b16 %v3185, %v3185
          %v3202 = vpack.c.b16 %v3186, %v3186
          %vm3219 = vcmask 125952
          %3220 = vst.msk [vmem:[%s360] sm:$0xf] %vm3219, %v3187
          %3221 = vst.msk [vmem:[%s360 + $0x4] sm:$0xf] %vm3219, %v3188
          %3222 = vst.msk [vmem:[%s360 + $0x8] sm:$0xf] %vm3219, %v3189
          %3223 = vst.msk [vmem:[%s360 + $0xc] sm:$0xf] %vm3219, %v3190
          %3224 = vst.msk [vmem:[%s360 + $0x10] sm:$0xf] %vm3219, %v3191
          %3225 = vst.msk [vmem:[%s360 + $0x14] sm:$0xf] %vm3219, %v3192
          %3226 = vst.msk [vmem:[%s360 + $0x18] sm:$0xf] %vm3219, %v3193
          %3227 = vst.msk [vmem:[%s360 + $0x1c] sm:$0xf] %vm3219, %v3194
          %3228 = vst.msk [vmem:[%s360 + $0x20] sm:$0xf] %vm3219, %v3195
          %3229 = vst.msk [vmem:[%s360 + $0x24] sm:$0xf] %vm3219, %v3196
          %3230 = vst.msk [vmem:[%s360 + $0x28] sm:$0xf] %vm3219, %v3197
          %3231 = vst.msk [vmem:[%s360 + $0x2c] sm:$0xf] %vm3219, %v3198
          %3232 = vst.msk [vmem:[%s360 + $0x30] sm:$0xf] %vm3219, %v3199
          %3233 = vst.msk [vmem:[%s360 + $0x34] sm:$0xf] %vm3219, %v3200
          %3234 = vst.msk [vmem:[%s360 + $0x38] sm:$0xf] %vm3219, %v3201
          %3235 = vst.msk [vmem:[%s360 + $0x3c] sm:$0xf] %vm3219, %v3202
          %v3236 = vld [vmem:[#allocation5] sm:$0xff]
          %v3237 = vld [vmem:[#allocation5 + $0x8] sm:$0xff]
          %v3238 = vld [vmem:[#allocation5 + $0x10] sm:$0xff]
          %v3239 = vld [vmem:[#allocation5 + $0x18] sm:$0xff]
          %v3240 = vld [vmem:[#allocation5 + $0x20] sm:$0xff]
          %v3241 = vld [vmem:[#allocation5 + $0x28] sm:$0xff]
          %v3242 = vld [vmem:[#allocation5 + $0x30] sm:$0xff]
          %v3243 = vld [vmem:[#allocation5 + $0x38] sm:$0xff]
          %v3244 = vld [vmem:[#allocation5 + $0x40] sm:$0xff]
          %v3245 = vld [vmem:[#allocation5 + $0x48] sm:$0xff]
          %v3246 = vld [vmem:[#allocation5 + $0x50] sm:$0xff]
          %v3247 = vld [vmem:[#allocation5 + $0x58] sm:$0xff]
          %v3248 = vld [vmem:[#allocation5 + $0x60] sm:$0xff]
          %v3249 = vld [vmem:[#allocation5 + $0x68] sm:$0xff]
          %v3250 = vld [vmem:[#allocation5 + $0x70] sm:$0xff]
          %v3251 = vld [vmem:[#allocation5 + $0x78] sm:$0xff]
          %3252 = vset.pattern.permute.xlu0 1
          %3253 = vperm.xlu0 %3252, %v3027
          %v3254 = vpop.permute.xlu0 %3253
          %3256 = vset.pattern.permute.xlu0 1
          %3257 = vperm.xlu0 %3256, %v3028
          %v3258 = vpop.permute.xlu0 %3257
          %3260 = vset.pattern.permute.xlu0 1
          %3261 = vperm.xlu0 %3260, %v3029
          %v3262 = vpop.permute.xlu0 %3261
          %3264 = vset.pattern.permute.xlu0 1
          %3265 = vperm.xlu0 %3264, %v3030
          %v3266 = vpop.permute.xlu0 %3265
          %3268 = vset.pattern.permute.xlu0 1
          %3269 = vperm.xlu0 %3268, %v3031
          %v3270 = vpop.permute.xlu0 %3269
          %3272 = vset.pattern.permute.xlu0 1
          %3273 = vperm.xlu0 %3272, %v3032
          %v3274 = vpop.permute.xlu0 %3273
          %3276 = vset.pattern.permute.xlu0 1
          %3277 = vperm.xlu0 %3276, %v3033
          %v3278 = vpop.permute.xlu0 %3277
          %3280 = vset.pattern.permute.xlu0 1
          %3281 = vperm.xlu0 %3280, %v3034
          %v3282 = vpop.permute.xlu0 %3281
          %3284 = vset.pattern.permute.xlu0 1
          %3285 = vperm.xlu0 %3284, %v3035
          %v3286 = vpop.permute.xlu0 %3285
          %3288 = vset.pattern.permute.xlu0 1
          %3289 = vperm.xlu0 %3288, %v3036
          %v3290 = vpop.permute.xlu0 %3289
          %3292 = vset.pattern.permute.xlu0 1
          %3293 = vperm.xlu0 %3292, %v3037
          %v3294 = vpop.permute.xlu0 %3293
          %3296 = vset.pattern.permute.xlu0 1
          %3297 = vperm.xlu0 %3296, %v3038
          %v3298 = vpop.permute.xlu0 %3297
          %3300 = vset.pattern.permute.xlu0 1
          %3301 = vperm.xlu0 %3300, %v3039
          %v3302 = vpop.permute.xlu0 %3301
          %3304 = vset.pattern.permute.xlu0 1
          %3305 = vperm.xlu0 %3304, %v3040
          %v3306 = vpop.permute.xlu0 %3305
          %3308 = vset.pattern.permute.xlu0 1
          %3309 = vperm.xlu0 %3308, %v3041
          %v3310 = vpop.permute.xlu0 %3309
          %3312 = vset.pattern.permute.xlu0 1
          %3313 = vperm.xlu0 %3312, %v3042
          %v3314 = vpop.permute.xlu0 %3313
          %v3316 = vmul.f32 %v3236, %v3254
          %v3317 = vmul.f32 %v3237, %v3258
          %v3318 = vmul.f32 %v3238, %v3262
          %v3319 = vmul.f32 %v3239, %v3266
          %v3320 = vmul.f32 %v3240, %v3270
          %v3321 = vmul.f32 %v3241, %v3274
          %v3322 = vmul.f32 %v3242, %v3278
          %v3323 = vmul.f32 %v3243, %v3282
          %v3324 = vmul.f32 %v3244, %v3286
          %v3325 = vmul.f32 %v3245, %v3290
          %v3326 = vmul.f32 %v3246, %v3294
          %v3327 = vmul.f32 %v3247, %v3298
          %v3328 = vmul.f32 %v3248, %v3302
          %v3329 = vmul.f32 %v3249, %v3306
          %v3330 = vmul.f32 %v3250, %v3310
          %v3331 = vmul.f32 %v3251, %v3314
          %v3332 = vpack.c.bf16 %v3317, %v3316
          %v3333 = vpack.c.bf16 %v3319, %v3318
          %v3334 = vpack.c.bf16 %v3321, %v3320
          %v3335 = vpack.c.bf16 %v3323, %v3322
          %v3336 = vpack.c.bf16 %v3325, %v3324
          %v3337 = vpack.c.bf16 %v3327, %v3326
          %v3338 = vpack.c.bf16 %v3329, %v3328
          %v3339 = vpack.c.bf16 %v3331, %v3330
          %v3348 = vunpack.c.l.b16 %v3332
          %v3349 = vunpack.c.h.b16 %v3332
          %v3350 = vunpack.c.l.b16 %v3333
          %v3351 = vunpack.c.h.b16 %v3333
          %v3352 = vunpack.c.l.b16 %v3334
          %v3353 = vunpack.c.h.b16 %v3334
          %v3354 = vunpack.c.l.b16 %v3335
          %v3355 = vunpack.c.h.b16 %v3335
          %v3356 = vunpack.c.l.b16 %v3336
          %v3357 = vunpack.c.h.b16 %v3336
          %v3358 = vunpack.c.l.b16 %v3337
          %v3359 = vunpack.c.h.b16 %v3337
          %v3360 = vunpack.c.l.b16 %v3338
          %v3361 = vunpack.c.h.b16 %v3338
          %v3362 = vunpack.c.l.b16 %v3339
          %v3363 = vunpack.c.h.b16 %v3339
          %v3364 = vpack.c.b16 %v3348, %v3348
          %v3365 = vpack.c.b16 %v3349, %v3349
          %v3366 = vpack.c.b16 %v3350, %v3350
          %v3367 = vpack.c.b16 %v3351, %v3351
          %v3368 = vpack.c.b16 %v3352, %v3352
          %v3369 = vpack.c.b16 %v3353, %v3353
          %v3370 = vpack.c.b16 %v3354, %v3354
          %v3371 = vpack.c.b16 %v3355, %v3355
          %v3372 = vpack.c.b16 %v3356, %v3356
          %v3373 = vpack.c.b16 %v3357, %v3357
          %v3374 = vpack.c.b16 %v3358, %v3358
          %v3375 = vpack.c.b16 %v3359, %v3359
          %v3376 = vpack.c.b16 %v3360, %v3360
          %v3377 = vpack.c.b16 %v3361, %v3361
          %v3378 = vpack.c.b16 %v3362, %v3362
          %v3379 = vpack.c.b16 %v3363, %v3363
          %vm3396 = vcmask 257152
          %3397 = vst.msk [vmem:[%s360] sm:$0xf] %vm3396, %v3364
          %3398 = vst.msk [vmem:[%s360 + $0x4] sm:$0xf] %vm3396, %v3365
          %3399 = vst.msk [vmem:[%s360 + $0x8] sm:$0xf] %vm3396, %v3366
          %3400 = vst.msk [vmem:[%s360 + $0xc] sm:$0xf] %vm3396, %v3367
          %3401 = vst.msk [vmem:[%s360 + $0x10] sm:$0xf] %vm3396, %v3368
          %3402 = vst.msk [vmem:[%s360 + $0x14] sm:$0xf] %vm3396, %v3369
          %3403 = vst.msk [vmem:[%s360 + $0x18] sm:$0xf] %vm3396, %v3370
          %3404 = vst.msk [vmem:[%s360 + $0x1c] sm:$0xf] %vm3396, %v3371
          %3405 = vst.msk [vmem:[%s360 + $0x20] sm:$0xf] %vm3396, %v3372
          %3406 = vst.msk [vmem:[%s360 + $0x24] sm:$0xf] %vm3396, %v3373
          %3407 = vst.msk [vmem:[%s360 + $0x28] sm:$0xf] %vm3396, %v3374
          %3408 = vst.msk [vmem:[%s360 + $0x2c] sm:$0xf] %vm3396, %v3375
          %3409 = vst.msk [vmem:[%s360 + $0x30] sm:$0xf] %vm3396, %v3376
          %3410 = vst.msk [vmem:[%s360 + $0x34] sm:$0xf] %vm3396, %v3377
          %3411 = vst.msk [vmem:[%s360 + $0x38] sm:$0xf] %vm3396, %v3378
          %3412 = vst.msk [vmem:[%s360 + $0x3c] sm:$0xf] %vm3396, %v3379
        $region90: #{tpu_custom_call.1} parent=77 // pred_fallthru
          _
        %s3413 = smul.u32 16, %s21
        %p3414 = scmp.lt.s32.totalorder %s3413, 31
        %s3415 = scalar_select %p3414, %s3413, 31
        %s3416 = smul.addr %s3415, 4
        %s3417 = scalar_lea.vmem %s6, %s3416
        // Predicated region
        $region91: #{tpu_custom_call.1} parent=77 // pred_check
          %p3418 = pneg %p190
        $region92: #{tpu_custom_call.1} parent=77 // pred_check_branch
          %3420 = sbr.rel (%p3418) target = $region94
        $region93: #{tpu_custom_call.1} parent=77 // pred_region
          %s3421 = smul.u32 16, %s21
        $region94: #{tpu_custom_call.1} parent=77 // pred_fallthru
          _
      $region78: #{tpu_custom_call.1} parent=5 // pred_fallthru
        _
      %p3422 = scmp.le.s32.totalorder 2, %s12
      // Predicated region
      $region95: #{tpu_custom_call.1} parent=5 // pred_check
        %p3423 = pneg %p3422
      $region96: #{tpu_custom_call.1} parent=5 // pred_check_branch
        %3425 = sbr.rel (%p3423) target = $region98
      $region97: #{tpu_custom_call.1} parent=5 // pred_region
        %s3426 = ssub.s32 %s12, 2
        // Predicated region
        $region99: #{tpu_custom_call.1} parent=97 // pred_check
          %p3427 = pneg %p196
        $region100: #{tpu_custom_call.1} parent=97 // pred_check_branch
          %3429 = sbr.rel (%p3427) target = $region102
        $region101: #{tpu_custom_call.1} parent=97 // pred_region
          %s3430 = smul.u32 16, %s23
          %p3431 = scmp.lt.s32.totalorder %s3430, 31
          %s3432 = scalar_select %p3431, %s3430, 31
          %s3433 = smul.addr %s3432, 4
          %s3434 = scalar_lea.vmem %s6, %s3433
        $region102: #{tpu_custom_call.1} parent=97 // pred_fallthru
          _
      $region98: #{tpu_custom_call.1} parent=5 // pred_fallthru
        _
    $region6: #{tpu_custom_call.1} parent=1 // loop_footer
      %s16 = sadd.s32 1, %s12
    $region7: #{tpu_custom_call.1} parent=1 // loop_footer_branch
      %11 = sbr.rel target = $region3
    $region8: #{tpu_custom_call.1} parent=1 // loop_exit
      _

</llo_original>
